<compile_context>
chip_gen: v7x
topology: tpu7x:2x2x1
jax: 0.10.0
libtpu: 0.0.40
codegen_flags: <defaults>
</compile_context>

<pallas_src>
import functools

import numpy as np
import jax
import jax.numpy as jnp
from jax.experimental import pallas as pl
from jax.experimental.pallas import tpu as pltpu

IN_DIM = 700     # fc1 input features
HIDDEN = 200     # fc2..fc5 width (zero-padded to 256 lanes)
OUT_DIM = 256    # fc6 output features

IN_PAD = 768     # 700 -> next multiple of 128 (fallback path only)
HID_PAD = 256    # 200 -> 256 (lane-dense / MXU-native)

MAX_TILE_B = 512


def _round_up(x, m):
    return ((x + m - 1) // m) * m


def _choose_tiling(B):
    """Pick (tile_b, n_sub): rows per grid step and number of independent
    in-kernel row chains (keeps the MXU pipeline full across the layer chain)."""
    if B < 64:
        tile_b = _round_up(max(B, 1), 8)              # single tile
    else:
        b_r = _round_up(B, 8)
        # >= 2 programs so v7x's two TensorCores both get work; balanced
        # tiles up to MAX_TILE_B rows, 32-row aligned so the in-kernel
        # two-way row split stays sublane-aligned for any output dtype.
        k = pl.cdiv(b_r, 2 * MAX_TILE_B)              # programs per core
        tile_b = min(_round_up(pl.cdiv(b_r, 2 * k), 32), MAX_TILE_B)
    n_sub = 2 if (tile_b >= 128 and tile_b % 32 == 0) else 1
    return tile_b, n_sub


def mlp_kernel(x_ref, w1_ref, wstack_ref, bias_ref, o_ref, *, n_sub):
    # x_ref:      (TILE_B, K1)            f32 or bf16   (K1 = 700 or 768)
    # w1_ref:     (K1, HID_PAD)           bf16          (fc1, resident)
    # wstack_ref: (5, HID_PAD, HID_PAD)   bf16          (fc2..fc6, resident)
    # bias_ref:   (6, OUT_DIM)            f32           (zero-padded lanes)
    # o_ref:      (TILE_B, OUT_DIM)       f32 (or bf16)
    tile_b = o_ref.shape[0]
    sub = tile_b // n_sub
    for s in range(n_sub):          # independent row chains -> MXU overlap
        rows = pl.ds(s * sub, sub)
        h = x_ref[rows, :].astype(jnp.bfloat16)
        # fc1: (sub, K1) @ (K1, 256), f32 accumulation on the MXU.
        h = jnp.dot(h, w1_ref[...], preferred_element_type=jnp.float32)
        h = jnp.maximum(h + bias_ref[0:1, :], 0.0).astype(jnp.bfloat16)
        # fc2..fc5 with ReLU.
        for layer in range(4):
            h = jnp.dot(h, wstack_ref[layer],
                        preferred_element_type=jnp.float32)
            h = jnp.maximum(h + bias_ref[layer + 1:layer + 2, :],
                            0.0).astype(jnp.bfloat16)
        # fc6: no ReLU.
        y = jnp.dot(h, wstack_ref[4],
                    preferred_element_type=jnp.float32) + bias_ref[5:6, :]
        o_ref[rows, :] = y.astype(o_ref.dtype)


def pack_params(params):
    """params: list of 6 (W (in,out) f32, b (1,out) f32) -> padded bf16 packs."""
    def pad2(w, rows, cols):
        return jnp.zeros((rows, cols), jnp.float32).at[
            :w.shape[0], :w.shape[1]].set(w)

    (w1, b1), *rest = params
    w1_raw = pad2(w1, IN_DIM, HID_PAD).astype(jnp.bfloat16)      # (700, 256)
    w1_pad = pad2(w1, IN_PAD, HID_PAD).astype(jnp.bfloat16)      # (768, 256)
    wstack = jnp.stack([pad2(w, HID_PAD, HID_PAD) for (w, _) in rest]
                       ).astype(jnp.bfloat16)                    # (5, 256, 256)
    biases = [b1] + [b for (_, b) in rest]
    bstack = jnp.stack(
        [jnp.zeros((OUT_DIM,), jnp.float32).at[:b.shape[1]].set(b[0])
         for b in biases])                                       # (6, 256) f32
    return w1_raw, w1_pad, wstack, bstack


@functools.partial(jax.jit, static_argnames=("pre_pad", "out_dtype"))
def mlp_forward(x, packed, pre_pad=False, out_dtype=jnp.float32):
    """x: (B, IN_DIM) f32.  packed: pack_params(...) output."""
    w1_raw, w1_pad, wstack, bstack = packed
    B = x.shape[0]
    tile_b, n_sub = _choose_tiling(B)
    grid = (pl.cdiv(B, tile_b),)   # last block row-masked if tile_b doesn't divide B

    if pre_pad:
        # Fallback: lane-pad + cast in the wrapper (costs an extra HBM pass).
        x_in = jnp.zeros((B, IN_PAD), jnp.bfloat16).at[:, :IN_DIM].set(
            x.astype(jnp.bfloat16))
        w1 = w1_pad
    else:
        # Preferred: feed x unpadded (full last dim == 700 is a legal block);
        # cast to bf16 in-kernel, Mosaic masks the K tail for the matmul.
        x_in = x
        w1 = w1_raw
    k1 = x_in.shape[1]

    flops = 2 * B * (k1 * HID_PAD + 5 * HID_PAD * HID_PAD)
    bytes_accessed = (x_in.size * x_in.dtype.itemsize
                      + w1.size * 2 + wstack.size * 2 + bstack.size * 4
                      + B * OUT_DIM * np.dtype(out_dtype).itemsize)

    in_specs = [
        pl.BlockSpec((tile_b, k1), lambda i: (i, 0)),              # x: batch-tiled
        pl.BlockSpec((k1, HID_PAD), lambda i: (0, 0)),             # fc1: resident
        pl.BlockSpec((5, HID_PAD, HID_PAD), lambda i: (0, 0, 0)),  # fc2..6: resident
        pl.BlockSpec((6, OUT_DIM), lambda i: (0, 0)),              # biases: resident
    ]
    out_spec = pl.BlockSpec((tile_b, OUT_DIM), lambda i: (i, 0))

    return pl.pallas_call(
        functools.partial(mlp_kernel, n_sub=n_sub),
        out_shape=jax.ShapeDtypeStruct((B, OUT_DIM), out_dtype),
        grid=grid,
        in_specs=in_specs,
        out_specs=out_spec,
        compiler_params=pltpu.CompilerParams(
            dimension_semantics=("parallel",)),
        cost_estimate=pl.CostEstimate(flops=flops, transcendentals=0,
                                      bytes_accessed=bytes_accessed),
    )(x_in, w1, wstack, bstack)


def xavier_uniform(key, shape):
    # shape = (in, out); xavier limit is symmetric in fan_in/fan_out, so this
    # matches torch.nn.init.xavier_uniform_ on weight (out, in).
    fan_in, fan_out = shape
    limit = jnp.sqrt(6.0 / (fan_in + fan_out))
    return jax.random.uniform(key, shape, jnp.float32, -limit, limit)


def make_params(key):
    dims = [(IN_DIM, HIDDEN), (HIDDEN, HIDDEN), (HIDDEN, HIDDEN),
            (HIDDEN, HIDDEN), (HIDDEN, HIDDEN), (HIDDEN, OUT_DIM)]
    params = []
    for (din, dout) in dims:
        key, kw, kb = jax.random.split(key, 3)
        w = xavier_uniform(kw, (din, dout))
        # torch.nn.Linear default bias init: U(-1/sqrt(fan_in), 1/sqrt(fan_in))
        bound = 1.0 / jnp.sqrt(jnp.float32(din))
        b = jax.random.uniform(kb, (1, dout), jnp.float32, -bound, bound)
        params.append((w, b))
    return params


def reference_forward(x, params):
    # Mirrors kernel numerics: bf16 matmul inputs, f32 accumulation.
    # (Bit-parity with f32 torch is not targeted; bf16 weights halve DMA.)
    h = x.astype(jnp.bfloat16)
    for i, (w, b) in enumerate(params):
        y = jnp.dot(h, w.astype(jnp.bfloat16),
                    preferred_element_type=jnp.float32) + b
        h = jnp.maximum(y, 0.0).astype(jnp.bfloat16) if i < len(params) - 1 else y
    return h


if __name__ == "__main__":
    key = jax.random.PRNGKey(0)
    key, kx = jax.random.split(key)

    BATCH = 8  # small demo batch; large B uses bigger tiles + multi-program grid
    x = jax.random.normal(kx, (BATCH, IN_DIM), jnp.float32)
    params = make_params(key)
    packed = pack_params(params)
    ref = reference_forward(x, params)

    out = None
    try:
        cand = jax.block_until_ready(mlp_forward(x, packed, pre_pad=False))
        if bool(jnp.allclose(cand, ref, atol=2e-3, rtol=2e-3)):
            out = cand
    except Exception:
        out = None
    if out is None:
        # Safe fallback: wrapper-side lane pad 700 -> 768 (extra HBM pass).
        out = jax.block_until_ready(mlp_forward(x, packed, pre_pad=True))

    assert out.shape == (BATCH, OUT_DIM)
    max_err = float(jnp.max(jnp.abs(out - ref)))
    assert jnp.allclose(out, ref, atol=2e-3, rtol=2e-3), max_err
    print("KERNEL_OK")
</pallas_src>

<mosaic_0001>
module attributes {stable_mosaic.version = 11 : i64} {
  func.func @mlp_kernel(%arg0: i32, %arg1: memref<8x700xf32, #tpu.memory_space<vmem>>, %arg2: memref<700x256xbf16, #tpu.memory_space<vmem>>, %arg3: memref<5x256x256xbf16, #tpu.memory_space<vmem>>, %arg4: memref<6x256xf32, #tpu.memory_space<vmem>>, %arg5: memref<8x256xf32, #tpu.memory_space<vmem>>) attributes {dimension_semantics = [#tpu.dimension_semantics<parallel>], iteration_bounds = array<i64: 1>, scalar_prefetch = 0 : i64, scratch_operands = 0 : i64, tpu.core_type = #tpu.core_type<tc>, window_params = [{transform_indices = @transform_0, window_bounds = array<i64: 8, 700>}, {pipeline_mode = #tpu.pipeline_mode<synchronous>, transform_indices = @transform_1, window_bounds = array<i64: 700, 256>}, {pipeline_mode = #tpu.pipeline_mode<synchronous>, transform_indices = @transform_2, window_bounds = array<i64: 5, 256, 256>}, {pipeline_mode = #tpu.pipeline_mode<synchronous>, transform_indices = @transform_3, window_bounds = array<i64: 6, 256>}, {transform_indices = @transform_4, window_bounds = array<i64: 8, 256>}]} {
    %c0 = arith.constant 0 : index
    %c0_0 = arith.constant 0 : index
    %0 = vector.load %arg1[%c0, %c0_0] : memref<8x700xf32, #tpu.memory_space<vmem>>, vector<8x700xf32>
    %1 = arith.truncf %0 : vector<8x700xf32> to vector<8x700xbf16>
    %c0_1 = arith.constant 0 : index
    %c0_2 = arith.constant 0 : index
    %2 = vector.load %arg2[%c0_1, %c0_2] : memref<700x256xbf16, #tpu.memory_space<vmem>>, vector<700x256xbf16>
    %cst = arith.constant dense<0.000000e+00> : vector<8x256xf32>
    %3 = tpu.matmul %1, %2, %cst {dimension_numbers = #tpu.dot_dimension_numbers<[1], [0], [0], [1], [0, 0, 1, 1], [], []>} : vector<8x700xbf16>, vector<700x256xbf16>, vector<8x256xf32> -> vector<8x256xf32>
    %c0_3 = arith.constant 0 : index
    %c0_4 = arith.constant 0 : index
    %4 = vector.load %arg4[%c0_3, %c0_4] : memref<6x256xf32, #tpu.memory_space<vmem>>, vector<1x256xf32>
    %5 = vector.broadcast %4 : vector<1x256xf32> to vector<8x256xf32>
    %6 = arith.addf %3, %5 : vector<8x256xf32>
    %cst_5 = arith.constant 0.000000e+00 : f32
    %7 = vector.broadcast %cst_5 : f32 to vector<8x256xf32>
    %8 = arith.maximumf %6, %7 : vector<8x256xf32>
    %9 = arith.truncf %8 : vector<8x256xf32> to vector<8x256xbf16>
    %c0_6 = arith.constant 0 : index
    %c0_7 = arith.constant 0 : index
    %c0_8 = arith.constant 0 : index
    %10 = vector.load %arg3[%c0_6, %c0_7, %c0_8] : memref<5x256x256xbf16, #tpu.memory_space<vmem>>, vector<1x256x256xbf16>
    %11 = vector.shape_cast %10 : vector<1x256x256xbf16> to vector<256x256xbf16>
    %cst_9 = arith.constant dense<0.000000e+00> : vector<8x256xf32>
    %12 = tpu.matmul %9, %11, %cst_9 {dimension_numbers = #tpu.dot_dimension_numbers<[1], [0], [0], [1], [0, 0, 1, 1], [], []>} : vector<8x256xbf16>, vector<256x256xbf16>, vector<8x256xf32> -> vector<8x256xf32>
    %c1 = arith.constant 1 : index
    %c0_10 = arith.constant 0 : index
    %13 = vector.load %arg4[%c1, %c0_10] : memref<6x256xf32, #tpu.memory_space<vmem>>, vector<1x256xf32>
    %14 = vector.broadcast %13 : vector<1x256xf32> to vector<8x256xf32>
    %15 = arith.addf %12, %14 : vector<8x256xf32>
    %cst_11 = arith.constant 0.000000e+00 : f32
    %16 = vector.broadcast %cst_11 : f32 to vector<8x256xf32>
    %17 = arith.maximumf %15, %16 : vector<8x256xf32>
    %18 = arith.truncf %17 : vector<8x256xf32> to vector<8x256xbf16>
    %c1_12 = arith.constant 1 : index
    %c0_13 = arith.constant 0 : index
    %c0_14 = arith.constant 0 : index
    %19 = vector.load %arg3[%c1_12, %c0_13, %c0_14] : memref<5x256x256xbf16, #tpu.memory_space<vmem>>, vector<1x256x256xbf16>
    %20 = vector.shape_cast %19 : vector<1x256x256xbf16> to vector<256x256xbf16>
    %cst_15 = arith.constant dense<0.000000e+00> : vector<8x256xf32>
    %21 = tpu.matmul %18, %20, %cst_15 {dimension_numbers = #tpu.dot_dimension_numbers<[1], [0], [0], [1], [0, 0, 1, 1], [], []>} : vector<8x256xbf16>, vector<256x256xbf16>, vector<8x256xf32> -> vector<8x256xf32>
    %c2 = arith.constant 2 : index
    %c0_16 = arith.constant 0 : index
    %22 = vector.load %arg4[%c2, %c0_16] : memref<6x256xf32, #tpu.memory_space<vmem>>, vector<1x256xf32>
    %23 = vector.broadcast %22 : vector<1x256xf32> to vector<8x256xf32>
    %24 = arith.addf %21, %23 : vector<8x256xf32>
    %cst_17 = arith.constant 0.000000e+00 : f32
    %25 = vector.broadcast %cst_17 : f32 to vector<8x256xf32>
    %26 = arith.maximumf %24, %25 : vector<8x256xf32>
    %27 = arith.truncf %26 : vector<8x256xf32> to vector<8x256xbf16>
    %c2_18 = arith.constant 2 : index
    %c0_19 = arith.constant 0 : index
    %c0_20 = arith.constant 0 : index
    %28 = vector.load %arg3[%c2_18, %c0_19, %c0_20] : memref<5x256x256xbf16, #tpu.memory_space<vmem>>, vector<1x256x256xbf16>
    %29 = vector.shape_cast %28 : vector<1x256x256xbf16> to vector<256x256xbf16>
    %cst_21 = arith.constant dense<0.000000e+00> : vector<8x256xf32>
    %30 = tpu.matmul %27, %29, %cst_21 {dimension_numbers = #tpu.dot_dimension_numbers<[1], [0], [0], [1], [0, 0, 1, 1], [], []>} : vector<8x256xbf16>, vector<256x256xbf16>, vector<8x256xf32> -> vector<8x256xf32>
    %c3 = arith.constant 3 : index
    %c0_22 = arith.constant 0 : index
    %31 = vector.load %arg4[%c3, %c0_22] : memref<6x256xf32, #tpu.memory_space<vmem>>, vector<1x256xf32>
    %32 = vector.broadcast %31 : vector<1x256xf32> to vector<8x256xf32>
    %33 = arith.addf %30, %32 : vector<8x256xf32>
    %cst_23 = arith.constant 0.000000e+00 : f32
    %34 = vector.broadcast %cst_23 : f32 to vector<8x256xf32>
    %35 = arith.maximumf %33, %34 : vector<8x256xf32>
    %36 = arith.truncf %35 : vector<8x256xf32> to vector<8x256xbf16>
    %c3_24 = arith.constant 3 : index
    %c0_25 = arith.constant 0 : index
    %c0_26 = arith.constant 0 : index
    %37 = vector.load %arg3[%c3_24, %c0_25, %c0_26] : memref<5x256x256xbf16, #tpu.memory_space<vmem>>, vector<1x256x256xbf16>
    %38 = vector.shape_cast %37 : vector<1x256x256xbf16> to vector<256x256xbf16>
    %cst_27 = arith.constant dense<0.000000e+00> : vector<8x256xf32>
    %39 = tpu.matmul %36, %38, %cst_27 {dimension_numbers = #tpu.dot_dimension_numbers<[1], [0], [0], [1], [0, 0, 1, 1], [], []>} : vector<8x256xbf16>, vector<256x256xbf16>, vector<8x256xf32> -> vector<8x256xf32>
    %c4 = arith.constant 4 : index
    %c0_28 = arith.constant 0 : index
    %40 = vector.load %arg4[%c4, %c0_28] : memref<6x256xf32, #tpu.memory_space<vmem>>, vector<1x256xf32>
    %41 = vector.broadcast %40 : vector<1x256xf32> to vector<8x256xf32>
    %42 = arith.addf %39, %41 : vector<8x256xf32>
    %cst_29 = arith.constant 0.000000e+00 : f32
    %43 = vector.broadcast %cst_29 : f32 to vector<8x256xf32>
    %44 = arith.maximumf %42, %43 : vector<8x256xf32>
    %45 = arith.truncf %44 : vector<8x256xf32> to vector<8x256xbf16>
    %c4_30 = arith.constant 4 : index
    %c0_31 = arith.constant 0 : index
    %c0_32 = arith.constant 0 : index
    %46 = vector.load %arg3[%c4_30, %c0_31, %c0_32] : memref<5x256x256xbf16, #tpu.memory_space<vmem>>, vector<1x256x256xbf16>
    %47 = vector.shape_cast %46 : vector<1x256x256xbf16> to vector<256x256xbf16>
    %cst_33 = arith.constant dense<0.000000e+00> : vector<8x256xf32>
    %48 = tpu.matmul %45, %47, %cst_33 {dimension_numbers = #tpu.dot_dimension_numbers<[1], [0], [0], [1], [0, 0, 1, 1], [], []>} : vector<8x256xbf16>, vector<256x256xbf16>, vector<8x256xf32> -> vector<8x256xf32>
    %c5 = arith.constant 5 : index
    %c0_34 = arith.constant 0 : index
    %49 = vector.load %arg4[%c5, %c0_34] : memref<6x256xf32, #tpu.memory_space<vmem>>, vector<1x256xf32>
    %50 = vector.broadcast %49 : vector<1x256xf32> to vector<8x256xf32>
    %51 = arith.addf %48, %50 : vector<8x256xf32>
    %c0_35 = arith.constant 0 : index
    %c0_36 = arith.constant 0 : index
    %52 = vector.load %arg5[%c0_35, %c0_36] : memref<8x256xf32, #tpu.memory_space<vmem>>, vector<8x256xf32>
    tpu.vector_store %arg5[%c0_35, %c0_36], %51 {strides = array<i32>} : memref<8x256xf32, #tpu.memory_space<vmem>>, vector<8x256xf32>,
    return
  }
  func.func @transform_0(%arg0: i32) -> (i32, i32) {
    %c0_i32 = arith.constant 0 : i32
    %c0_i32_0 = arith.constant 0 : i32
    return %arg0, %c0_i32 : i32, i32
  }
  func.func @transform_1(%arg0: i32) -> (i32, i32) {
    %c0_i32 = arith.constant 0 : i32
    %c0_i32_0 = arith.constant 0 : i32
    %c0_i32_1 = arith.constant 0 : i32
    return %c0_i32, %c0_i32_0 : i32, i32
  }
  func.func @transform_2(%arg0: i32) -> (i32, i32, i32) {
    %c0_i32 = arith.constant 0 : i32
    %c0_i32_0 = arith.constant 0 : i32
    %c0_i32_1 = arith.constant 0 : i32
    %c0_i32_2 = arith.constant 0 : i32
    return %c0_i32, %c0_i32_0, %c0_i32_1 : i32, i32, i32
  }
  func.func @transform_3(%arg0: i32) -> (i32, i32) {
    %c0_i32 = arith.constant 0 : i32
    %c0_i32_0 = arith.constant 0 : i32
    %c0_i32_1 = arith.constant 0 : i32
    return %c0_i32, %c0_i32_0 : i32, i32
  }
  func.func @transform_4(%arg0: i32) -> (i32, i32) {
    %c0_i32 = arith.constant 0 : i32
    %c0_i32_0 = arith.constant 0 : i32
    return %arg0, %c0_i32 : i32, i32
  }
}

module attributes {stable_mosaic.version = 11 : i64} {
  func.func @mlp_kernel(%arg0: i32, %arg1: memref<8x768xbf16, #tpu.memory_space<vmem>>, %arg2: memref<768x256xbf16, #tpu.memory_space<vmem>>, %arg3: memref<5x256x256xbf16, #tpu.memory_space<vmem>>, %arg4: memref<6x256xf32, #tpu.memory_space<vmem>>, %arg5: memref<8x256xf32, #tpu.memory_space<vmem>>) attributes {dimension_semantics = [#tpu.dimension_semantics<parallel>], iteration_bounds = array<i64: 1>, scalar_prefetch = 0 : i64, scratch_operands = 0 : i64, tpu.core_type = #tpu.core_type<tc>, window_params = [{transform_indices = @transform_0, window_bounds = array<i64: 8, 768>}, {pipeline_mode = #tpu.pipeline_mode<synchronous>, transform_indices = @transform_1, window_bounds = array<i64: 768, 256>}, {pipeline_mode = #tpu.pipeline_mode<synchronous>, transform_indices = @transform_2, window_bounds = array<i64: 5, 256, 256>}, {pipeline_mode = #tpu.pipeline_mode<synchronous>, transform_indices = @transform_3, window_bounds = array<i64: 6, 256>}, {transform_indices = @transform_4, window_bounds = array<i64: 8, 256>}]} {
    %c0 = arith.constant 0 : index
    %c0_0 = arith.constant 0 : index
    %0 = vector.load %arg1[%c0, %c0_0] : memref<8x768xbf16, #tpu.memory_space<vmem>>, vector<8x768xbf16>
    %c0_1 = arith.constant 0 : index
    %c0_2 = arith.constant 0 : index
    %1 = vector.load %arg2[%c0_1, %c0_2] : memref<768x256xbf16, #tpu.memory_space<vmem>>, vector<768x256xbf16>
    %cst = arith.constant dense<0.000000e+00> : vector<8x256xf32>
    %2 = tpu.matmul %0, %1, %cst {dimension_numbers = #tpu.dot_dimension_numbers<[1], [0], [0], [1], [0, 0, 1, 1], [], []>} : vector<8x768xbf16>, vector<768x256xbf16>, vector<8x256xf32> -> vector<8x256xf32>
    %c0_3 = arith.constant 0 : index
    %c0_4 = arith.constant 0 : index
    %3 = vector.load %arg4[%c0_3, %c0_4] : memref<6x256xf32, #tpu.memory_space<vmem>>, vector<1x256xf32>
    %4 = vector.broadcast %3 : vector<1x256xf32> to vector<8x256xf32>
    %5 = arith.addf %2, %4 : vector<8x256xf32>
    %cst_5 = arith.constant 0.000000e+00 : f32
    %6 = vector.broadcast %cst_5 : f32 to vector<8x256xf32>
    %7 = arith.maximumf %5, %6 : vector<8x256xf32>
    %8 = arith.truncf %7 : vector<8x256xf32> to vector<8x256xbf16>
    %c0_6 = arith.constant 0 : index
    %c0_7 = arith.constant 0 : index
    %c0_8 = arith.constant 0 : index
    %9 = vector.load %arg3[%c0_6, %c0_7, %c0_8] : memref<5x256x256xbf16, #tpu.memory_space<vmem>>, vector<1x256x256xbf16>
    %10 = vector.shape_cast %9 : vector<1x256x256xbf16> to vector<256x256xbf16>
    %cst_9 = arith.constant dense<0.000000e+00> : vector<8x256xf32>
    %11 = tpu.matmul %8, %10, %cst_9 {dimension_numbers = #tpu.dot_dimension_numbers<[1], [0], [0], [1], [0, 0, 1, 1], [], []>} : vector<8x256xbf16>, vector<256x256xbf16>, vector<8x256xf32> -> vector<8x256xf32>
    %c1 = arith.constant 1 : index
    %c0_10 = arith.constant 0 : index
    %12 = vector.load %arg4[%c1, %c0_10] : memref<6x256xf32, #tpu.memory_space<vmem>>, vector<1x256xf32>
    %13 = vector.broadcast %12 : vector<1x256xf32> to vector<8x256xf32>
    %14 = arith.addf %11, %13 : vector<8x256xf32>
    %cst_11 = arith.constant 0.000000e+00 : f32
    %15 = vector.broadcast %cst_11 : f32 to vector<8x256xf32>
    %16 = arith.maximumf %14, %15 : vector<8x256xf32>
    %17 = arith.truncf %16 : vector<8x256xf32> to vector<8x256xbf16>
    %c1_12 = arith.constant 1 : index
    %c0_13 = arith.constant 0 : index
    %c0_14 = arith.constant 0 : index
    %18 = vector.load %arg3[%c1_12, %c0_13, %c0_14] : memref<5x256x256xbf16, #tpu.memory_space<vmem>>, vector<1x256x256xbf16>
    %19 = vector.shape_cast %18 : vector<1x256x256xbf16> to vector<256x256xbf16>
    %cst_15 = arith.constant dense<0.000000e+00> : vector<8x256xf32>
    %20 = tpu.matmul %17, %19, %cst_15 {dimension_numbers = #tpu.dot_dimension_numbers<[1], [0], [0], [1], [0, 0, 1, 1], [], []>} : vector<8x256xbf16>, vector<256x256xbf16>, vector<8x256xf32> -> vector<8x256xf32>
    %c2 = arith.constant 2 : index
    %c0_16 = arith.constant 0 : index
    %21 = vector.load %arg4[%c2, %c0_16] : memref<6x256xf32, #tpu.memory_space<vmem>>, vector<1x256xf32>
    %22 = vector.broadcast %21 : vector<1x256xf32> to vector<8x256xf32>
    %23 = arith.addf %20, %22 : vector<8x256xf32>
    %cst_17 = arith.constant 0.000000e+00 : f32
    %24 = vector.broadcast %cst_17 : f32 to vector<8x256xf32>
    %25 = arith.maximumf %23, %24 : vector<8x256xf32>
    %26 = arith.truncf %25 : vector<8x256xf32> to vector<8x256xbf16>
    %c2_18 = arith.constant 2 : index
    %c0_19 = arith.constant 0 : index
    %c0_20 = arith.constant 0 : index
    %27 = vector.load %arg3[%c2_18, %c0_19, %c0_20] : memref<5x256x256xbf16, #tpu.memory_space<vmem>>, vector<1x256x256xbf16>
    %28 = vector.shape_cast %27 : vector<1x256x256xbf16> to vector<256x256xbf16>
    %cst_21 = arith.constant dense<0.000000e+00> : vector<8x256xf32>
    %29 = tpu.matmul %26, %28, %cst_21 {dimension_numbers = #tpu.dot_dimension_numbers<[1], [0], [0], [1], [0, 0, 1, 1], [], []>} : vector<8x256xbf16>, vector<256x256xbf16>, vector<8x256xf32> -> vector<8x256xf32>
    %c3 = arith.constant 3 : index
    %c0_22 = arith.constant 0 : index
    %30 = vector.load %arg4[%c3, %c0_22] : memref<6x256xf32, #tpu.memory_space<vmem>>, vector<1x256xf32>
    %31 = vector.broadcast %30 : vector<1x256xf32> to vector<8x256xf32>
    %32 = arith.addf %29, %31 : vector<8x256xf32>
    %cst_23 = arith.constant 0.000000e+00 : f32
    %33 = vector.broadcast %cst_23 : f32 to vector<8x256xf32>
    %34 = arith.maximumf %32, %33 : vector<8x256xf32>
    %35 = arith.truncf %34 : vector<8x256xf32> to vector<8x256xbf16>
    %c3_24 = arith.constant 3 : index
    %c0_25 = arith.constant 0 : index
    %c0_26 = arith.constant 0 : index
    %36 = vector.load %arg3[%c3_24, %c0_25, %c0_26] : memref<5x256x256xbf16, #tpu.memory_space<vmem>>, vector<1x256x256xbf16>
    %37 = vector.shape_cast %36 : vector<1x256x256xbf16> to vector<256x256xbf16>
    %cst_27 = arith.constant dense<0.000000e+00> : vector<8x256xf32>
    %38 = tpu.matmul %35, %37, %cst_27 {dimension_numbers = #tpu.dot_dimension_numbers<[1], [0], [0], [1], [0, 0, 1, 1], [], []>} : vector<8x256xbf16>, vector<256x256xbf16>, vector<8x256xf32> -> vector<8x256xf32>
    %c4 = arith.constant 4 : index
    %c0_28 = arith.constant 0 : index
    %39 = vector.load %arg4[%c4, %c0_28] : memref<6x256xf32, #tpu.memory_space<vmem>>, vector<1x256xf32>
    %40 = vector.broadcast %39 : vector<1x256xf32> to vector<8x256xf32>
    %41 = arith.addf %38, %40 : vector<8x256xf32>
    %cst_29 = arith.constant 0.000000e+00 : f32
    %42 = vector.broadcast %cst_29 : f32 to vector<8x256xf32>
    %43 = arith.maximumf %41, %42 : vector<8x256xf32>
    %44 = arith.truncf %43 : vector<8x256xf32> to vector<8x256xbf16>
    %c4_30 = arith.constant 4 : index
    %c0_31 = arith.constant 0 : index
    %c0_32 = arith.constant 0 : index
    %45 = vector.load %arg3[%c4_30, %c0_31, %c0_32] : memref<5x256x256xbf16, #tpu.memory_space<vmem>>, vector<1x256x256xbf16>
    %46 = vector.shape_cast %45 : vector<1x256x256xbf16> to vector<256x256xbf16>
    %cst_33 = arith.constant dense<0.000000e+00> : vector<8x256xf32>
    %47 = tpu.matmul %44, %46, %cst_33 {dimension_numbers = #tpu.dot_dimension_numbers<[1], [0], [0], [1], [0, 0, 1, 1], [], []>} : vector<8x256xbf16>, vector<256x256xbf16>, vector<8x256xf32> -> vector<8x256xf32>
    %c5 = arith.constant 5 : index
    %c0_34 = arith.constant 0 : index
    %48 = vector.load %arg4[%c5, %c0_34] : memref<6x256xf32, #tpu.memory_space<vmem>>, vector<1x256xf32>
    %49 = vector.broadcast %48 : vector<1x256xf32> to vector<8x256xf32>
    %50 = arith.addf %47, %49 : vector<8x256xf32>
    %c0_35 = arith.constant 0 : index
    %c0_36 = arith.constant 0 : index
    %51 = vector.load %arg5[%c0_35, %c0_36] : memref<8x256xf32, #tpu.memory_space<vmem>>, vector<8x256xf32>
    tpu.vector_store %arg5[%c0_35, %c0_36], %50 {strides = array<i32>} : memref<8x256xf32, #tpu.memory_space<vmem>>, vector<8x256xf32>,
    return
  }
  func.func @transform_0(%arg0: i32) -> (i32, i32) {
    %c0_i32 = arith.constant 0 : i32
    %c0_i32_0 = arith.constant 0 : i32
    return %arg0, %c0_i32 : i32, i32
  }
  func.func @transform_1(%arg0: i32) -> (i32, i32) {
    %c0_i32 = arith.constant 0 : i32
    %c0_i32_0 = arith.constant 0 : i32
    %c0_i32_1 = arith.constant 0 : i32
    return %c0_i32, %c0_i32_0 : i32, i32
  }
  func.func @transform_2(%arg0: i32) -> (i32, i32, i32) {
    %c0_i32 = arith.constant 0 : i32
    %c0_i32_0 = arith.constant 0 : i32
    %c0_i32_1 = arith.constant 0 : i32
    %c0_i32_2 = arith.constant 0 : i32
    return %c0_i32, %c0_i32_0, %c0_i32_1 : i32, i32, i32
  }
  func.func @transform_3(%arg0: i32) -> (i32, i32) {
    %c0_i32 = arith.constant 0 : i32
    %c0_i32_0 = arith.constant 0 : i32
    %c0_i32_1 = arith.constant 0 : i32
    return %c0_i32, %c0_i32_0 : i32, i32
  }
  func.func @transform_4(%arg0: i32) -> (i32, i32) {
    %c0_i32 = arith.constant 0 : i32
    %c0_i32_0 = arith.constant 0 : i32
    return %arg0, %c0_i32 : i32, i32
  }
}

</mosaic_0001>

<llo_original>
// kernel: mlp_forward.1
$region0: #{mlp_forward.1}
  #allocation0 [shape = 'u32[]', space=smem, size = 0x4, offset = 0x4, fixed_abs, tag = 'smem constant byte address 0x4 - core index']
  #allocation1 [shape = 'u32[144,128]{1,0:T(1,128)}', space=vmem, size = 0x12000, scoped, tag = 'internal scratch']
  %s0 = inlined_call_operand.hbm [shape: f32[8,700], index: 0, kind: input, shape index: {}]
  %s1 = inlined_call_operand.hbm [shape: bf16[700,256], index: 1, kind: input, shape index: {}]
  %s2 = inlined_call_operand.hbm [shape: bf16[5,256,256], index: 2, kind: input, shape index: {}]
  %s3 = inlined_call_operand.hbm [shape: f32[6,256], index: 3, kind: input, shape index: {}]
  %s4 = inlined_call_operand.hbm [shape: f32[8,256], index: 4, kind: output, shape index: {}]
  %s5 = sld [smem:[#allocation0]]
  $region42: #{mlp_forward.1} parent=0
    _
  %s7 = ssub.s32 1, %s5
  %s8 = scalar_select 0, %s7, %s5
  $region1: #{mlp_forward.1} parent=0
    #allocation2 [shape = 'u8[24576]{0}', space=vmem, size = 0x6000, scoped, tag = 'input window, operand 0, single buffered']
    #allocation3 [shape = 's32[1]{0}', space=sflag, size = 0x4, scoped, tag = 'scoped memory for mlp_forward.1']
    #allocation4 [shape = 's32[1]{0}', space=sflag, size = 0x4, scoped, tag = 'scoped memory for mlp_forward.1']
    #allocation5 [shape = 'u8[360448]{0}', space=vmem, size = 0x58000, scoped, tag = 'input window, operand 1, single buffered']
    #allocation6 [shape = 's32[1]{0}', space=sflag, size = 0x4, scoped, tag = 'scoped memory for mlp_forward.1']
    #allocation7 [shape = 'u8[655360]{0}', space=vmem, size = 0xa0000, scoped, tag = 'input window, operand 2, single buffered']
    #allocation8 [shape = 'u8[8192]{0}', space=vmem, size = 0x2000, scoped, tag = 'input window, operand 3, single buffered']
    #allocation9 [shape = 's32[1]{0}', space=sflag, size = 0x4, scoped, tag = 'scoped memory for mlp_forward.1']
    #allocation10 [shape = 'u8[8192]{0}', space=vmem, size = 0x2000, scoped, tag = 'output window, operand 0, single buffered']
    %9 = vsyncpa [#allocation3], 0
    %10 = vsyncpa [#allocation6], 0
    %11 = vsyncpa [#allocation9], 0
    %12 = vsyncpa [#allocation4], 0
    // Predicated region
    $region2: #{mlp_forward.1} parent=1 // pred_check
      _
    $region3: #{mlp_forward.1} parent=1 // pred_check_branch
      %14 = sbr.rel (0) target = $region5
    $region4: #{mlp_forward.1} parent=1 // pred_region
      %s16 = ssub.s32 768, 768
      %17 = vsyncadd [#allocation3], %s16
      %s19 = sshll.u32 [#allocation2], 4
      %s20 = int_to_ptr.vmem [resolvable:$true] %s19
      %22 = dma.hbm_to_vmem [thread:$0]  %s0, 768, %s20, [#allocation3]
    $region5: #{mlp_forward.1} parent=1 // pred_fallthru
      _
    // Predicated region
    $region6: #{mlp_forward.1} parent=1 // pred_check
      _
    $region7: #{mlp_forward.1} parent=1 // pred_check_branch
      %24 = sbr.rel (0) target = $region9
    $region8: #{mlp_forward.1} parent=1 // pred_region
      %s26 = ssub.s32 11264, 11264
      %27 = vsyncadd [#allocation6], %s26
      %s28 = sshll.u32 [#allocation5], 4
      %s29 = int_to_ptr.vmem [resolvable:$true] %s28
      %34 = dma.hbm_to_vmem [thread:$0]  %s1, 11264, %s29, [#allocation6], 128, 128, 8
    $region9: #{mlp_forward.1} parent=1 // pred_fallthru
      _
    // Predicated region
    $region10: #{mlp_forward.1} parent=1 // pred_check
      _
    $region11: #{mlp_forward.1} parent=1 // pred_check_branch
      %36 = sbr.rel (0) target = $region13
    $region12: #{mlp_forward.1} parent=1 // pred_region
      %s38 = ssub.s32 20480, 20480
      %39 = vsyncadd [#allocation6], %s38
      %s40 = sshll.u32 [#allocation7], 4
      %s41 = int_to_ptr.vmem [resolvable:$true] %s40
      %46 = dma.hbm_to_vmem [thread:$0]  %s2, 20480, %s41, [#allocation6], 128, 128, 8
    $region13: #{mlp_forward.1} parent=1 // pred_fallthru
      _
    // Predicated region
    $region14: #{mlp_forward.1} parent=1 // pred_check
      _
    $region15: #{mlp_forward.1} parent=1 // pred_check_branch
      %48 = sbr.rel (0) target = $region17
    $region16: #{mlp_forward.1} parent=1 // pred_region
      %s50 = ssub.s32 256, 256
      %51 = vsyncadd [#allocation9], %s50
      %s53 = sshll.u32 [#allocation8], 4
      %s54 = int_to_ptr.vmem [resolvable:$true] %s53
      %56 = dma.hbm_to_vmem [thread:$0]  %s3, 256, %s54, [#allocation9]
    $region17: #{mlp_forward.1} parent=1 // pred_fallthru
      _
    // Predicated region
    $region18: #{mlp_forward.1} parent=1 // pred_check
      _
    $region19: #{mlp_forward.1} parent=1 // pred_check_branch
      %58 = sbr.rel (0) target = $region21
    $region20: #{mlp_forward.1} parent=1 // pred_region
      %59 = dma.done [#allocation3], 768
    $region21: #{mlp_forward.1} parent=1 // pred_fallthru
      _
    // Predicated region
    $region22: #{mlp_forward.1} parent=1 // pred_check
      _
    $region23: #{mlp_forward.1} parent=1 // pred_check_branch
      %61 = sbr.rel (0) target = $region25
    $region24: #{mlp_forward.1} parent=1 // pred_region
      %62 = dma.done [#allocation6], 11264
    $region25: #{mlp_forward.1} parent=1 // pred_fallthru
      _
    // Predicated region
    $region26: #{mlp_forward.1} parent=1 // pred_check
      _
    $region27: #{mlp_forward.1} parent=1 // pred_check_branch
      %64 = sbr.rel (0) target = $region29
    $region28: #{mlp_forward.1} parent=1 // pred_region
      %65 = dma.done [#allocation6], 20480
    $region29: #{mlp_forward.1} parent=1 // pred_fallthru
      _
    // Predicated region
    $region30: #{mlp_forward.1} parent=1 // pred_check
      _
    $region31: #{mlp_forward.1} parent=1 // pred_check_branch
      %67 = sbr.rel (0) target = $region33
    $region32: #{mlp_forward.1} parent=1 // pred_region
      %68 = dma.done [#allocation9], 256
    $region33: #{mlp_forward.1} parent=1 // pred_fallthru
      _
    %v70 = vld [vmem:[#allocation2] sm:$0xff]
    %v71 = vld [vmem:[#allocation2 + $0x8] sm:$0xff]
    %v72 = vld [vmem:[#allocation2 + $0x10] sm:$0xff]
    %v73 = vld [vmem:[#allocation2 + $0x18] sm:$0xff]
    %v74 = vld [vmem:[#allocation2 + $0x20] sm:$0xff]
    %v75 = vld [vmem:[#allocation2 + $0x28] sm:$0xff]
    %v76 = vpack.c.bf16 %v70, %v70
    %v77 = vpack.c.bf16 %v71, %v71
    %v78 = vpack.c.bf16 %v72, %v72
    %v79 = vpack.c.bf16 %v73, %v73
    %v80 = vpack.c.bf16 %v74, %v74
    %v81 = vpack.c.bf16 %v75, %v75
    %v82 = vld [vmem:[#allocation5] sm:$0xff]
    %v83 = vld [vmem:[#allocation5 + $0x8] sm:$0xff]
    %v84 = vld [vmem:[#allocation5 + $0x10] sm:$0xff]
    %v85 = vld [vmem:[#allocation5 + $0x18] sm:$0xff]
    %v86 = vld [vmem:[#allocation5 + $0x20] sm:$0xff]
    %v87 = vld [vmem:[#allocation5 + $0x28] sm:$0xff]
    %v88 = vld [vmem:[#allocation5 + $0x30] sm:$0xff]
    %v89 = vld [vmem:[#allocation5 + $0x38] sm:$0xff]
    %v90 = vld [vmem:[#allocation5 + $0x40] sm:$0xff]
    %v91 = vld [vmem:[#allocation5 + $0x48] sm:$0xff]
    %v92 = vld [vmem:[#allocation5 + $0x50] sm:$0xff]
    %v93 = vld [vmem:[#allocation5 + $0x58] sm:$0xff]
    %v94 = vld [vmem:[#allocation5 + $0x60] sm:$0xff]
    %v95 = vld [vmem:[#allocation5 + $0x68] sm:$0xff]
    %v96 = vld [vmem:[#allocation5 + $0x70] sm:$0xff]
    %v97 = vld [vmem:[#allocation5 + $0x78] sm:$0xff]
    %v98 = vld [vmem:[#allocation5 + $0x80] sm:$0xff]
    %v99 = vld [vmem:[#allocation5 + $0x88] sm:$0xff]
    %v100 = vld [vmem:[#allocation5 + $0x90] sm:$0xff]
    %v101 = vld [vmem:[#allocation5 + $0x98] sm:$0xff]
    %v102 = vld [vmem:[#allocation5 + $0xa0] sm:$0xff]
    %v103 = vld [vmem:[#allocation5 + $0xa8] sm:$0xff]
    %v104 = vld [vmem:[#allocation5 + $0xb0] sm:$0xff]
    %v105 = vld [vmem:[#allocation5 + $0xb8] sm:$0xff]
    %v106 = vld [vmem:[#allocation5 + $0xc0] sm:$0xff]
    %v107 = vld [vmem:[#allocation5 + $0xc8] sm:$0xff]
    %v108 = vld [vmem:[#allocation5 + $0xd0] sm:$0xff]
    %v109 = vld [vmem:[#allocation5 + $0xd8] sm:$0xff]
    %v110 = vld [vmem:[#allocation5 + $0xe0] sm:$0xff]
    %v111 = vld [vmem:[#allocation5 + $0xe8] sm:$0xff]
    %v112 = vld [vmem:[#allocation5 + $0xf0] sm:$0xff]
    %v113 = vld [vmem:[#allocation5 + $0xf8] sm:$0xff]
    %v114 = vld [vmem:[#allocation5 + $0x100] sm:$0xff]
    %v115 = vld [vmem:[#allocation5 + $0x108] sm:$0xff]
    %v116 = vld [vmem:[#allocation5 + $0x110] sm:$0xff]
    %v117 = vld [vmem:[#allocation5 + $0x118] sm:$0xff]
    %v118 = vld [vmem:[#allocation5 + $0x120] sm:$0xff]
    %v119 = vld [vmem:[#allocation5 + $0x128] sm:$0xff]
    %v120 = vld [vmem:[#allocation5 + $0x130] sm:$0xff]
    %v121 = vld [vmem:[#allocation5 + $0x138] sm:$0xff]
    %v122 = vld [vmem:[#allocation5 + $0x140] sm:$0xff]
    %v123 = vld [vmem:[#allocation5 + $0x148] sm:$0xff]
    %v124 = vld [vmem:[#allocation5 + $0x150] sm:$0xff]
    %v125 = vld [vmem:[#allocation5 + $0x158] sm:$0xff]
    %v126 = vld [vmem:[#allocation5 + $0x160] sm:$0xff]
    %v127 = vld [vmem:[#allocation5 + $0x168] sm:$0xff]
    %v128 = vld [vmem:[#allocation5 + $0x170] sm:$0xff]
    %v129 = vld [vmem:[#allocation5 + $0x178] sm:$0xff]
    %v130 = vld [vmem:[#allocation5 + $0x180] sm:$0xff]
    %v131 = vld [vmem:[#allocation5 + $0x188] sm:$0xff]
    %v132 = vld [vmem:[#allocation5 + $0x190] sm:$0xff]
    %v133 = vld [vmem:[#allocation5 + $0x198] sm:$0xff]
    %v134 = vld [vmem:[#allocation5 + $0x1a0] sm:$0xff]
    %v135 = vld [vmem:[#allocation5 + $0x1a8] sm:$0xff]
    %v136 = vld [vmem:[#allocation5 + $0x1b0] sm:$0xff]
    %v137 = vld [vmem:[#allocation5 + $0x1b8] sm:$0xff]
    %v138 = vld [vmem:[#allocation5 + $0x1c0] sm:$0xff]
    %v139 = vld [vmem:[#allocation5 + $0x1c8] sm:$0xff]
    %v140 = vld [vmem:[#allocation5 + $0x1d0] sm:$0xff]
    %v141 = vld [vmem:[#allocation5 + $0x1d8] sm:$0xff]
    %v142 = vld [vmem:[#allocation5 + $0x1e0] sm:$0xff]
    %v143 = vld [vmem:[#allocation5 + $0x1e8] sm:$0xff]
    %v144 = vld [vmem:[#allocation5 + $0x1f0] sm:$0xff]
    %v145 = vld [vmem:[#allocation5 + $0x1f8] sm:$0xff]
    %v146 = vld [vmem:[#allocation5 + $0x200] sm:$0xff]
    %v147 = vld [vmem:[#allocation5 + $0x208] sm:$0xff]
    %v148 = vld [vmem:[#allocation5 + $0x210] sm:$0xff]
    %v149 = vld [vmem:[#allocation5 + $0x218] sm:$0xff]
    %v150 = vld [vmem:[#allocation5 + $0x220] sm:$0xff]
    %v151 = vld [vmem:[#allocation5 + $0x228] sm:$0xff]
    %v152 = vld [vmem:[#allocation5 + $0x230] sm:$0xff]
    %v153 = vld [vmem:[#allocation5 + $0x238] sm:$0xff]
    %v154 = vld [vmem:[#allocation5 + $0x240] sm:$0xff]
    %v155 = vld [vmem:[#allocation5 + $0x248] sm:$0xff]
    %v156 = vld [vmem:[#allocation5 + $0x250] sm:$0xff]
    %v157 = vld [vmem:[#allocation5 + $0x258] sm:$0xff]
    %v158 = vld [vmem:[#allocation5 + $0x260] sm:$0xff]
    %v159 = vld [vmem:[#allocation5 + $0x268] sm:$0xff]
    %v160 = vld [vmem:[#allocation5 + $0x270] sm:$0xff]
    %v161 = vld [vmem:[#allocation5 + $0x278] sm:$0xff]
    %v162 = vld [vmem:[#allocation5 + $0x280] sm:$0xff]
    %v163 = vld [vmem:[#allocation5 + $0x288] sm:$0xff]
    %v164 = vld [vmem:[#allocation5 + $0x290] sm:$0xff]
    %v165 = vld [vmem:[#allocation5 + $0x298] sm:$0xff]
    %v166 = vld [vmem:[#allocation5 + $0x2a0] sm:$0xff]
    %v167 = vld [vmem:[#allocation5 + $0x2a8] sm:$0xff]
    %v168 = vld [vmem:[#allocation5 + $0x2b0] sm:$0xff]
    %v169 = vld [vmem:[#allocation5 + $0x2b8] sm:$0x33]
    %v170 = vld [vmem:[#allocation8] ss:$8 sm:$0x3]
    %v172 = vlaneseq
    %v173 = vshrl.u32 %v172, 7
    %v174 = vsub.s32 0, %v173
    %v175 = vrot.slane %v170, %v174
    %v176 = vlaneseq
    %v177 = vshrl.u32 %v176, 7
    %v178 = vsub.s32 1, %v177
    %v179 = vrot.slane %v170, %v178
    %v270 = vunpack.c.l.b16 %v82
    %v271 = vunpack.c.h.b16 %v82
    %v272 = vunpack.c.l.b16 %v83
    %v273 = vunpack.c.h.b16 %v83
    %v274 = vunpack.c.l.b16 %v84
    %v275 = vunpack.c.h.b16 %v84
    %v276 = vunpack.c.l.b16 %v85
    %v277 = vunpack.c.h.b16 %v85
    %v278 = vunpack.c.l.b16 %v86
    %v279 = vunpack.c.h.b16 %v86
    %v280 = vunpack.c.l.b16 %v87
    %v281 = vunpack.c.h.b16 %v87
    %v282 = vunpack.c.l.b16 %v88
    %v283 = vunpack.c.h.b16 %v88
    %v284 = vunpack.c.l.b16 %v89
    %v285 = vunpack.c.h.b16 %v89
    %v286 = vunpack.c.l.b16 %v90
    %v287 = vunpack.c.h.b16 %v90
    %v288 = vunpack.c.l.b16 %v91
    %v289 = vunpack.c.h.b16 %v91
    %v290 = vunpack.c.l.b16 %v92
    %v291 = vunpack.c.h.b16 %v92
    %v292 = vunpack.c.l.b16 %v93
    %v293 = vunpack.c.h.b16 %v93
    %v294 = vunpack.c.l.b16 %v94
    %v295 = vunpack.c.h.b16 %v94
    %v296 = vunpack.c.l.b16 %v95
    %v297 = vunpack.c.h.b16 %v95
    %v298 = vunpack.c.l.b16 %v96
    %v299 = vunpack.c.h.b16 %v96
    %v300 = vunpack.c.l.b16 %v97
    %v301 = vunpack.c.h.b16 %v97
    %v302 = vunpack.c.l.b16 %v98
    %v303 = vunpack.c.h.b16 %v98
    %v304 = vunpack.c.l.b16 %v99
    %v305 = vunpack.c.h.b16 %v99
    %v306 = vunpack.c.l.b16 %v100
    %v307 = vunpack.c.h.b16 %v100
    %v308 = vunpack.c.l.b16 %v101
    %v309 = vunpack.c.h.b16 %v101
    %v310 = vunpack.c.l.b16 %v102
    %v311 = vunpack.c.h.b16 %v102
    %v312 = vunpack.c.l.b16 %v103
    %v313 = vunpack.c.h.b16 %v103
    %v314 = vunpack.c.l.b16 %v104
    %v315 = vunpack.c.h.b16 %v104
    %v316 = vunpack.c.l.b16 %v105
    %v317 = vunpack.c.h.b16 %v105
    %v318 = vunpack.c.l.b16 %v106
    %v319 = vunpack.c.h.b16 %v106
    %v320 = vunpack.c.l.b16 %v107
    %v321 = vunpack.c.h.b16 %v107
    %v322 = vunpack.c.l.b16 %v108
    %v323 = vunpack.c.h.b16 %v108
    %v324 = vunpack.c.l.b16 %v109
    %v325 = vunpack.c.h.b16 %v109
    %v326 = vunpack.c.l.b16 %v110
    %v327 = vunpack.c.h.b16 %v110
    %v328 = vunpack.c.l.b16 %v111
    %v329 = vunpack.c.h.b16 %v111
    %v330 = vunpack.c.l.b16 %v112
    %v331 = vunpack.c.h.b16 %v112
    %v332 = vunpack.c.l.b16 %v113
    %v333 = vunpack.c.h.b16 %v113
    %v334 = vunpack.c.l.b16 %v114
    %v335 = vunpack.c.h.b16 %v114
    %v336 = vunpack.c.l.b16 %v115
    %v337 = vunpack.c.h.b16 %v115
    %v338 = vunpack.c.l.b16 %v116
    %v339 = vunpack.c.h.b16 %v116
    %v340 = vunpack.c.l.b16 %v117
    %v341 = vunpack.c.h.b16 %v117
    %v342 = vunpack.c.l.b16 %v118
    %v343 = vunpack.c.h.b16 %v118
    %v344 = vunpack.c.l.b16 %v119
    %v345 = vunpack.c.h.b16 %v119
    %v346 = vunpack.c.l.b16 %v120
    %v347 = vunpack.c.h.b16 %v120
    %v348 = vunpack.c.l.b16 %v121
    %v349 = vunpack.c.h.b16 %v121
    %v350 = vunpack.c.l.b16 %v122
    %v351 = vunpack.c.h.b16 %v122
    %v352 = vunpack.c.l.b16 %v123
    %v353 = vunpack.c.h.b16 %v123
    %v354 = vunpack.c.l.b16 %v124
    %v355 = vunpack.c.h.b16 %v124
    %v356 = vunpack.c.l.b16 %v125
    %v357 = vunpack.c.h.b16 %v125
    %v358 = vunpack.c.l.b16 %v126
    %v359 = vunpack.c.h.b16 %v126
    %v360 = vunpack.c.l.b16 %v127
    %v361 = vunpack.c.h.b16 %v127
    %v362 = vunpack.c.l.b16 %v128
    %v363 = vunpack.c.h.b16 %v128
    %v364 = vunpack.c.l.b16 %v129
    %v365 = vunpack.c.h.b16 %v129
    %v366 = vunpack.c.l.b16 %v130
    %v367 = vunpack.c.h.b16 %v130
    %v368 = vunpack.c.l.b16 %v131
    %v369 = vunpack.c.h.b16 %v131
    %v370 = vunpack.c.l.b16 %v132
    %v371 = vunpack.c.h.b16 %v132
    %v372 = vunpack.c.l.b16 %v133
    %v373 = vunpack.c.h.b16 %v133
    %v374 = vunpack.c.l.b16 %v134
    %v375 = vunpack.c.h.b16 %v134
    %v376 = vunpack.c.l.b16 %v135
    %v377 = vunpack.c.h.b16 %v135
    %v378 = vunpack.c.l.b16 %v136
    %v379 = vunpack.c.h.b16 %v136
    %v380 = vunpack.c.l.b16 %v137
    %v381 = vunpack.c.h.b16 %v137
    %v382 = vunpack.c.l.b16 %v138
    %v383 = vunpack.c.h.b16 %v138
    %v384 = vunpack.c.l.b16 %v139
    %v385 = vunpack.c.h.b16 %v139
    %v386 = vunpack.c.l.b16 %v140
    %v387 = vunpack.c.h.b16 %v140
    %v388 = vunpack.c.l.b16 %v141
    %v389 = vunpack.c.h.b16 %v141
    %v390 = vunpack.c.l.b16 %v142
    %v391 = vunpack.c.h.b16 %v142
    %v392 = vunpack.c.l.b16 %v143
    %v393 = vunpack.c.h.b16 %v143
    %v394 = vunpack.c.l.b16 %v144
    %v395 = vunpack.c.h.b16 %v144
    %v396 = vunpack.c.l.b16 %v145
    %v397 = vunpack.c.h.b16 %v145
    %v398 = vunpack.c.l.b16 %v146
    %v399 = vunpack.c.h.b16 %v146
    %v400 = vunpack.c.l.b16 %v147
    %v401 = vunpack.c.h.b16 %v147
    %v402 = vunpack.c.l.b16 %v148
    %v403 = vunpack.c.h.b16 %v148
    %v404 = vunpack.c.l.b16 %v149
    %v405 = vunpack.c.h.b16 %v149
    %v406 = vunpack.c.l.b16 %v150
    %v407 = vunpack.c.h.b16 %v150
    %v408 = vunpack.c.l.b16 %v151
    %v409 = vunpack.c.h.b16 %v151
    %v410 = vunpack.c.l.b16 %v152
    %v411 = vunpack.c.h.b16 %v152
    %v412 = vunpack.c.l.b16 %v153
    %v413 = vunpack.c.h.b16 %v153
    %v414 = vunpack.c.l.b16 %v154
    %v415 = vunpack.c.h.b16 %v154
    %v416 = vunpack.c.l.b16 %v155
    %v417 = vunpack.c.h.b16 %v155
    %v418 = vunpack.c.l.b16 %v156
    %v419 = vunpack.c.h.b16 %v156
    %v420 = vunpack.c.l.b16 %v157
    %v421 = vunpack.c.h.b16 %v157
    %v422 = vunpack.c.l.b16 %v158
    %v423 = vunpack.c.h.b16 %v158
    %v424 = vunpack.c.l.b16 %v159
    %v425 = vunpack.c.h.b16 %v159
    %v426 = vunpack.c.l.b16 %v160
    %v427 = vunpack.c.h.b16 %v160
    %v428 = vunpack.c.l.b16 %v161
    %v429 = vunpack.c.h.b16 %v161
    %v430 = vunpack.c.l.b16 %v162
    %v431 = vunpack.c.h.b16 %v162
    %v432 = vunpack.c.l.b16 %v163
    %v433 = vunpack.c.h.b16 %v163
    %v434 = vunpack.c.l.b16 %v164
    %v435 = vunpack.c.h.b16 %v164
    %v436 = vunpack.c.l.b16 %v165
    %v437 = vunpack.c.h.b16 %v165
    %v438 = vunpack.c.l.b16 %v166
    %v439 = vunpack.c.h.b16 %v166
    %v440 = vunpack.c.l.b16 %v167
    %v441 = vunpack.c.h.b16 %v167
    %v442 = vunpack.c.l.b16 %v168
    %v443 = vunpack.c.h.b16 %v168
    %v444 = vunpack.c.l.b16 %v169
    %v445 = vunpack.c.h.b16 %v169
    %v446 = vpack.c.b16 %v272, %v270
    %v447 = vpack.c.b16 %v273, %v271
    %v448 = vpack.c.b16 %v276, %v274
    %v449 = vpack.c.b16 %v277, %v275
    %v450 = vpack.c.b16 %v280, %v278
    %v451 = vpack.c.b16 %v281, %v279
    %v452 = vpack.c.b16 %v284, %v282
    %v453 = vpack.c.b16 %v285, %v283
    %v454 = vpack.c.b16 %v288, %v286
    %v455 = vpack.c.b16 %v289, %v287
    %v456 = vpack.c.b16 %v292, %v290
    %v457 = vpack.c.b16 %v293, %v291
    %v458 = vpack.c.b16 %v296, %v294
    %v459 = vpack.c.b16 %v297, %v295
    %v460 = vpack.c.b16 %v300, %v298
    %v461 = vpack.c.b16 %v301, %v299
    %v462 = vpack.c.b16 %v304, %v302
    %v463 = vpack.c.b16 %v305, %v303
    %v464 = vpack.c.b16 %v308, %v306
    %v465 = vpack.c.b16 %v309, %v307
    %v466 = vpack.c.b16 %v312, %v310
    %v467 = vpack.c.b16 %v313, %v311
    %v468 = vpack.c.b16 %v316, %v314
    %v469 = vpack.c.b16 %v317, %v315
    %v470 = vpack.c.b16 %v320, %v318
    %v471 = vpack.c.b16 %v321, %v319
    %v472 = vpack.c.b16 %v324, %v322
    %v473 = vpack.c.b16 %v325, %v323
    %v474 = vpack.c.b16 %v328, %v326
    %v475 = vpack.c.b16 %v329, %v327
    %v476 = vpack.c.b16 %v332, %v330
    %v477 = vpack.c.b16 %v333, %v331
    %v478 = vpack.c.b16 %v336, %v334
    %v479 = vpack.c.b16 %v337, %v335
    %v480 = vpack.c.b16 %v340, %v338
    %v481 = vpack.c.b16 %v341, %v339
    %v482 = vpack.c.b16 %v344, %v342
    %v483 = vpack.c.b16 %v345, %v343
    %v484 = vpack.c.b16 %v348, %v346
    %v485 = vpack.c.b16 %v349, %v347
    %v486 = vpack.c.b16 %v352, %v350
    %v487 = vpack.c.b16 %v353, %v351
    %v488 = vpack.c.b16 %v356, %v354
    %v489 = vpack.c.b16 %v357, %v355
    %v490 = vpack.c.b16 %v360, %v358
    %v491 = vpack.c.b16 %v361, %v359
    %v492 = vpack.c.b16 %v364, %v362
    %v493 = vpack.c.b16 %v365, %v363
    %v494 = vpack.c.b16 %v368, %v366
    %v495 = vpack.c.b16 %v369, %v367
    %v496 = vpack.c.b16 %v372, %v370
    %v497 = vpack.c.b16 %v373, %v371
    %v498 = vpack.c.b16 %v376, %v374
    %v499 = vpack.c.b16 %v377, %v375
    %v500 = vpack.c.b16 %v380, %v378
    %v501 = vpack.c.b16 %v381, %v379
    %v502 = vpack.c.b16 %v384, %v382
    %v503 = vpack.c.b16 %v385, %v383
    %v504 = vpack.c.b16 %v388, %v386
    %v505 = vpack.c.b16 %v389, %v387
    %v506 = vpack.c.b16 %v392, %v390
    %v507 = vpack.c.b16 %v393, %v391
    %v508 = vpack.c.b16 %v396, %v394
    %v509 = vpack.c.b16 %v397, %v395
    %v510 = vpack.c.b16 %v400, %v398
    %v511 = vpack.c.b16 %v401, %v399
    %v512 = vpack.c.b16 %v404, %v402
    %v513 = vpack.c.b16 %v405, %v403
    %v514 = vpack.c.b16 %v408, %v406
    %v515 = vpack.c.b16 %v409, %v407
    %v516 = vpack.c.b16 %v412, %v410
    %v517 = vpack.c.b16 %v413, %v411
    %v518 = vpack.c.b16 %v416, %v414
    %v519 = vpack.c.b16 %v417, %v415
    %v520 = vpack.c.b16 %v420, %v418
    %v521 = vpack.c.b16 %v421, %v419
    %v522 = vpack.c.b16 %v424, %v422
    %v523 = vpack.c.b16 %v425, %v423
    %v524 = vpack.c.b16 %v428, %v426
    %v525 = vpack.c.b16 %v429, %v427
    %v526 = vpack.c.b16 %v432, %v430
    %v527 = vpack.c.b16 %v433, %v431
    %v528 = vpack.c.b16 %v436, %v434
    %v529 = vpack.c.b16 %v437, %v435
    %v530 = vpack.c.b16 %v440, %v438
    %v531 = vpack.c.b16 %v441, %v439
    %v532 = vpack.c.b16 %v444, %v442
    %v533 = vpack.c.b16 %v445, %v443
    %vm620 = vcmask 490496
    %v622 = vsel %vm620, %v81, 0
    %vm624 = vcmask 1045504
    %v626 = vsel %vm624, %v532, 0
    %v629 = vsel %vm624, %v533, 0
    %631 = vmatprep.subr.bf16.mxu0 %v447
    %632 = vmatpush1.bf16.msra.mxu0 %v446
    %633 = vmatprep.subr.bf16.mxu0 %v449
    %634 = vmatpush1.bf16.msra.mxu0 %v448
    %635 = vmatprep.subr.bf16.mxu0 %v451
    %636 = vmatpush1.bf16.msra.mxu0 %v450
    %637 = vmatprep.subr.bf16.mxu0 %v453
    %638 = vmatpush1.bf16.msra.mxu0 %v452
    %639 = vmatprep.subr.bf16.mxu0 %v455
    %640 = vmatpush1.bf16.msra.mxu0 %v454
    %641 = vmatprep.subr.bf16.mxu0 %v457
    %642 = vmatpush1.bf16.msra.mxu0 %v456
    %643 = vmatprep.subr.bf16.mxu0 %v459
    %644 = vmatpush1.bf16.msra.mxu0 %v458
    %645 = vmatprep.subr.bf16.mxu0 %v461
    %646 = vmatpush1.bf16.msra.mxu0 %v460
    %647 = vmatprep.subr.bf16.mxu0 %v463
    %648 = vmatpush1.bf16.msra.mxu0 %v462
    %649 = vmatprep.subr.bf16.mxu0 %v465
    %650 = vmatpush1.bf16.msra.mxu0 %v464
    %651 = vmatprep.subr.bf16.mxu0 %v467
    %652 = vmatpush1.bf16.msra.mxu0 %v466
    %653 = vmatprep.subr.bf16.mxu0 %v469
    %654 = vmatpush1.bf16.msra.mxu0 %v468
    %655 = vmatprep.subr.bf16.mxu0 %v471
    %656 = vmatpush1.bf16.msra.mxu0 %v470
    %657 = vmatprep.subr.bf16.mxu0 %v473
    %658 = vmatpush1.bf16.msra.mxu0 %v472
    %659 = vmatprep.subr.bf16.mxu0 %v475
    %660 = vmatpush1.bf16.msra.mxu0 %v474
    %661 = vmatprep.subr.bf16.mxu0 %v477
    %662 = vmatpush1.bf16.msra.mxu0 %v476
    %663 = vmatprep.mubr.bf16.mxu0 %v77
    %664 = vmatmul.mubr.bf16.gmra.mrb[0].mxu0 %v76
    %v665 = vpop.f32.mrb[0].mxu0
    %v666 = vadd.f32 %v175, %v665
    %v667 = vpop.f32.mrb[0].mxu0
    %v668 = vadd.f32 %v179, %v667
    %v669 = vpop.f32.mrb[0].mxu0
    %v670 = vpop.f32.mrb[0].mxu0
    %671 = vdwg.mxu0
    %672 = vmatprep.subr.bf16.mxu0 %v479
    %673 = vmatpush1.bf16.msra.mxu0 %v478
    %674 = vmatprep.subr.bf16.mxu0 %v481
    %675 = vmatpush1.bf16.msra.mxu0 %v480
    %676 = vmatprep.subr.bf16.mxu0 %v483
    %677 = vmatpush1.bf16.msra.mxu0 %v482
    %678 = vmatprep.subr.bf16.mxu0 %v485
    %679 = vmatpush1.bf16.msra.mxu0 %v484
    %680 = vmatprep.subr.bf16.mxu0 %v487
    %681 = vmatpush1.bf16.msra.mxu0 %v486
    %682 = vmatprep.subr.bf16.mxu0 %v489
    %683 = vmatpush1.bf16.msra.mxu0 %v488
    %684 = vmatprep.subr.bf16.mxu0 %v491
    %685 = vmatpush1.bf16.msra.mxu0 %v490
    %686 = vmatprep.subr.bf16.mxu0 %v493
    %687 = vmatpush1.bf16.msra.mxu0 %v492
    %688 = vmatprep.subr.bf16.mxu0 %v495
    %689 = vmatpush1.bf16.msra.mxu0 %v494
    %690 = vmatprep.subr.bf16.mxu0 %v497
    %691 = vmatpush1.bf16.msra.mxu0 %v496
    %692 = vmatprep.subr.bf16.mxu0 %v499
    %693 = vmatpush1.bf16.msra.mxu0 %v498
    %694 = vmatprep.subr.bf16.mxu0 %v501
    %695 = vmatpush1.bf16.msra.mxu0 %v500
    %696 = vmatprep.subr.bf16.mxu0 %v503
    %697 = vmatpush1.bf16.msra.mxu0 %v502
    %698 = vmatprep.subr.bf16.mxu0 %v505
    %699 = vmatpush1.bf16.msra.mxu0 %v504
    %700 = vmatprep.subr.bf16.mxu0 %v507
    %701 = vmatpush1.bf16.msra.mxu0 %v506
    %702 = vmatprep.subr.bf16.mxu0 %v509
    %703 = vmatpush1.bf16.msra.mxu0 %v508
    %704 = vmatprep.mubr.bf16.mxu0 %v79
    %705 = vmatmul.mubr.bf16.gmra.mrb[0].mxu0 %v78
    %v706 = vpop.f32.mrb[0].mxu0
    %v707 = vadd.f32 %v666, %v706
    %v708 = vpop.f32.mrb[0].mxu0
    %v709 = vadd.f32 %v668, %v708
    %v710 = vpop.f32.mrb[0].mxu0
    %v711 = vpop.f32.mrb[0].mxu0
    %712 = vdwg.mxu0
    %713 = vmatprep.subr.bf16.mxu0 %v511
    %714 = vmatpush1.bf16.msra.mxu0 %v510
    %715 = vmatprep.subr.bf16.mxu0 %v513
    %716 = vmatpush1.bf16.msra.mxu0 %v512
    %717 = vmatprep.subr.bf16.mxu0 %v515
    %718 = vmatpush1.bf16.msra.mxu0 %v514
    %719 = vmatprep.subr.bf16.mxu0 %v517
    %720 = vmatpush1.bf16.msra.mxu0 %v516
    %721 = vmatprep.subr.bf16.mxu0 %v519
    %722 = vmatpush1.bf16.msra.mxu0 %v518
    %723 = vmatprep.subr.bf16.mxu0 %v521
    %724 = vmatpush1.bf16.msra.mxu0 %v520
    %725 = vmatprep.subr.bf16.mxu0 %v523
    %726 = vmatpush1.bf16.msra.mxu0 %v522
    %727 = vmatprep.subr.bf16.mxu0 %v525
    %728 = vmatpush1.bf16.msra.mxu0 %v524
    %729 = vmatprep.subr.bf16.mxu0 %v527
    %730 = vmatpush1.bf16.msra.mxu0 %v526
    %731 = vmatprep.subr.bf16.mxu0 %v529
    %732 = vmatpush1.bf16.msra.mxu0 %v528
    %733 = vmatprep.subr.bf16.mxu0 %v531
    %734 = vmatpush1.bf16.msra.mxu0 %v530
    %735 = vmatprep.subr.bf16.mxu0 %v629
    %736 = vmatpush1.bf16.msra.mxu0 %v626
    %737 = vmatprep.subr.bf16.mxu0 0
    %738 = vmatpush1.bf16.msra.mxu0 0
    %739 = vmatprep.subr.bf16.mxu0 0
    %740 = vmatpush1.bf16.msra.mxu0 0
    %741 = vmatprep.subr.bf16.mxu0 0
    %742 = vmatpush1.bf16.msra.mxu0 0
    %743 = vmatprep.subr.bf16.mxu0 0
    %744 = vmatpush1.bf16.msra.mxu0 0
    %745 = vmatprep.mubr.bf16.mxu0 %v622
    %746 = vmatmul.mubr.bf16.gmra.mrb[0].mxu0 %v80
    %v747 = vpop.f32.mrb[0].mxu0
    %v748 = vadd.f32 %v707, %v747
    %v749 = vpop.f32.mrb[0].mxu0
    %v750 = vadd.f32 %v709, %v749
    %v751 = vpop.f32.mrb[0].mxu0
    %v752 = vpop.f32.mrb[0].mxu0
    %753 = vdwg.mxu0
    %v754 = vmax.f32 %v748, 0.0
    %v755 = vmax.f32 %v750, 0.0
    %v756 = vpack.c.bf16 %v754, %v754
    %v757 = vpack.c.bf16 %v755, %v755
    %v758 = vld [vmem:[#allocation7] sm:$0xff]
    %v759 = vld [vmem:[#allocation7 + $0x8] sm:$0xff]
    %v760 = vld [vmem:[#allocation7 + $0x10] sm:$0xff]
    %v761 = vld [vmem:[#allocation7 + $0x18] sm:$0xff]
    %v762 = vld [vmem:[#allocation7 + $0x20] sm:$0xff]
    %v763 = vld [vmem:[#allocation7 + $0x28] sm:$0xff]
    %v764 = vld [vmem:[#allocation7 + $0x30] sm:$0xff]
    %v765 = vld [vmem:[#allocation7 + $0x38] sm:$0xff]
    %v766 = vld [vmem:[#allocation7 + $0x40] sm:$0xff]
    %v767 = vld [vmem:[#allocation7 + $0x48] sm:$0xff]
    %v768 = vld [vmem:[#allocation7 + $0x50] sm:$0xff]
    %v769 = vld [vmem:[#allocation7 + $0x58] sm:$0xff]
    %v770 = vld [vmem:[#allocation7 + $0x60] sm:$0xff]
    %v771 = vld [vmem:[#allocation7 + $0x68] sm:$0xff]
    %v772 = vld [vmem:[#allocation7 + $0x70] sm:$0xff]
    %v773 = vld [vmem:[#allocation7 + $0x78] sm:$0xff]
    %v774 = vld [vmem:[#allocation7 + $0x80] sm:$0xff]
    %v775 = vld [vmem:[#allocation7 + $0x88] sm:$0xff]
    %v776 = vld [vmem:[#allocation7 + $0x90] sm:$0xff]
    %v777 = vld [vmem:[#allocation7 + $0x98] sm:$0xff]
    %v778 = vld [vmem:[#allocation7 + $0xa0] sm:$0xff]
    %v779 = vld [vmem:[#allocation7 + $0xa8] sm:$0xff]
    %v780 = vld [vmem:[#allocation7 + $0xb0] sm:$0xff]
    %v781 = vld [vmem:[#allocation7 + $0xb8] sm:$0xff]
    %v782 = vld [vmem:[#allocation7 + $0xc0] sm:$0xff]
    %v783 = vld [vmem:[#allocation7 + $0xc8] sm:$0xff]
    %v784 = vld [vmem:[#allocation7 + $0xd0] sm:$0xff]
    %v785 = vld [vmem:[#allocation7 + $0xd8] sm:$0xff]
    %v786 = vld [vmem:[#allocation7 + $0xe0] sm:$0xff]
    %v787 = vld [vmem:[#allocation7 + $0xe8] sm:$0xff]
    %v788 = vld [vmem:[#allocation7 + $0xf0] sm:$0xff]
    %v789 = vld [vmem:[#allocation7 + $0xf8] sm:$0xff]
    %s790 = scalar_lea.vmem [#allocation8], 1
    %v791 = vld [vmem:[%s790] ss:$8 sm:$0x3]
    %v793 = vlaneseq
    %v794 = vshrl.u32 %v793, 7
    %v795 = vsub.s32 0, %v794
    %v796 = vrot.slane %v791, %v795
    %v797 = vlaneseq
    %v798 = vshrl.u32 %v797, 7
    %v799 = vsub.s32 1, %v798
    %v800 = vrot.slane %v791, %v799
    %v835 = vunpack.c.l.b16 %v758
    %v836 = vunpack.c.h.b16 %v758
    %v837 = vunpack.c.l.b16 %v759
    %v838 = vunpack.c.h.b16 %v759
    %v839 = vunpack.c.l.b16 %v760
    %v840 = vunpack.c.h.b16 %v760
    %v841 = vunpack.c.l.b16 %v761
    %v842 = vunpack.c.h.b16 %v761
    %v843 = vunpack.c.l.b16 %v762
    %v844 = vunpack.c.h.b16 %v762
    %v845 = vunpack.c.l.b16 %v763
    %v846 = vunpack.c.h.b16 %v763
    %v847 = vunpack.c.l.b16 %v764
    %v848 = vunpack.c.h.b16 %v764
    %v849 = vunpack.c.l.b16 %v765
    %v850 = vunpack.c.h.b16 %v765
    %v851 = vunpack.c.l.b16 %v766
    %v852 = vunpack.c.h.b16 %v766
    %v853 = vunpack.c.l.b16 %v767
    %v854 = vunpack.c.h.b16 %v767
    %v855 = vunpack.c.l.b16 %v768
    %v856 = vunpack.c.h.b16 %v768
    %v857 = vunpack.c.l.b16 %v769
    %v858 = vunpack.c.h.b16 %v769
    %v859 = vunpack.c.l.b16 %v770
    %v860 = vunpack.c.h.b16 %v770
    %v861 = vunpack.c.l.b16 %v771
    %v862 = vunpack.c.h.b16 %v771
    %v863 = vunpack.c.l.b16 %v772
    %v864 = vunpack.c.h.b16 %v772
    %v865 = vunpack.c.l.b16 %v773
    %v866 = vunpack.c.h.b16 %v773
    %v867 = vunpack.c.l.b16 %v774
    %v868 = vunpack.c.h.b16 %v774
    %v869 = vunpack.c.l.b16 %v775
    %v870 = vunpack.c.h.b16 %v775
    %v871 = vunpack.c.l.b16 %v776
    %v872 = vunpack.c.h.b16 %v776
    %v873 = vunpack.c.l.b16 %v777
    %v874 = vunpack.c.h.b16 %v777
    %v875 = vunpack.c.l.b16 %v778
    %v876 = vunpack.c.h.b16 %v778
    %v877 = vunpack.c.l.b16 %v779
    %v878 = vunpack.c.h.b16 %v779
    %v879 = vunpack.c.l.b16 %v780
    %v880 = vunpack.c.h.b16 %v780
    %v881 = vunpack.c.l.b16 %v781
    %v882 = vunpack.c.h.b16 %v781
    %v883 = vunpack.c.l.b16 %v782
    %v884 = vunpack.c.h.b16 %v782
    %v885 = vunpack.c.l.b16 %v783
    %v886 = vunpack.c.h.b16 %v783
    %v887 = vunpack.c.l.b16 %v784
    %v888 = vunpack.c.h.b16 %v784
    %v889 = vunpack.c.l.b16 %v785
    %v890 = vunpack.c.h.b16 %v785
    %v891 = vunpack.c.l.b16 %v786
    %v892 = vunpack.c.h.b16 %v786
    %v893 = vunpack.c.l.b16 %v787
    %v894 = vunpack.c.h.b16 %v787
    %v895 = vunpack.c.l.b16 %v788
    %v896 = vunpack.c.h.b16 %v788
    %v897 = vunpack.c.l.b16 %v789
    %v898 = vunpack.c.h.b16 %v789
    %v899 = vpack.c.b16 %v837, %v835
    %v900 = vpack.c.b16 %v838, %v836
    %v901 = vpack.c.b16 %v841, %v839
    %v902 = vpack.c.b16 %v842, %v840
    %v903 = vpack.c.b16 %v845, %v843
    %v904 = vpack.c.b16 %v846, %v844
    %v905 = vpack.c.b16 %v849, %v847
    %v906 = vpack.c.b16 %v850, %v848
    %v907 = vpack.c.b16 %v853, %v851
    %v908 = vpack.c.b16 %v854, %v852
    %v909 = vpack.c.b16 %v857, %v855
    %v910 = vpack.c.b16 %v858, %v856
    %v911 = vpack.c.b16 %v861, %v859
    %v912 = vpack.c.b16 %v862, %v860
    %v913 = vpack.c.b16 %v865, %v863
    %v914 = vpack.c.b16 %v866, %v864
    %v915 = vpack.c.b16 %v869, %v867
    %v916 = vpack.c.b16 %v870, %v868
    %v917 = vpack.c.b16 %v873, %v871
    %v918 = vpack.c.b16 %v874, %v872
    %v919 = vpack.c.b16 %v877, %v875
    %v920 = vpack.c.b16 %v878, %v876
    %v921 = vpack.c.b16 %v881, %v879
    %v922 = vpack.c.b16 %v882, %v880
    %v923 = vpack.c.b16 %v885, %v883
    %v924 = vpack.c.b16 %v886, %v884
    %v925 = vpack.c.b16 %v889, %v887
    %v926 = vpack.c.b16 %v890, %v888
    %v927 = vpack.c.b16 %v893, %v891
    %v928 = vpack.c.b16 %v894, %v892
    %v929 = vpack.c.b16 %v897, %v895
    %v930 = vpack.c.b16 %v898, %v896
    %963 = vmatprep.subr.bf16.mxu0 %v900
    %964 = vmatpush1.bf16.msra.mxu0 %v899
    %965 = vmatprep.subr.bf16.mxu0 %v902
    %966 = vmatpush1.bf16.msra.mxu0 %v901
    %967 = vmatprep.subr.bf16.mxu0 %v904
    %968 = vmatpush1.bf16.msra.mxu0 %v903
    %969 = vmatprep.subr.bf16.mxu0 %v906
    %970 = vmatpush1.bf16.msra.mxu0 %v905
    %971 = vmatprep.subr.bf16.mxu0 %v908
    %972 = vmatpush1.bf16.msra.mxu0 %v907
    %973 = vmatprep.subr.bf16.mxu0 %v910
    %974 = vmatpush1.bf16.msra.mxu0 %v909
    %975 = vmatprep.subr.bf16.mxu0 %v912
    %976 = vmatpush1.bf16.msra.mxu0 %v911
    %977 = vmatprep.subr.bf16.mxu0 %v914
    %978 = vmatpush1.bf16.msra.mxu0 %v913
    %979 = vmatprep.subr.bf16.mxu0 %v916
    %980 = vmatpush1.bf16.msra.mxu0 %v915
    %981 = vmatprep.subr.bf16.mxu0 %v918
    %982 = vmatpush1.bf16.msra.mxu0 %v917
    %983 = vmatprep.subr.bf16.mxu0 %v920
    %984 = vmatpush1.bf16.msra.mxu0 %v919
    %985 = vmatprep.subr.bf16.mxu0 %v922
    %986 = vmatpush1.bf16.msra.mxu0 %v921
    %987 = vmatprep.subr.bf16.mxu0 %v924
    %988 = vmatpush1.bf16.msra.mxu0 %v923
    %989 = vmatprep.subr.bf16.mxu0 %v926
    %990 = vmatpush1.bf16.msra.mxu0 %v925
    %991 = vmatprep.subr.bf16.mxu0 %v928
    %992 = vmatpush1.bf16.msra.mxu0 %v927
    %993 = vmatprep.subr.bf16.mxu0 %v930
    %994 = vmatpush1.bf16.msra.mxu0 %v929
    %995 = vmatprep.mubr.bf16.mxu0 %v757
    %996 = vmatmul.mubr.bf16.gmra.mrb[0].mxu0 %v756
    %v997 = vpop.f32.mrb[0].mxu0
    %v998 = vadd.f32 %v796, %v997
    %v999 = vpop.f32.mrb[0].mxu0
    %v1000 = vadd.f32 %v800, %v999
    %v1001 = vpop.f32.mrb[0].mxu0
    %v1002 = vpop.f32.mrb[0].mxu0
    %1003 = vdwg.mxu0
    %v1004 = vmax.f32 %v998, 0.0
    %v1005 = vmax.f32 %v1000, 0.0
    %v1006 = vpack.c.bf16 %v1004, %v1004
    %v1007 = vpack.c.bf16 %v1005, %v1005
    %s1008 = scalar_lea.vmem [#allocation7], 256
    %v1009 = vld [vmem:[%s1008] sm:$0xff]
    %v1010 = vld [vmem:[%s1008 + $0x8] sm:$0xff]
    %v1011 = vld [vmem:[%s1008 + $0x10] sm:$0xff]
    %v1012 = vld [vmem:[%s1008 + $0x18] sm:$0xff]
    %v1013 = vld [vmem:[%s1008 + $0x20] sm:$0xff]
    %v1014 = vld [vmem:[%s1008 + $0x28] sm:$0xff]
    %v1015 = vld [vmem:[%s1008 + $0x30] sm:$0xff]
    %v1016 = vld [vmem:[%s1008 + $0x38] sm:$0xff]
    %v1017 = vld [vmem:[%s1008 + $0x40] sm:$0xff]
    %v1018 = vld [vmem:[%s1008 + $0x48] sm:$0xff]
    %v1019 = vld [vmem:[%s1008 + $0x50] sm:$0xff]
    %v1020 = vld [vmem:[%s1008 + $0x58] sm:$0xff]
    %v1021 = vld [vmem:[%s1008 + $0x60] sm:$0xff]
    %v1022 = vld [vmem:[%s1008 + $0x68] sm:$0xff]
    %v1023 = vld [vmem:[%s1008 + $0x70] sm:$0xff]
    %v1024 = vld [vmem:[%s1008 + $0x78] sm:$0xff]
    %v1025 = vld [vmem:[%s1008 + $0x80] sm:$0xff]
    %v1026 = vld [vmem:[%s1008 + $0x88] sm:$0xff]
    %v1027 = vld [vmem:[%s1008 + $0x90] sm:$0xff]
    %v1028 = vld [vmem:[%s1008 + $0x98] sm:$0xff]
    %v1029 = vld [vmem:[%s1008 + $0xa0] sm:$0xff]
    %v1030 = vld [vmem:[%s1008 + $0xa8] sm:$0xff]
    %v1031 = vld [vmem:[%s1008 + $0xb0] sm:$0xff]
    %v1032 = vld [vmem:[%s1008 + $0xb8] sm:$0xff]
    %v1033 = vld [vmem:[%s1008 + $0xc0] sm:$0xff]
    %v1034 = vld [vmem:[%s1008 + $0xc8] sm:$0xff]
    %v1035 = vld [vmem:[%s1008 + $0xd0] sm:$0xff]
    %v1036 = vld [vmem:[%s1008 + $0xd8] sm:$0xff]
    %v1037 = vld [vmem:[%s1008 + $0xe0] sm:$0xff]
    %v1038 = vld [vmem:[%s1008 + $0xe8] sm:$0xff]
    %v1039 = vld [vmem:[%s1008 + $0xf0] sm:$0xff]
    %v1040 = vld [vmem:[%s1008 + $0xf8] sm:$0xff]
    %s1041 = scalar_lea.vmem [#allocation8], 2
    %v1042 = vld [vmem:[%s1041] ss:$8 sm:$0x3]
    %v1044 = vlaneseq
    %v1045 = vshrl.u32 %v1044, 7
    %v1046 = vsub.s32 0, %v1045
    %v1047 = vrot.slane %v1042, %v1046
    %v1048 = vlaneseq
    %v1049 = vshrl.u32 %v1048, 7
    %v1050 = vsub.s32 1, %v1049
    %v1051 = vrot.slane %v1042, %v1050
    %v1086 = vunpack.c.l.b16 %v1009
    %v1087 = vunpack.c.h.b16 %v1009
    %v1088 = vunpack.c.l.b16 %v1010
    %v1089 = vunpack.c.h.b16 %v1010
    %v1090 = vunpack.c.l.b16 %v1011
    %v1091 = vunpack.c.h.b16 %v1011
    %v1092 = vunpack.c.l.b16 %v1012
    %v1093 = vunpack.c.h.b16 %v1012
    %v1094 = vunpack.c.l.b16 %v1013
    %v1095 = vunpack.c.h.b16 %v1013
    %v1096 = vunpack.c.l.b16 %v1014
    %v1097 = vunpack.c.h.b16 %v1014
    %v1098 = vunpack.c.l.b16 %v1015
    %v1099 = vunpack.c.h.b16 %v1015
    %v1100 = vunpack.c.l.b16 %v1016
    %v1101 = vunpack.c.h.b16 %v1016
    %v1102 = vunpack.c.l.b16 %v1017
    %v1103 = vunpack.c.h.b16 %v1017
    %v1104 = vunpack.c.l.b16 %v1018
    %v1105 = vunpack.c.h.b16 %v1018
    %v1106 = vunpack.c.l.b16 %v1019
    %v1107 = vunpack.c.h.b16 %v1019
    %v1108 = vunpack.c.l.b16 %v1020
    %v1109 = vunpack.c.h.b16 %v1020
    %v1110 = vunpack.c.l.b16 %v1021
    %v1111 = vunpack.c.h.b16 %v1021
    %v1112 = vunpack.c.l.b16 %v1022
    %v1113 = vunpack.c.h.b16 %v1022
    %v1114 = vunpack.c.l.b16 %v1023
    %v1115 = vunpack.c.h.b16 %v1023
    %v1116 = vunpack.c.l.b16 %v1024
    %v1117 = vunpack.c.h.b16 %v1024
    %v1118 = vunpack.c.l.b16 %v1025
    %v1119 = vunpack.c.h.b16 %v1025
    %v1120 = vunpack.c.l.b16 %v1026
    %v1121 = vunpack.c.h.b16 %v1026
    %v1122 = vunpack.c.l.b16 %v1027
    %v1123 = vunpack.c.h.b16 %v1027
    %v1124 = vunpack.c.l.b16 %v1028
    %v1125 = vunpack.c.h.b16 %v1028
    %v1126 = vunpack.c.l.b16 %v1029
    %v1127 = vunpack.c.h.b16 %v1029
    %v1128 = vunpack.c.l.b16 %v1030
    %v1129 = vunpack.c.h.b16 %v1030
    %v1130 = vunpack.c.l.b16 %v1031
    %v1131 = vunpack.c.h.b16 %v1031
    %v1132 = vunpack.c.l.b16 %v1032
    %v1133 = vunpack.c.h.b16 %v1032
    %v1134 = vunpack.c.l.b16 %v1033
    %v1135 = vunpack.c.h.b16 %v1033
    %v1136 = vunpack.c.l.b16 %v1034
    %v1137 = vunpack.c.h.b16 %v1034
    %v1138 = vunpack.c.l.b16 %v1035
    %v1139 = vunpack.c.h.b16 %v1035
    %v1140 = vunpack.c.l.b16 %v1036
    %v1141 = vunpack.c.h.b16 %v1036
    %v1142 = vunpack.c.l.b16 %v1037
    %v1143 = vunpack.c.h.b16 %v1037
    %v1144 = vunpack.c.l.b16 %v1038
    %v1145 = vunpack.c.h.b16 %v1038
    %v1146 = vunpack.c.l.b16 %v1039
    %v1147 = vunpack.c.h.b16 %v1039
    %v1148 = vunpack.c.l.b16 %v1040
    %v1149 = vunpack.c.h.b16 %v1040
    %v1150 = vpack.c.b16 %v1088, %v1086
    %v1151 = vpack.c.b16 %v1089, %v1087
    %v1152 = vpack.c.b16 %v1092, %v1090
    %v1153 = vpack.c.b16 %v1093, %v1091
    %v1154 = vpack.c.b16 %v1096, %v1094
    %v1155 = vpack.c.b16 %v1097, %v1095
    %v1156 = vpack.c.b16 %v1100, %v1098
    %v1157 = vpack.c.b16 %v1101, %v1099
    %v1158 = vpack.c.b16 %v1104, %v1102
    %v1159 = vpack.c.b16 %v1105, %v1103
    %v1160 = vpack.c.b16 %v1108, %v1106
    %v1161 = vpack.c.b16 %v1109, %v1107
    %v1162 = vpack.c.b16 %v1112, %v1110
    %v1163 = vpack.c.b16 %v1113, %v1111
    %v1164 = vpack.c.b16 %v1116, %v1114
    %v1165 = vpack.c.b16 %v1117, %v1115
    %v1166 = vpack.c.b16 %v1120, %v1118
    %v1167 = vpack.c.b16 %v1121, %v1119
    %v1168 = vpack.c.b16 %v1124, %v1122
    %v1169 = vpack.c.b16 %v1125, %v1123
    %v1170 = vpack.c.b16 %v1128, %v1126
    %v1171 = vpack.c.b16 %v1129, %v1127
    %v1172 = vpack.c.b16 %v1132, %v1130
    %v1173 = vpack.c.b16 %v1133, %v1131
    %v1174 = vpack.c.b16 %v1136, %v1134
    %v1175 = vpack.c.b16 %v1137, %v1135
    %v1176 = vpack.c.b16 %v1140, %v1138
    %v1177 = vpack.c.b16 %v1141, %v1139
    %v1178 = vpack.c.b16 %v1144, %v1142
    %v1179 = vpack.c.b16 %v1145, %v1143
    %v1180 = vpack.c.b16 %v1148, %v1146
    %v1181 = vpack.c.b16 %v1149, %v1147
    %1214 = vmatprep.subr.bf16.mxu0 %v1151
    %1215 = vmatpush1.bf16.msra.mxu0 %v1150
    %1216 = vmatprep.subr.bf16.mxu0 %v1153
    %1217 = vmatpush1.bf16.msra.mxu0 %v1152
    %1218 = vmatprep.subr.bf16.mxu0 %v1155
    %1219 = vmatpush1.bf16.msra.mxu0 %v1154
    %1220 = vmatprep.subr.bf16.mxu0 %v1157
    %1221 = vmatpush1.bf16.msra.mxu0 %v1156
    %1222 = vmatprep.subr.bf16.mxu0 %v1159
    %1223 = vmatpush1.bf16.msra.mxu0 %v1158
    %1224 = vmatprep.subr.bf16.mxu0 %v1161
    %1225 = vmatpush1.bf16.msra.mxu0 %v1160
    %1226 = vmatprep.subr.bf16.mxu0 %v1163
    %1227 = vmatpush1.bf16.msra.mxu0 %v1162
    %1228 = vmatprep.subr.bf16.mxu0 %v1165
    %1229 = vmatpush1.bf16.msra.mxu0 %v1164
    %1230 = vmatprep.subr.bf16.mxu0 %v1167
    %1231 = vmatpush1.bf16.msra.mxu0 %v1166
    %1232 = vmatprep.subr.bf16.mxu0 %v1169
    %1233 = vmatpush1.bf16.msra.mxu0 %v1168
    %1234 = vmatprep.subr.bf16.mxu0 %v1171
    %1235 = vmatpush1.bf16.msra.mxu0 %v1170
    %1236 = vmatprep.subr.bf16.mxu0 %v1173
    %1237 = vmatpush1.bf16.msra.mxu0 %v1172
    %1238 = vmatprep.subr.bf16.mxu0 %v1175
    %1239 = vmatpush1.bf16.msra.mxu0 %v1174
    %1240 = vmatprep.subr.bf16.mxu0 %v1177
    %1241 = vmatpush1.bf16.msra.mxu0 %v1176
    %1242 = vmatprep.subr.bf16.mxu0 %v1179
    %1243 = vmatpush1.bf16.msra.mxu0 %v1178
    %1244 = vmatprep.subr.bf16.mxu0 %v1181
    %1245 = vmatpush1.bf16.msra.mxu0 %v1180
    %1246 = vmatprep.mubr.bf16.mxu0 %v1007
    %1247 = vmatmul.mubr.bf16.gmra.mrb[0].mxu0 %v1006
    %v1248 = vpop.f32.mrb[0].mxu0
    %v1249 = vadd.f32 %v1047, %v1248
    %v1250 = vpop.f32.mrb[0].mxu0
    %v1251 = vadd.f32 %v1051, %v1250
    %v1252 = vpop.f32.mrb[0].mxu0
    %v1253 = vpop.f32.mrb[0].mxu0
    %1254 = vdwg.mxu0
    %v1255 = vmax.f32 %v1249, 0.0
    %v1256 = vmax.f32 %v1251, 0.0
    %v1257 = vpack.c.bf16 %v1255, %v1255
    %v1258 = vpack.c.bf16 %v1256, %v1256
    %s1259 = scalar_lea.vmem [#allocation7], 512
    %v1260 = vld [vmem:[%s1259] sm:$0xff]
    %v1261 = vld [vmem:[%s1259 + $0x8] sm:$0xff]
    %v1262 = vld [vmem:[%s1259 + $0x10] sm:$0xff]
    %v1263 = vld [vmem:[%s1259 + $0x18] sm:$0xff]
    %v1264 = vld [vmem:[%s1259 + $0x20] sm:$0xff]
    %v1265 = vld [vmem:[%s1259 + $0x28] sm:$0xff]
    %v1266 = vld [vmem:[%s1259 + $0x30] sm:$0xff]
    %v1267 = vld [vmem:[%s1259 + $0x38] sm:$0xff]
    %v1268 = vld [vmem:[%s1259 + $0x40] sm:$0xff]
    %v1269 = vld [vmem:[%s1259 + $0x48] sm:$0xff]
    %v1270 = vld [vmem:[%s1259 + $0x50] sm:$0xff]
    %v1271 = vld [vmem:[%s1259 + $0x58] sm:$0xff]
    %v1272 = vld [vmem:[%s1259 + $0x60] sm:$0xff]
    %v1273 = vld [vmem:[%s1259 + $0x68] sm:$0xff]
    %v1274 = vld [vmem:[%s1259 + $0x70] sm:$0xff]
    %v1275 = vld [vmem:[%s1259 + $0x78] sm:$0xff]
    %v1276 = vld [vmem:[%s1259 + $0x80] sm:$0xff]
    %v1277 = vld [vmem:[%s1259 + $0x88] sm:$0xff]
    %v1278 = vld [vmem:[%s1259 + $0x90] sm:$0xff]
    %v1279 = vld [vmem:[%s1259 + $0x98] sm:$0xff]
    %v1280 = vld [vmem:[%s1259 + $0xa0] sm:$0xff]
    %v1281 = vld [vmem:[%s1259 + $0xa8] sm:$0xff]
    %v1282 = vld [vmem:[%s1259 + $0xb0] sm:$0xff]
    %v1283 = vld [vmem:[%s1259 + $0xb8] sm:$0xff]
    %v1284 = vld [vmem:[%s1259 + $0xc0] sm:$0xff]
    %v1285 = vld [vmem:[%s1259 + $0xc8] sm:$0xff]
    %v1286 = vld [vmem:[%s1259 + $0xd0] sm:$0xff]
    %v1287 = vld [vmem:[%s1259 + $0xd8] sm:$0xff]
    %v1288 = vld [vmem:[%s1259 + $0xe0] sm:$0xff]
    %v1289 = vld [vmem:[%s1259 + $0xe8] sm:$0xff]
    %v1290 = vld [vmem:[%s1259 + $0xf0] sm:$0xff]
    %v1291 = vld [vmem:[%s1259 + $0xf8] sm:$0xff]
    %s1292 = scalar_lea.vmem [#allocation8], 3
    %v1293 = vld [vmem:[%s1292] ss:$8 sm:$0x3]
    %v1295 = vlaneseq
    %v1296 = vshrl.u32 %v1295, 7
    %v1297 = vsub.s32 0, %v1296
    %v1298 = vrot.slane %v1293, %v1297
    %v1299 = vlaneseq
    %v1300 = vshrl.u32 %v1299, 7
    %v1301 = vsub.s32 1, %v1300
    %v1302 = vrot.slane %v1293, %v1301
    %v1337 = vunpack.c.l.b16 %v1260
    %v1338 = vunpack.c.h.b16 %v1260
    %v1339 = vunpack.c.l.b16 %v1261
    %v1340 = vunpack.c.h.b16 %v1261
    %v1341 = vunpack.c.l.b16 %v1262
    %v1342 = vunpack.c.h.b16 %v1262
    %v1343 = vunpack.c.l.b16 %v1263
    %v1344 = vunpack.c.h.b16 %v1263
    %v1345 = vunpack.c.l.b16 %v1264
    %v1346 = vunpack.c.h.b16 %v1264
    %v1347 = vunpack.c.l.b16 %v1265
    %v1348 = vunpack.c.h.b16 %v1265
    %v1349 = vunpack.c.l.b16 %v1266
    %v1350 = vunpack.c.h.b16 %v1266
    %v1351 = vunpack.c.l.b16 %v1267
    %v1352 = vunpack.c.h.b16 %v1267
    %v1353 = vunpack.c.l.b16 %v1268
    %v1354 = vunpack.c.h.b16 %v1268
    %v1355 = vunpack.c.l.b16 %v1269
    %v1356 = vunpack.c.h.b16 %v1269
    %v1357 = vunpack.c.l.b16 %v1270
    %v1358 = vunpack.c.h.b16 %v1270
    %v1359 = vunpack.c.l.b16 %v1271
    %v1360 = vunpack.c.h.b16 %v1271
    %v1361 = vunpack.c.l.b16 %v1272
    %v1362 = vunpack.c.h.b16 %v1272
    %v1363 = vunpack.c.l.b16 %v1273
    %v1364 = vunpack.c.h.b16 %v1273
    %v1365 = vunpack.c.l.b16 %v1274
    %v1366 = vunpack.c.h.b16 %v1274
    %v1367 = vunpack.c.l.b16 %v1275
    %v1368 = vunpack.c.h.b16 %v1275
    %v1369 = vunpack.c.l.b16 %v1276
    %v1370 = vunpack.c.h.b16 %v1276
    %v1371 = vunpack.c.l.b16 %v1277
    %v1372 = vunpack.c.h.b16 %v1277
    %v1373 = vunpack.c.l.b16 %v1278
    %v1374 = vunpack.c.h.b16 %v1278
    %v1375 = vunpack.c.l.b16 %v1279
    %v1376 = vunpack.c.h.b16 %v1279
    %v1377 = vunpack.c.l.b16 %v1280
    %v1378 = vunpack.c.h.b16 %v1280
    %v1379 = vunpack.c.l.b16 %v1281
    %v1380 = vunpack.c.h.b16 %v1281
    %v1381 = vunpack.c.l.b16 %v1282
    %v1382 = vunpack.c.h.b16 %v1282
    %v1383 = vunpack.c.l.b16 %v1283
    %v1384 = vunpack.c.h.b16 %v1283
    %v1385 = vunpack.c.l.b16 %v1284
    %v1386 = vunpack.c.h.b16 %v1284
    %v1387 = vunpack.c.l.b16 %v1285
    %v1388 = vunpack.c.h.b16 %v1285
    %v1389 = vunpack.c.l.b16 %v1286
    %v1390 = vunpack.c.h.b16 %v1286
    %v1391 = vunpack.c.l.b16 %v1287
    %v1392 = vunpack.c.h.b16 %v1287
    %v1393 = vunpack.c.l.b16 %v1288
    %v1394 = vunpack.c.h.b16 %v1288
    %v1395 = vunpack.c.l.b16 %v1289
    %v1396 = vunpack.c.h.b16 %v1289
    %v1397 = vunpack.c.l.b16 %v1290
    %v1398 = vunpack.c.h.b16 %v1290
    %v1399 = vunpack.c.l.b16 %v1291
    %v1400 = vunpack.c.h.b16 %v1291
    %v1401 = vpack.c.b16 %v1339, %v1337
    %v1402 = vpack.c.b16 %v1340, %v1338
    %v1403 = vpack.c.b16 %v1343, %v1341
    %v1404 = vpack.c.b16 %v1344, %v1342
    %v1405 = vpack.c.b16 %v1347, %v1345
    %v1406 = vpack.c.b16 %v1348, %v1346
    %v1407 = vpack.c.b16 %v1351, %v1349
    %v1408 = vpack.c.b16 %v1352, %v1350
    %v1409 = vpack.c.b16 %v1355, %v1353
    %v1410 = vpack.c.b16 %v1356, %v1354
    %v1411 = vpack.c.b16 %v1359, %v1357
    %v1412 = vpack.c.b16 %v1360, %v1358
    %v1413 = vpack.c.b16 %v1363, %v1361
    %v1414 = vpack.c.b16 %v1364, %v1362
    %v1415 = vpack.c.b16 %v1367, %v1365
    %v1416 = vpack.c.b16 %v1368, %v1366
    %v1417 = vpack.c.b16 %v1371, %v1369
    %v1418 = vpack.c.b16 %v1372, %v1370
    %v1419 = vpack.c.b16 %v1375, %v1373
    %v1420 = vpack.c.b16 %v1376, %v1374
    %v1421 = vpack.c.b16 %v1379, %v1377
    %v1422 = vpack.c.b16 %v1380, %v1378
    %v1423 = vpack.c.b16 %v1383, %v1381
    %v1424 = vpack.c.b16 %v1384, %v1382
    %v1425 = vpack.c.b16 %v1387, %v1385
    %v1426 = vpack.c.b16 %v1388, %v1386
    %v1427 = vpack.c.b16 %v1391, %v1389
    %v1428 = vpack.c.b16 %v1392, %v1390
    %v1429 = vpack.c.b16 %v1395, %v1393
    %v1430 = vpack.c.b16 %v1396, %v1394
    %v1431 = vpack.c.b16 %v1399, %v1397
    %v1432 = vpack.c.b16 %v1400, %v1398
    %1465 = vmatprep.subr.bf16.mxu0 %v1402
    %1466 = vmatpush1.bf16.msra.mxu0 %v1401
    %1467 = vmatprep.subr.bf16.mxu0 %v1404
    %1468 = vmatpush1.bf16.msra.mxu0 %v1403
    %1469 = vmatprep.subr.bf16.mxu0 %v1406
    %1470 = vmatpush1.bf16.msra.mxu0 %v1405
    %1471 = vmatprep.subr.bf16.mxu0 %v1408
    %1472 = vmatpush1.bf16.msra.mxu0 %v1407
    %1473 = vmatprep.subr.bf16.mxu0 %v1410
    %1474 = vmatpush1.bf16.msra.mxu0 %v1409
    %1475 = vmatprep.subr.bf16.mxu0 %v1412
    %1476 = vmatpush1.bf16.msra.mxu0 %v1411
    %1477 = vmatprep.subr.bf16.mxu0 %v1414
    %1478 = vmatpush1.bf16.msra.mxu0 %v1413
    %1479 = vmatprep.subr.bf16.mxu0 %v1416
    %1480 = vmatpush1.bf16.msra.mxu0 %v1415
    %1481 = vmatprep.subr.bf16.mxu0 %v1418
    %1482 = vmatpush1.bf16.msra.mxu0 %v1417
    %1483 = vmatprep.subr.bf16.mxu0 %v1420
    %1484 = vmatpush1.bf16.msra.mxu0 %v1419
    %1485 = vmatprep.subr.bf16.mxu0 %v1422
    %1486 = vmatpush1.bf16.msra.mxu0 %v1421
    %1487 = vmatprep.subr.bf16.mxu0 %v1424
    %1488 = vmatpush1.bf16.msra.mxu0 %v1423
    %1489 = vmatprep.subr.bf16.mxu0 %v1426
    %1490 = vmatpush1.bf16.msra.mxu0 %v1425
    %1491 = vmatprep.subr.bf16.mxu0 %v1428
    %1492 = vmatpush1.bf16.msra.mxu0 %v1427
    %1493 = vmatprep.subr.bf16.mxu0 %v1430
    %1494 = vmatpush1.bf16.msra.mxu0 %v1429
    %1495 = vmatprep.subr.bf16.mxu0 %v1432
    %1496 = vmatpush1.bf16.msra.mxu0 %v1431
    %1497 = vmatprep.mubr.bf16.mxu0 %v1258
    %1498 = vmatmul.mubr.bf16.gmra.mrb[0].mxu0 %v1257
    %v1499 = vpop.f32.mrb[0].mxu0
    %v1500 = vadd.f32 %v1298, %v1499
    %v1501 = vpop.f32.mrb[0].mxu0
    %v1502 = vadd.f32 %v1302, %v1501
    %v1503 = vpop.f32.mrb[0].mxu0
    %v1504 = vpop.f32.mrb[0].mxu0
    %1505 = vdwg.mxu0
    %v1506 = vmax.f32 %v1500, 0.0
    %v1507 = vmax.f32 %v1502, 0.0
    %v1508 = vpack.c.bf16 %v1506, %v1506
    %v1509 = vpack.c.bf16 %v1507, %v1507
    %s1510 = scalar_lea.vmem [#allocation7], 768
    %v1511 = vld [vmem:[%s1510] sm:$0xff]
    %v1512 = vld [vmem:[%s1510 + $0x8] sm:$0xff]
    %v1513 = vld [vmem:[%s1510 + $0x10] sm:$0xff]
    %v1514 = vld [vmem:[%s1510 + $0x18] sm:$0xff]
    %v1515 = vld [vmem:[%s1510 + $0x20] sm:$0xff]
    %v1516 = vld [vmem:[%s1510 + $0x28] sm:$0xff]
    %v1517 = vld [vmem:[%s1510 + $0x30] sm:$0xff]
    %v1518 = vld [vmem:[%s1510 + $0x38] sm:$0xff]
    %v1519 = vld [vmem:[%s1510 + $0x40] sm:$0xff]
    %v1520 = vld [vmem:[%s1510 + $0x48] sm:$0xff]
    %v1521 = vld [vmem:[%s1510 + $0x50] sm:$0xff]
    %v1522 = vld [vmem:[%s1510 + $0x58] sm:$0xff]
    %v1523 = vld [vmem:[%s1510 + $0x60] sm:$0xff]
    %v1524 = vld [vmem:[%s1510 + $0x68] sm:$0xff]
    %v1525 = vld [vmem:[%s1510 + $0x70] sm:$0xff]
    %v1526 = vld [vmem:[%s1510 + $0x78] sm:$0xff]
    %v1527 = vld [vmem:[%s1510 + $0x80] sm:$0xff]
    %v1528 = vld [vmem:[%s1510 + $0x88] sm:$0xff]
    %v1529 = vld [vmem:[%s1510 + $0x90] sm:$0xff]
    %v1530 = vld [vmem:[%s1510 + $0x98] sm:$0xff]
    %v1531 = vld [vmem:[%s1510 + $0xa0] sm:$0xff]
    %v1532 = vld [vmem:[%s1510 + $0xa8] sm:$0xff]
    %v1533 = vld [vmem:[%s1510 + $0xb0] sm:$0xff]
    %v1534 = vld [vmem:[%s1510 + $0xb8] sm:$0xff]
    %v1535 = vld [vmem:[%s1510 + $0xc0] sm:$0xff]
    %v1536 = vld [vmem:[%s1510 + $0xc8] sm:$0xff]
    %v1537 = vld [vmem:[%s1510 + $0xd0] sm:$0xff]
    %v1538 = vld [vmem:[%s1510 + $0xd8] sm:$0xff]
    %v1539 = vld [vmem:[%s1510 + $0xe0] sm:$0xff]
    %v1540 = vld [vmem:[%s1510 + $0xe8] sm:$0xff]
    %v1541 = vld [vmem:[%s1510 + $0xf0] sm:$0xff]
    %v1542 = vld [vmem:[%s1510 + $0xf8] sm:$0xff]
    %s1543 = scalar_lea.vmem [#allocation8], 4
    %v1544 = vld [vmem:[%s1543] ss:$8 sm:$0x3]
    %v1546 = vlaneseq
    %v1547 = vshrl.u32 %v1546, 7
    %v1548 = vsub.s32 0, %v1547
    %v1549 = vrot.slane %v1544, %v1548
    %v1550 = vlaneseq
    %v1551 = vshrl.u32 %v1550, 7
    %v1552 = vsub.s32 1, %v1551
    %v1553 = vrot.slane %v1544, %v1552
    %v1588 = vunpack.c.l.b16 %v1511
    %v1589 = vunpack.c.h.b16 %v1511
    %v1590 = vunpack.c.l.b16 %v1512
    %v1591 = vunpack.c.h.b16 %v1512
    %v1592 = vunpack.c.l.b16 %v1513
    %v1593 = vunpack.c.h.b16 %v1513
    %v1594 = vunpack.c.l.b16 %v1514
    %v1595 = vunpack.c.h.b16 %v1514
    %v1596 = vunpack.c.l.b16 %v1515
    %v1597 = vunpack.c.h.b16 %v1515
    %v1598 = vunpack.c.l.b16 %v1516
    %v1599 = vunpack.c.h.b16 %v1516
    %v1600 = vunpack.c.l.b16 %v1517
    %v1601 = vunpack.c.h.b16 %v1517
    %v1602 = vunpack.c.l.b16 %v1518
    %v1603 = vunpack.c.h.b16 %v1518
    %v1604 = vunpack.c.l.b16 %v1519
    %v1605 = vunpack.c.h.b16 %v1519
    %v1606 = vunpack.c.l.b16 %v1520
    %v1607 = vunpack.c.h.b16 %v1520
    %v1608 = vunpack.c.l.b16 %v1521
    %v1609 = vunpack.c.h.b16 %v1521
    %v1610 = vunpack.c.l.b16 %v1522
    %v1611 = vunpack.c.h.b16 %v1522
    %v1612 = vunpack.c.l.b16 %v1523
    %v1613 = vunpack.c.h.b16 %v1523
    %v1614 = vunpack.c.l.b16 %v1524
    %v1615 = vunpack.c.h.b16 %v1524
    %v1616 = vunpack.c.l.b16 %v1525
    %v1617 = vunpack.c.h.b16 %v1525
    %v1618 = vunpack.c.l.b16 %v1526
    %v1619 = vunpack.c.h.b16 %v1526
    %v1620 = vunpack.c.l.b16 %v1527
    %v1621 = vunpack.c.h.b16 %v1527
    %v1622 = vunpack.c.l.b16 %v1528
    %v1623 = vunpack.c.h.b16 %v1528
    %v1624 = vunpack.c.l.b16 %v1529
    %v1625 = vunpack.c.h.b16 %v1529
    %v1626 = vunpack.c.l.b16 %v1530
    %v1627 = vunpack.c.h.b16 %v1530
    %v1628 = vunpack.c.l.b16 %v1531
    %v1629 = vunpack.c.h.b16 %v1531
    %v1630 = vunpack.c.l.b16 %v1532
    %v1631 = vunpack.c.h.b16 %v1532
    %v1632 = vunpack.c.l.b16 %v1533
    %v1633 = vunpack.c.h.b16 %v1533
    %v1634 = vunpack.c.l.b16 %v1534
    %v1635 = vunpack.c.h.b16 %v1534
    %v1636 = vunpack.c.l.b16 %v1535
    %v1637 = vunpack.c.h.b16 %v1535
    %v1638 = vunpack.c.l.b16 %v1536
    %v1639 = vunpack.c.h.b16 %v1536
    %v1640 = vunpack.c.l.b16 %v1537
    %v1641 = vunpack.c.h.b16 %v1537
    %v1642 = vunpack.c.l.b16 %v1538
    %v1643 = vunpack.c.h.b16 %v1538
    %v1644 = vunpack.c.l.b16 %v1539
    %v1645 = vunpack.c.h.b16 %v1539
    %v1646 = vunpack.c.l.b16 %v1540
    %v1647 = vunpack.c.h.b16 %v1540
    %v1648 = vunpack.c.l.b16 %v1541
    %v1649 = vunpack.c.h.b16 %v1541
    %v1650 = vunpack.c.l.b16 %v1542
    %v1651 = vunpack.c.h.b16 %v1542
    %v1652 = vpack.c.b16 %v1590, %v1588
    %v1653 = vpack.c.b16 %v1591, %v1589
    %v1654 = vpack.c.b16 %v1594, %v1592
    %v1655 = vpack.c.b16 %v1595, %v1593
    %v1656 = vpack.c.b16 %v1598, %v1596
    %v1657 = vpack.c.b16 %v1599, %v1597
    %v1658 = vpack.c.b16 %v1602, %v1600
    %v1659 = vpack.c.b16 %v1603, %v1601
    %v1660 = vpack.c.b16 %v1606, %v1604
    %v1661 = vpack.c.b16 %v1607, %v1605
    %v1662 = vpack.c.b16 %v1610, %v1608
    %v1663 = vpack.c.b16 %v1611, %v1609
    %v1664 = vpack.c.b16 %v1614, %v1612
    %v1665 = vpack.c.b16 %v1615, %v1613
    %v1666 = vpack.c.b16 %v1618, %v1616
    %v1667 = vpack.c.b16 %v1619, %v1617
    %v1668 = vpack.c.b16 %v1622, %v1620
    %v1669 = vpack.c.b16 %v1623, %v1621
    %v1670 = vpack.c.b16 %v1626, %v1624
    %v1671 = vpack.c.b16 %v1627, %v1625
    %v1672 = vpack.c.b16 %v1630, %v1628
    %v1673 = vpack.c.b16 %v1631, %v1629
    %v1674 = vpack.c.b16 %v1634, %v1632
    %v1675 = vpack.c.b16 %v1635, %v1633
    %v1676 = vpack.c.b16 %v1638, %v1636
    %v1677 = vpack.c.b16 %v1639, %v1637
    %v1678 = vpack.c.b16 %v1642, %v1640
    %v1679 = vpack.c.b16 %v1643, %v1641
    %v1680 = vpack.c.b16 %v1646, %v1644
    %v1681 = vpack.c.b16 %v1647, %v1645
    %v1682 = vpack.c.b16 %v1650, %v1648
    %v1683 = vpack.c.b16 %v1651, %v1649
    %1716 = vmatprep.subr.bf16.mxu0 %v1653
    %1717 = vmatpush1.bf16.msra.mxu0 %v1652
    %1718 = vmatprep.subr.bf16.mxu0 %v1655
    %1719 = vmatpush1.bf16.msra.mxu0 %v1654
    %1720 = vmatprep.subr.bf16.mxu0 %v1657
    %1721 = vmatpush1.bf16.msra.mxu0 %v1656
    %1722 = vmatprep.subr.bf16.mxu0 %v1659
    %1723 = vmatpush1.bf16.msra.mxu0 %v1658
    %1724 = vmatprep.subr.bf16.mxu0 %v1661
    %1725 = vmatpush1.bf16.msra.mxu0 %v1660
    %1726 = vmatprep.subr.bf16.mxu0 %v1663
    %1727 = vmatpush1.bf16.msra.mxu0 %v1662
    %1728 = vmatprep.subr.bf16.mxu0 %v1665
    %1729 = vmatpush1.bf16.msra.mxu0 %v1664
    %1730 = vmatprep.subr.bf16.mxu0 %v1667
    %1731 = vmatpush1.bf16.msra.mxu0 %v1666
    %1732 = vmatprep.subr.bf16.mxu0 %v1669
    %1733 = vmatpush1.bf16.msra.mxu0 %v1668
    %1734 = vmatprep.subr.bf16.mxu0 %v1671
    %1735 = vmatpush1.bf16.msra.mxu0 %v1670
    %1736 = vmatprep.subr.bf16.mxu0 %v1673
    %1737 = vmatpush1.bf16.msra.mxu0 %v1672
    %1738 = vmatprep.subr.bf16.mxu0 %v1675
    %1739 = vmatpush1.bf16.msra.mxu0 %v1674
    %1740 = vmatprep.subr.bf16.mxu0 %v1677
    %1741 = vmatpush1.bf16.msra.mxu0 %v1676
    %1742 = vmatprep.subr.bf16.mxu0 %v1679
    %1743 = vmatpush1.bf16.msra.mxu0 %v1678
    %1744 = vmatprep.subr.bf16.mxu0 %v1681
    %1745 = vmatpush1.bf16.msra.mxu0 %v1680
    %1746 = vmatprep.subr.bf16.mxu0 %v1683
    %1747 = vmatpush1.bf16.msra.mxu0 %v1682
    %1748 = vmatprep.mubr.bf16.mxu0 %v1509
    %1749 = vmatmul.mubr.bf16.gmra.mrb[0].mxu0 %v1508
    %v1750 = vpop.f32.mrb[0].mxu0
    %v1751 = vadd.f32 %v1549, %v1750
    %v1752 = vpop.f32.mrb[0].mxu0
    %v1753 = vadd.f32 %v1553, %v1752
    %v1754 = vpop.f32.mrb[0].mxu0
    %v1755 = vpop.f32.mrb[0].mxu0
    %1756 = vdwg.mxu0
    %v1757 = vmax.f32 %v1751, 0.0
    %v1758 = vmax.f32 %v1753, 0.0
    %v1759 = vpack.c.bf16 %v1757, %v1757
    %v1760 = vpack.c.bf16 %v1758, %v1758
    %s1761 = scalar_lea.vmem [#allocation7], 1024
    %v1762 = vld [vmem:[%s1761] sm:$0xff]
    %v1763 = vld [vmem:[%s1761 + $0x8] sm:$0xff]
    %v1764 = vld [vmem:[%s1761 + $0x10] sm:$0xff]
    %v1765 = vld [vmem:[%s1761 + $0x18] sm:$0xff]
    %v1766 = vld [vmem:[%s1761 + $0x20] sm:$0xff]
    %v1767 = vld [vmem:[%s1761 + $0x28] sm:$0xff]
    %v1768 = vld [vmem:[%s1761 + $0x30] sm:$0xff]
    %v1769 = vld [vmem:[%s1761 + $0x38] sm:$0xff]
    %v1770 = vld [vmem:[%s1761 + $0x40] sm:$0xff]
    %v1771 = vld [vmem:[%s1761 + $0x48] sm:$0xff]
    %v1772 = vld [vmem:[%s1761 + $0x50] sm:$0xff]
    %v1773 = vld [vmem:[%s1761 + $0x58] sm:$0xff]
    %v1774 = vld [vmem:[%s1761 + $0x60] sm:$0xff]
    %v1775 = vld [vmem:[%s1761 + $0x68] sm:$0xff]
    %v1776 = vld [vmem:[%s1761 + $0x70] sm:$0xff]
    %v1777 = vld [vmem:[%s1761 + $0x78] sm:$0xff]
    %v1778 = vld [vmem:[%s1761 + $0x80] sm:$0xff]
    %v1779 = vld [vmem:[%s1761 + $0x88] sm:$0xff]
    %v1780 = vld [vmem:[%s1761 + $0x90] sm:$0xff]
    %v1781 = vld [vmem:[%s1761 + $0x98] sm:$0xff]
    %v1782 = vld [vmem:[%s1761 + $0xa0] sm:$0xff]
    %v1783 = vld [vmem:[%s1761 + $0xa8] sm:$0xff]
    %v1784 = vld [vmem:[%s1761 + $0xb0] sm:$0xff]
    %v1785 = vld [vmem:[%s1761 + $0xb8] sm:$0xff]
    %v1786 = vld [vmem:[%s1761 + $0xc0] sm:$0xff]
    %v1787 = vld [vmem:[%s1761 + $0xc8] sm:$0xff]
    %v1788 = vld [vmem:[%s1761 + $0xd0] sm:$0xff]
    %v1789 = vld [vmem:[%s1761 + $0xd8] sm:$0xff]
    %v1790 = vld [vmem:[%s1761 + $0xe0] sm:$0xff]
    %v1791 = vld [vmem:[%s1761 + $0xe8] sm:$0xff]
    %v1792 = vld [vmem:[%s1761 + $0xf0] sm:$0xff]
    %v1793 = vld [vmem:[%s1761 + $0xf8] sm:$0xff]
    %s1794 = scalar_lea.vmem [#allocation8], 5
    %v1795 = vld [vmem:[%s1794] ss:$8 sm:$0x3]
    %v1797 = vlaneseq
    %v1798 = vshrl.u32 %v1797, 7
    %v1799 = vsub.s32 0, %v1798
    %v1800 = vrot.slane %v1795, %v1799
    %v1801 = vlaneseq
    %v1802 = vshrl.u32 %v1801, 7
    %v1803 = vsub.s32 1, %v1802
    %v1804 = vrot.slane %v1795, %v1803
    %v1839 = vunpack.c.l.b16 %v1762
    %v1840 = vunpack.c.h.b16 %v1762
    %v1841 = vunpack.c.l.b16 %v1763
    %v1842 = vunpack.c.h.b16 %v1763
    %v1843 = vunpack.c.l.b16 %v1764
    %v1844 = vunpack.c.h.b16 %v1764
    %v1845 = vunpack.c.l.b16 %v1765
    %v1846 = vunpack.c.h.b16 %v1765
    %v1847 = vunpack.c.l.b16 %v1766
    %v1848 = vunpack.c.h.b16 %v1766
    %v1849 = vunpack.c.l.b16 %v1767
    %v1850 = vunpack.c.h.b16 %v1767
    %v1851 = vunpack.c.l.b16 %v1768
    %v1852 = vunpack.c.h.b16 %v1768
    %v1853 = vunpack.c.l.b16 %v1769
    %v1854 = vunpack.c.h.b16 %v1769
    %v1855 = vunpack.c.l.b16 %v1770
    %v1856 = vunpack.c.h.b16 %v1770
    %v1857 = vunpack.c.l.b16 %v1771
    %v1858 = vunpack.c.h.b16 %v1771
    %v1859 = vunpack.c.l.b16 %v1772
    %v1860 = vunpack.c.h.b16 %v1772
    %v1861 = vunpack.c.l.b16 %v1773
    %v1862 = vunpack.c.h.b16 %v1773
    %v1863 = vunpack.c.l.b16 %v1774
    %v1864 = vunpack.c.h.b16 %v1774
    %v1865 = vunpack.c.l.b16 %v1775
    %v1866 = vunpack.c.h.b16 %v1775
    %v1867 = vunpack.c.l.b16 %v1776
    %v1868 = vunpack.c.h.b16 %v1776
    %v1869 = vunpack.c.l.b16 %v1777
    %v1870 = vunpack.c.h.b16 %v1777
    %v1871 = vunpack.c.l.b16 %v1778
    %v1872 = vunpack.c.h.b16 %v1778
    %v1873 = vunpack.c.l.b16 %v1779
    %v1874 = vunpack.c.h.b16 %v1779
    %v1875 = vunpack.c.l.b16 %v1780
    %v1876 = vunpack.c.h.b16 %v1780
    %v1877 = vunpack.c.l.b16 %v1781
    %v1878 = vunpack.c.h.b16 %v1781
    %v1879 = vunpack.c.l.b16 %v1782
    %v1880 = vunpack.c.h.b16 %v1782
    %v1881 = vunpack.c.l.b16 %v1783
    %v1882 = vunpack.c.h.b16 %v1783
    %v1883 = vunpack.c.l.b16 %v1784
    %v1884 = vunpack.c.h.b16 %v1784
    %v1885 = vunpack.c.l.b16 %v1785
    %v1886 = vunpack.c.h.b16 %v1785
    %v1887 = vunpack.c.l.b16 %v1786
    %v1888 = vunpack.c.h.b16 %v1786
    %v1889 = vunpack.c.l.b16 %v1787
    %v1890 = vunpack.c.h.b16 %v1787
    %v1891 = vunpack.c.l.b16 %v1788
    %v1892 = vunpack.c.h.b16 %v1788
    %v1893 = vunpack.c.l.b16 %v1789
    %v1894 = vunpack.c.h.b16 %v1789
    %v1895 = vunpack.c.l.b16 %v1790
    %v1896 = vunpack.c.h.b16 %v1790
    %v1897 = vunpack.c.l.b16 %v1791
    %v1898 = vunpack.c.h.b16 %v1791
    %v1899 = vunpack.c.l.b16 %v1792
    %v1900 = vunpack.c.h.b16 %v1792
    %v1901 = vunpack.c.l.b16 %v1793
    %v1902 = vunpack.c.h.b16 %v1793
    %v1903 = vpack.c.b16 %v1841, %v1839
    %v1904 = vpack.c.b16 %v1842, %v1840
    %v1905 = vpack.c.b16 %v1845, %v1843
    %v1906 = vpack.c.b16 %v1846, %v1844
    %v1907 = vpack.c.b16 %v1849, %v1847
    %v1908 = vpack.c.b16 %v1850, %v1848
    %v1909 = vpack.c.b16 %v1853, %v1851
    %v1910 = vpack.c.b16 %v1854, %v1852
    %v1911 = vpack.c.b16 %v1857, %v1855
    %v1912 = vpack.c.b16 %v1858, %v1856
    %v1913 = vpack.c.b16 %v1861, %v1859
    %v1914 = vpack.c.b16 %v1862, %v1860
    %v1915 = vpack.c.b16 %v1865, %v1863
    %v1916 = vpack.c.b16 %v1866, %v1864
    %v1917 = vpack.c.b16 %v1869, %v1867
    %v1918 = vpack.c.b16 %v1870, %v1868
    %v1919 = vpack.c.b16 %v1873, %v1871
    %v1920 = vpack.c.b16 %v1874, %v1872
    %v1921 = vpack.c.b16 %v1877, %v1875
    %v1922 = vpack.c.b16 %v1878, %v1876
    %v1923 = vpack.c.b16 %v1881, %v1879
    %v1924 = vpack.c.b16 %v1882, %v1880
    %v1925 = vpack.c.b16 %v1885, %v1883
    %v1926 = vpack.c.b16 %v1886, %v1884
    %v1927 = vpack.c.b16 %v1889, %v1887
    %v1928 = vpack.c.b16 %v1890, %v1888
    %v1929 = vpack.c.b16 %v1893, %v1891
    %v1930 = vpack.c.b16 %v1894, %v1892
    %v1931 = vpack.c.b16 %v1897, %v1895
    %v1932 = vpack.c.b16 %v1898, %v1896
    %v1933 = vpack.c.b16 %v1901, %v1899
    %v1934 = vpack.c.b16 %v1902, %v1900
    %1967 = vmatprep.subr.bf16.mxu0 %v1904
    %1968 = vmatpush1.bf16.msra.mxu0 %v1903
    %1969 = vmatprep.subr.bf16.mxu0 %v1906
    %1970 = vmatpush1.bf16.msra.mxu0 %v1905
    %1971 = vmatprep.subr.bf16.mxu0 %v1908
    %1972 = vmatpush1.bf16.msra.mxu0 %v1907
    %1973 = vmatprep.subr.bf16.mxu0 %v1910
    %1974 = vmatpush1.bf16.msra.mxu0 %v1909
    %1975 = vmatprep.subr.bf16.mxu0 %v1912
    %1976 = vmatpush1.bf16.msra.mxu0 %v1911
    %1977 = vmatprep.subr.bf16.mxu0 %v1914
    %1978 = vmatpush1.bf16.msra.mxu0 %v1913
    %1979 = vmatprep.subr.bf16.mxu0 %v1916
    %1980 = vmatpush1.bf16.msra.mxu0 %v1915
    %1981 = vmatprep.subr.bf16.mxu0 %v1918
    %1982 = vmatpush1.bf16.msra.mxu0 %v1917
    %1983 = vmatprep.subr.bf16.mxu0 %v1920
    %1984 = vmatpush1.bf16.msra.mxu0 %v1919
    %1985 = vmatprep.subr.bf16.mxu0 %v1922
    %1986 = vmatpush1.bf16.msra.mxu0 %v1921
    %1987 = vmatprep.subr.bf16.mxu0 %v1924
    %1988 = vmatpush1.bf16.msra.mxu0 %v1923
    %1989 = vmatprep.subr.bf16.mxu0 %v1926
    %1990 = vmatpush1.bf16.msra.mxu0 %v1925
    %1991 = vmatprep.subr.bf16.mxu0 %v1928
    %1992 = vmatpush1.bf16.msra.mxu0 %v1927
    %1993 = vmatprep.subr.bf16.mxu0 %v1930
    %1994 = vmatpush1.bf16.msra.mxu0 %v1929
    %1995 = vmatprep.subr.bf16.mxu0 %v1932
    %1996 = vmatpush1.bf16.msra.mxu0 %v1931
    %1997 = vmatprep.subr.bf16.mxu0 %v1934
    %1998 = vmatpush1.bf16.msra.mxu0 %v1933
    %1999 = vmatprep.mubr.bf16.mxu0 %v1760
    %2000 = vmatmul.mubr.bf16.gmra.mrb[0].mxu0 %v1759
    %v2001 = vpop.f32.mrb[0].mxu0
    %v2002 = vadd.f32 %v1800, %v2001
    %v2003 = vpop.f32.mrb[0].mxu0
    %v2004 = vadd.f32 %v1804, %v2003
    %v2005 = vpop.f32.mrb[0].mxu0
    %v2006 = vpop.f32.mrb[0].mxu0
    %2007 = vdwg.mxu0
    %2008 = vst [vmem:[#allocation10] sm:$0xff] %v2002
    %2009 = vst [vmem:[#allocation10 + $0x8] sm:$0xff] %v2004
    // Predicated region
    $region34: #{mlp_forward.1} parent=1 // pred_check
      _
    $region35: #{mlp_forward.1} parent=1 // pred_check_branch
      %2011 = sbr.rel (0) target = $region37
    $region36: #{mlp_forward.1} parent=1 // pred_region
      %s2013 = ssub.s32 256, 256
      %2014 = vsyncadd [#allocation4], %s2013
      %s2016 = sshll.u32 [#allocation10], 4
      %s2017 = int_to_ptr.vmem [resolvable:$true] %s2016
      %2019 = dma.vmem_to_hbm [thread:$0]  %s2017, 256, %s4, [#allocation4]
    $region37: #{mlp_forward.1} parent=1 // pred_fallthru
      _
    // Predicated region
    $region38: #{mlp_forward.1} parent=1 // pred_check
      _
    $region39: #{mlp_forward.1} parent=1 // pred_check_branch
      %2021 = sbr.rel (0) target = $region41
    $region40: #{mlp_forward.1} parent=1 // pred_region
      %2022 = dma.done [#allocation4], 256
    $region41: #{mlp_forward.1} parent=1 // pred_fallthru
      _
    %2023 = vsyncpa [#allocation3], 1
    %2024 = vsyncpa [#allocation6], 1
    %2025 = vsyncpa [#allocation9], 1
    %2026 = vsyncpa [#allocation4], 1

// kernel: mlp_forward.1
$region0: #{mlp_forward.1}
  #allocation0 [shape = 'u32[]', space=smem, size = 0x4, offset = 0x4, fixed_abs, tag = 'smem constant byte address 0x4 - core index']
  #allocation1 [shape = 'u32[144,128]{1,0:T(1,128)}', space=vmem, size = 0x12000, scoped, tag = 'internal scratch']
  %s0 = inlined_call_operand.vmem [shape: bf16[8,768], index: 0, kind: input, shape index: {}]
  %s1 = inlined_call_operand.hbm [shape: bf16[768,256], index: 1, kind: input, shape index: {}]
  %s2 = inlined_call_operand.hbm [shape: bf16[5,256,256], index: 2, kind: input, shape index: {}]
  %s3 = inlined_call_operand.vmem [shape: f32[6,256], index: 3, kind: input, shape index: {}]
  %s4 = inlined_call_operand.hbm [shape: f32[8,256], index: 4, kind: output, shape index: {}]
  %s5 = sld [smem:[#allocation0]]
  $region34: #{mlp_forward.1} parent=0
    _
  %s7 = ssub.s32 1, %s5
  %s8 = scalar_select 0, %s7, %s5
  $region1: #{mlp_forward.1} parent=0
    #allocation2 [shape = 'u8[393216]{0}', space=vmem, size = 0x60000, scoped, tag = 'input window, operand 1, single buffered']
    #allocation3 [shape = 's32[1]{0}', space=sflag, size = 0x4, scoped, tag = 'scoped memory for mlp_forward.1']
    #allocation4 [shape = 's32[1]{0}', space=sflag, size = 0x4, scoped, tag = 'scoped memory for mlp_forward.1']
    #allocation5 [shape = 'u8[655360]{0}', space=vmem, size = 0xa0000, scoped, tag = 'input window, operand 2, single buffered']
    #allocation6 [shape = 's32[1]{0}', space=sflag, size = 0x4, scoped, tag = 'scoped memory for mlp_forward.1']
    #allocation7 [shape = 'u8[8192]{0}', space=vmem, size = 0x2000, scoped, tag = 'output window, operand 0, single buffered']
    %9 = vsyncpa [#allocation3], 0
    %10 = vsyncpa [#allocation6], 0
    %11 = vsyncpa [#allocation4], 0
    // Predicated region
    $region2: #{mlp_forward.1} parent=1 // pred_check
      _
    $region3: #{mlp_forward.1} parent=1 // pred_check_branch
      %13 = sbr.rel (0) target = $region5
    $region4: #{mlp_forward.1} parent=1 // pred_region
      _
    $region5: #{mlp_forward.1} parent=1 // pred_fallthru
      _
    // Predicated region
    $region6: #{mlp_forward.1} parent=1 // pred_check
      _
    $region7: #{mlp_forward.1} parent=1 // pred_check_branch
      %15 = sbr.rel (0) target = $region9
    $region8: #{mlp_forward.1} parent=1 // pred_region
      %s17 = ssub.s32 12288, 12288
      %18 = vsyncadd [#allocation3], %s17
      %s19 = sshll.u32 [#allocation2], 4
      %s20 = int_to_ptr.vmem [resolvable:$true] %s19
      %25 = dma.hbm_to_vmem [thread:$0]  %s1, 12288, %s20, [#allocation3], 128, 128, 8
    $region9: #{mlp_forward.1} parent=1 // pred_fallthru
      _
    // Predicated region
    $region10: #{mlp_forward.1} parent=1 // pred_check
      _
    $region11: #{mlp_forward.1} parent=1 // pred_check_branch
      %27 = sbr.rel (0) target = $region13
    $region12: #{mlp_forward.1} parent=1 // pred_region
      %s29 = ssub.s32 20480, 20480
      %30 = vsyncadd [#allocation6], %s29
      %s31 = sshll.u32 [#allocation5], 4
      %s32 = int_to_ptr.vmem [resolvable:$true] %s31
      %37 = dma.hbm_to_vmem [thread:$0]  %s2, 20480, %s32, [#allocation6], 128, 128, 8
    $region13: #{mlp_forward.1} parent=1 // pred_fallthru
      _
    // Predicated region
    $region14: #{mlp_forward.1} parent=1 // pred_check
      _
    $region15: #{mlp_forward.1} parent=1 // pred_check_branch
      %39 = sbr.rel (0) target = $region17
    $region16: #{mlp_forward.1} parent=1 // pred_region
      _
    $region17: #{mlp_forward.1} parent=1 // pred_fallthru
      _
    // Predicated region
    $region18: #{mlp_forward.1} parent=1 // pred_check
      _
    $region19: #{mlp_forward.1} parent=1 // pred_check_branch
      %41 = sbr.rel (0) target = $region21
    $region20: #{mlp_forward.1} parent=1 // pred_region
      %42 = dma.done [#allocation3], 12288
    $region21: #{mlp_forward.1} parent=1 // pred_fallthru
      _
    // Predicated region
    $region22: #{mlp_forward.1} parent=1 // pred_check
      _
    $region23: #{mlp_forward.1} parent=1 // pred_check_branch
      %44 = sbr.rel (0) target = $region25
    $region24: #{mlp_forward.1} parent=1 // pred_region
      %45 = dma.done [#allocation6], 20480
    $region25: #{mlp_forward.1} parent=1 // pred_fallthru
      _
    %v46 = vld [vmem:[%s0] sm:$0xff]
    %v47 = vld [vmem:[%s0 + $0x8] sm:$0xff]
    %v48 = vld [vmem:[%s0 + $0x10] sm:$0xff]
    %v49 = vld [vmem:[#allocation2] sm:$0xff]
    %v50 = vld [vmem:[#allocation2 + $0x8] sm:$0xff]
    %v51 = vld [vmem:[#allocation2 + $0x10] sm:$0xff]
    %v52 = vld [vmem:[#allocation2 + $0x18] sm:$0xff]
    %v53 = vld [vmem:[#allocation2 + $0x20] sm:$0xff]
    %v54 = vld [vmem:[#allocation2 + $0x28] sm:$0xff]
    %v55 = vld [vmem:[#allocation2 + $0x30] sm:$0xff]
    %v56 = vld [vmem:[#allocation2 + $0x38] sm:$0xff]
    %v57 = vld [vmem:[#allocation2 + $0x40] sm:$0xff]
    %v58 = vld [vmem:[#allocation2 + $0x48] sm:$0xff]
    %v59 = vld [vmem:[#allocation2 + $0x50] sm:$0xff]
    %v60 = vld [vmem:[#allocation2 + $0x58] sm:$0xff]
    %v61 = vld [vmem:[#allocation2 + $0x60] sm:$0xff]
    %v62 = vld [vmem:[#allocation2 + $0x68] sm:$0xff]
    %v63 = vld [vmem:[#allocation2 + $0x70] sm:$0xff]
    %v64 = vld [vmem:[#allocation2 + $0x78] sm:$0xff]
    %v65 = vld [vmem:[#allocation2 + $0x80] sm:$0xff]
    %v66 = vld [vmem:[#allocation2 + $0x88] sm:$0xff]
    %v67 = vld [vmem:[#allocation2 + $0x90] sm:$0xff]
    %v68 = vld [vmem:[#allocation2 + $0x98] sm:$0xff]
    %v69 = vld [vmem:[#allocation2 + $0xa0] sm:$0xff]
    %v70 = vld [vmem:[#allocation2 + $0xa8] sm:$0xff]
    %v71 = vld [vmem:[#allocation2 + $0xb0] sm:$0xff]
    %v72 = vld [vmem:[#allocation2 + $0xb8] sm:$0xff]
    %v73 = vld [vmem:[#allocation2 + $0xc0] sm:$0xff]
    %v74 = vld [vmem:[#allocation2 + $0xc8] sm:$0xff]
    %v75 = vld [vmem:[#allocation2 + $0xd0] sm:$0xff]
    %v76 = vld [vmem:[#allocation2 + $0xd8] sm:$0xff]
    %v77 = vld [vmem:[#allocation2 + $0xe0] sm:$0xff]
    %v78 = vld [vmem:[#allocation2 + $0xe8] sm:$0xff]
    %v79 = vld [vmem:[#allocation2 + $0xf0] sm:$0xff]
    %v80 = vld [vmem:[#allocation2 + $0xf8] sm:$0xff]
    %v81 = vld [vmem:[#allocation2 + $0x100] sm:$0xff]
    %v82 = vld [vmem:[#allocation2 + $0x108] sm:$0xff]
    %v83 = vld [vmem:[#allocation2 + $0x110] sm:$0xff]
    %v84 = vld [vmem:[#allocation2 + $0x118] sm:$0xff]
    %v85 = vld [vmem:[#allocation2 + $0x120] sm:$0xff]
    %v86 = vld [vmem:[#allocation2 + $0x128] sm:$0xff]
    %v87 = vld [vmem:[#allocation2 + $0x130] sm:$0xff]
    %v88 = vld [vmem:[#allocation2 + $0x138] sm:$0xff]
    %v89 = vld [vmem:[#allocation2 + $0x140] sm:$0xff]
    %v90 = vld [vmem:[#allocation2 + $0x148] sm:$0xff]
    %v91 = vld [vmem:[#allocation2 + $0x150] sm:$0xff]
    %v92 = vld [vmem:[#allocation2 + $0x158] sm:$0xff]
    %v93 = vld [vmem:[#allocation2 + $0x160] sm:$0xff]
    %v94 = vld [vmem:[#allocation2 + $0x168] sm:$0xff]
    %v95 = vld [vmem:[#allocation2 + $0x170] sm:$0xff]
    %v96 = vld [vmem:[#allocation2 + $0x178] sm:$0xff]
    %v97 = vld [vmem:[#allocation2 + $0x180] sm:$0xff]
    %v98 = vld [vmem:[#allocation2 + $0x188] sm:$0xff]
    %v99 = vld [vmem:[#allocation2 + $0x190] sm:$0xff]
    %v100 = vld [vmem:[#allocation2 + $0x198] sm:$0xff]
    %v101 = vld [vmem:[#allocation2 + $0x1a0] sm:$0xff]
    %v102 = vld [vmem:[#allocation2 + $0x1a8] sm:$0xff]
    %v103 = vld [vmem:[#allocation2 + $0x1b0] sm:$0xff]
    %v104 = vld [vmem:[#allocation2 + $0x1b8] sm:$0xff]
    %v105 = vld [vmem:[#allocation2 + $0x1c0] sm:$0xff]
    %v106 = vld [vmem:[#allocation2 + $0x1c8] sm:$0xff]
    %v107 = vld [vmem:[#allocation2 + $0x1d0] sm:$0xff]
    %v108 = vld [vmem:[#allocation2 + $0x1d8] sm:$0xff]
    %v109 = vld [vmem:[#allocation2 + $0x1e0] sm:$0xff]
    %v110 = vld [vmem:[#allocation2 + $0x1e8] sm:$0xff]
    %v111 = vld [vmem:[#allocation2 + $0x1f0] sm:$0xff]
    %v112 = vld [vmem:[#allocation2 + $0x1f8] sm:$0xff]
    %v113 = vld [vmem:[#allocation2 + $0x200] sm:$0xff]
    %v114 = vld [vmem:[#allocation2 + $0x208] sm:$0xff]
    %v115 = vld [vmem:[#allocation2 + $0x210] sm:$0xff]
    %v116 = vld [vmem:[#allocation2 + $0x218] sm:$0xff]
    %v117 = vld [vmem:[#allocation2 + $0x220] sm:$0xff]
    %v118 = vld [vmem:[#allocation2 + $0x228] sm:$0xff]
    %v119 = vld [vmem:[#allocation2 + $0x230] sm:$0xff]
    %v120 = vld [vmem:[#allocation2 + $0x238] sm:$0xff]
    %v121 = vld [vmem:[#allocation2 + $0x240] sm:$0xff]
    %v122 = vld [vmem:[#allocation2 + $0x248] sm:$0xff]
    %v123 = vld [vmem:[#allocation2 + $0x250] sm:$0xff]
    %v124 = vld [vmem:[#allocation2 + $0x258] sm:$0xff]
    %v125 = vld [vmem:[#allocation2 + $0x260] sm:$0xff]
    %v126 = vld [vmem:[#allocation2 + $0x268] sm:$0xff]
    %v127 = vld [vmem:[#allocation2 + $0x270] sm:$0xff]
    %v128 = vld [vmem:[#allocation2 + $0x278] sm:$0xff]
    %v129 = vld [vmem:[#allocation2 + $0x280] sm:$0xff]
    %v130 = vld [vmem:[#allocation2 + $0x288] sm:$0xff]
    %v131 = vld [vmem:[#allocation2 + $0x290] sm:$0xff]
    %v132 = vld [vmem:[#allocation2 + $0x298] sm:$0xff]
    %v133 = vld [vmem:[#allocation2 + $0x2a0] sm:$0xff]
    %v134 = vld [vmem:[#allocation2 + $0x2a8] sm:$0xff]
    %v135 = vld [vmem:[#allocation2 + $0x2b0] sm:$0xff]
    %v136 = vld [vmem:[#allocation2 + $0x2b8] sm:$0xff]
    %v137 = vld [vmem:[#allocation2 + $0x2c0] sm:$0xff]
    %v138 = vld [vmem:[#allocation2 + $0x2c8] sm:$0xff]
    %v139 = vld [vmem:[#allocation2 + $0x2d0] sm:$0xff]
    %v140 = vld [vmem:[#allocation2 + $0x2d8] sm:$0xff]
    %v141 = vld [vmem:[#allocation2 + $0x2e0] sm:$0xff]
    %v142 = vld [vmem:[#allocation2 + $0x2e8] sm:$0xff]
    %v143 = vld [vmem:[#allocation2 + $0x2f0] sm:$0xff]
    %v144 = vld [vmem:[#allocation2 + $0x2f8] sm:$0xff]
    %v145 = vld [vmem:[%s3] ss:$8 sm:$0x3]
    %v147 = vlaneseq
    %v148 = vshrl.u32 %v147, 7
    %v149 = vsub.s32 0, %v148
    %v150 = vrot.slane %v145, %v149
    %v151 = vlaneseq
    %v152 = vshrl.u32 %v151, 7
    %v153 = vsub.s32 1, %v152
    %v154 = vrot.slane %v145, %v153
    %v160 = vunpack.c.l.b16 %v46
    %v161 = vunpack.c.h.b16 %v46
    %v162 = vunpack.c.l.b16 %v47
    %v163 = vunpack.c.h.b16 %v47
    %v164 = vunpack.c.l.b16 %v48
    %v165 = vunpack.c.h.b16 %v48
    %v166 = vpack.c.b16 %v160, %v160
    %v167 = vpack.c.b16 %v161, %v161
    %v168 = vpack.c.b16 %v162, %v162
    %v169 = vpack.c.b16 %v163, %v163
    %v170 = vpack.c.b16 %v164, %v164
    %v171 = vpack.c.b16 %v165, %v165
    %v274 = vunpack.c.l.b16 %v49
    %v275 = vunpack.c.h.b16 %v49
    %v276 = vunpack.c.l.b16 %v50
    %v277 = vunpack.c.h.b16 %v50
    %v278 = vunpack.c.l.b16 %v51
    %v279 = vunpack.c.h.b16 %v51
    %v280 = vunpack.c.l.b16 %v52
    %v281 = vunpack.c.h.b16 %v52
    %v282 = vunpack.c.l.b16 %v53
    %v283 = vunpack.c.h.b16 %v53
    %v284 = vunpack.c.l.b16 %v54
    %v285 = vunpack.c.h.b16 %v54
    %v286 = vunpack.c.l.b16 %v55
    %v287 = vunpack.c.h.b16 %v55
    %v288 = vunpack.c.l.b16 %v56
    %v289 = vunpack.c.h.b16 %v56
    %v290 = vunpack.c.l.b16 %v57
    %v291 = vunpack.c.h.b16 %v57
    %v292 = vunpack.c.l.b16 %v58
    %v293 = vunpack.c.h.b16 %v58
    %v294 = vunpack.c.l.b16 %v59
    %v295 = vunpack.c.h.b16 %v59
    %v296 = vunpack.c.l.b16 %v60
    %v297 = vunpack.c.h.b16 %v60
    %v298 = vunpack.c.l.b16 %v61
    %v299 = vunpack.c.h.b16 %v61
    %v300 = vunpack.c.l.b16 %v62
    %v301 = vunpack.c.h.b16 %v62
    %v302 = vunpack.c.l.b16 %v63
    %v303 = vunpack.c.h.b16 %v63
    %v304 = vunpack.c.l.b16 %v64
    %v305 = vunpack.c.h.b16 %v64
    %v306 = vunpack.c.l.b16 %v65
    %v307 = vunpack.c.h.b16 %v65
    %v308 = vunpack.c.l.b16 %v66
    %v309 = vunpack.c.h.b16 %v66
    %v310 = vunpack.c.l.b16 %v67
    %v311 = vunpack.c.h.b16 %v67
    %v312 = vunpack.c.l.b16 %v68
    %v313 = vunpack.c.h.b16 %v68
    %v314 = vunpack.c.l.b16 %v69
    %v315 = vunpack.c.h.b16 %v69
    %v316 = vunpack.c.l.b16 %v70
    %v317 = vunpack.c.h.b16 %v70
    %v318 = vunpack.c.l.b16 %v71
    %v319 = vunpack.c.h.b16 %v71
    %v320 = vunpack.c.l.b16 %v72
    %v321 = vunpack.c.h.b16 %v72
    %v322 = vunpack.c.l.b16 %v73
    %v323 = vunpack.c.h.b16 %v73
    %v324 = vunpack.c.l.b16 %v74
    %v325 = vunpack.c.h.b16 %v74
    %v326 = vunpack.c.l.b16 %v75
    %v327 = vunpack.c.h.b16 %v75
    %v328 = vunpack.c.l.b16 %v76
    %v329 = vunpack.c.h.b16 %v76
    %v330 = vunpack.c.l.b16 %v77
    %v331 = vunpack.c.h.b16 %v77
    %v332 = vunpack.c.l.b16 %v78
    %v333 = vunpack.c.h.b16 %v78
    %v334 = vunpack.c.l.b16 %v79
    %v335 = vunpack.c.h.b16 %v79
    %v336 = vunpack.c.l.b16 %v80
    %v337 = vunpack.c.h.b16 %v80
    %v338 = vunpack.c.l.b16 %v81
    %v339 = vunpack.c.h.b16 %v81
    %v340 = vunpack.c.l.b16 %v82
    %v341 = vunpack.c.h.b16 %v82
    %v342 = vunpack.c.l.b16 %v83
    %v343 = vunpack.c.h.b16 %v83
    %v344 = vunpack.c.l.b16 %v84
    %v345 = vunpack.c.h.b16 %v84
    %v346 = vunpack.c.l.b16 %v85
    %v347 = vunpack.c.h.b16 %v85
    %v348 = vunpack.c.l.b16 %v86
    %v349 = vunpack.c.h.b16 %v86
    %v350 = vunpack.c.l.b16 %v87
    %v351 = vunpack.c.h.b16 %v87
    %v352 = vunpack.c.l.b16 %v88
    %v353 = vunpack.c.h.b16 %v88
    %v354 = vunpack.c.l.b16 %v89
    %v355 = vunpack.c.h.b16 %v89
    %v356 = vunpack.c.l.b16 %v90
    %v357 = vunpack.c.h.b16 %v90
    %v358 = vunpack.c.l.b16 %v91
    %v359 = vunpack.c.h.b16 %v91
    %v360 = vunpack.c.l.b16 %v92
    %v361 = vunpack.c.h.b16 %v92
    %v362 = vunpack.c.l.b16 %v93
    %v363 = vunpack.c.h.b16 %v93
    %v364 = vunpack.c.l.b16 %v94
    %v365 = vunpack.c.h.b16 %v94
    %v366 = vunpack.c.l.b16 %v95
    %v367 = vunpack.c.h.b16 %v95
    %v368 = vunpack.c.l.b16 %v96
    %v369 = vunpack.c.h.b16 %v96
    %v370 = vunpack.c.l.b16 %v97
    %v371 = vunpack.c.h.b16 %v97
    %v372 = vunpack.c.l.b16 %v98
    %v373 = vunpack.c.h.b16 %v98
    %v374 = vunpack.c.l.b16 %v99
    %v375 = vunpack.c.h.b16 %v99
    %v376 = vunpack.c.l.b16 %v100
    %v377 = vunpack.c.h.b16 %v100
    %v378 = vunpack.c.l.b16 %v101
    %v379 = vunpack.c.h.b16 %v101
    %v380 = vunpack.c.l.b16 %v102
    %v381 = vunpack.c.h.b16 %v102
    %v382 = vunpack.c.l.b16 %v103
    %v383 = vunpack.c.h.b16 %v103
    %v384 = vunpack.c.l.b16 %v104
    %v385 = vunpack.c.h.b16 %v104
    %v386 = vunpack.c.l.b16 %v105
    %v387 = vunpack.c.h.b16 %v105
    %v388 = vunpack.c.l.b16 %v106
    %v389 = vunpack.c.h.b16 %v106
    %v390 = vunpack.c.l.b16 %v107
    %v391 = vunpack.c.h.b16 %v107
    %v392 = vunpack.c.l.b16 %v108
    %v393 = vunpack.c.h.b16 %v108
    %v394 = vunpack.c.l.b16 %v109
    %v395 = vunpack.c.h.b16 %v109
    %v396 = vunpack.c.l.b16 %v110
    %v397 = vunpack.c.h.b16 %v110
    %v398 = vunpack.c.l.b16 %v111
    %v399 = vunpack.c.h.b16 %v111
    %v400 = vunpack.c.l.b16 %v112
    %v401 = vunpack.c.h.b16 %v112
    %v402 = vunpack.c.l.b16 %v113
    %v403 = vunpack.c.h.b16 %v113
    %v404 = vunpack.c.l.b16 %v114
    %v405 = vunpack.c.h.b16 %v114
    %v406 = vunpack.c.l.b16 %v115
    %v407 = vunpack.c.h.b16 %v115
    %v408 = vunpack.c.l.b16 %v116
    %v409 = vunpack.c.h.b16 %v116
    %v410 = vunpack.c.l.b16 %v117
    %v411 = vunpack.c.h.b16 %v117
    %v412 = vunpack.c.l.b16 %v118
    %v413 = vunpack.c.h.b16 %v118
    %v414 = vunpack.c.l.b16 %v119
    %v415 = vunpack.c.h.b16 %v119
    %v416 = vunpack.c.l.b16 %v120
    %v417 = vunpack.c.h.b16 %v120
    %v418 = vunpack.c.l.b16 %v121
    %v419 = vunpack.c.h.b16 %v121
    %v420 = vunpack.c.l.b16 %v122
    %v421 = vunpack.c.h.b16 %v122
    %v422 = vunpack.c.l.b16 %v123
    %v423 = vunpack.c.h.b16 %v123
    %v424 = vunpack.c.l.b16 %v124
    %v425 = vunpack.c.h.b16 %v124
    %v426 = vunpack.c.l.b16 %v125
    %v427 = vunpack.c.h.b16 %v125
    %v428 = vunpack.c.l.b16 %v126
    %v429 = vunpack.c.h.b16 %v126
    %v430 = vunpack.c.l.b16 %v127
    %v431 = vunpack.c.h.b16 %v127
    %v432 = vunpack.c.l.b16 %v128
    %v433 = vunpack.c.h.b16 %v128
    %v434 = vunpack.c.l.b16 %v129
    %v435 = vunpack.c.h.b16 %v129
    %v436 = vunpack.c.l.b16 %v130
    %v437 = vunpack.c.h.b16 %v130
    %v438 = vunpack.c.l.b16 %v131
    %v439 = vunpack.c.h.b16 %v131
    %v440 = vunpack.c.l.b16 %v132
    %v441 = vunpack.c.h.b16 %v132
    %v442 = vunpack.c.l.b16 %v133
    %v443 = vunpack.c.h.b16 %v133
    %v444 = vunpack.c.l.b16 %v134
    %v445 = vunpack.c.h.b16 %v134
    %v446 = vunpack.c.l.b16 %v135
    %v447 = vunpack.c.h.b16 %v135
    %v448 = vunpack.c.l.b16 %v136
    %v449 = vunpack.c.h.b16 %v136
    %v450 = vunpack.c.l.b16 %v137
    %v451 = vunpack.c.h.b16 %v137
    %v452 = vunpack.c.l.b16 %v138
    %v453 = vunpack.c.h.b16 %v138
    %v454 = vunpack.c.l.b16 %v139
    %v455 = vunpack.c.h.b16 %v139
    %v456 = vunpack.c.l.b16 %v140
    %v457 = vunpack.c.h.b16 %v140
    %v458 = vunpack.c.l.b16 %v141
    %v459 = vunpack.c.h.b16 %v141
    %v460 = vunpack.c.l.b16 %v142
    %v461 = vunpack.c.h.b16 %v142
    %v462 = vunpack.c.l.b16 %v143
    %v463 = vunpack.c.h.b16 %v143
    %v464 = vunpack.c.l.b16 %v144
    %v465 = vunpack.c.h.b16 %v144
    %v466 = vpack.c.b16 %v276, %v274
    %v467 = vpack.c.b16 %v277, %v275
    %v468 = vpack.c.b16 %v280, %v278
    %v469 = vpack.c.b16 %v281, %v279
    %v470 = vpack.c.b16 %v284, %v282
    %v471 = vpack.c.b16 %v285, %v283
    %v472 = vpack.c.b16 %v288, %v286
    %v473 = vpack.c.b16 %v289, %v287
    %v474 = vpack.c.b16 %v292, %v290
    %v475 = vpack.c.b16 %v293, %v291
    %v476 = vpack.c.b16 %v296, %v294
    %v477 = vpack.c.b16 %v297, %v295
    %v478 = vpack.c.b16 %v300, %v298
    %v479 = vpack.c.b16 %v301, %v299
    %v480 = vpack.c.b16 %v304, %v302
    %v481 = vpack.c.b16 %v305, %v303
    %v482 = vpack.c.b16 %v308, %v306
    %v483 = vpack.c.b16 %v309, %v307
    %v484 = vpack.c.b16 %v312, %v310
    %v485 = vpack.c.b16 %v313, %v311
    %v486 = vpack.c.b16 %v316, %v314
    %v487 = vpack.c.b16 %v317, %v315
    %v488 = vpack.c.b16 %v320, %v318
    %v489 = vpack.c.b16 %v321, %v319
    %v490 = vpack.c.b16 %v324, %v322
    %v491 = vpack.c.b16 %v325, %v323
    %v492 = vpack.c.b16 %v328, %v326
    %v493 = vpack.c.b16 %v329, %v327
    %v494 = vpack.c.b16 %v332, %v330
    %v495 = vpack.c.b16 %v333, %v331
    %v496 = vpack.c.b16 %v336, %v334
    %v497 = vpack.c.b16 %v337, %v335
    %v498 = vpack.c.b16 %v340, %v338
    %v499 = vpack.c.b16 %v341, %v339
    %v500 = vpack.c.b16 %v344, %v342
    %v501 = vpack.c.b16 %v345, %v343
    %v502 = vpack.c.b16 %v348, %v346
    %v503 = vpack.c.b16 %v349, %v347
    %v504 = vpack.c.b16 %v352, %v350
    %v505 = vpack.c.b16 %v353, %v351
    %v506 = vpack.c.b16 %v356, %v354
    %v507 = vpack.c.b16 %v357, %v355
    %v508 = vpack.c.b16 %v360, %v358
    %v509 = vpack.c.b16 %v361, %v359
    %v510 = vpack.c.b16 %v364, %v362
    %v511 = vpack.c.b16 %v365, %v363
    %v512 = vpack.c.b16 %v368, %v366
    %v513 = vpack.c.b16 %v369, %v367
    %v514 = vpack.c.b16 %v372, %v370
    %v515 = vpack.c.b16 %v373, %v371
    %v516 = vpack.c.b16 %v376, %v374
    %v517 = vpack.c.b16 %v377, %v375
    %v518 = vpack.c.b16 %v380, %v378
    %v519 = vpack.c.b16 %v381, %v379
    %v520 = vpack.c.b16 %v384, %v382
    %v521 = vpack.c.b16 %v385, %v383
    %v522 = vpack.c.b16 %v388, %v386
    %v523 = vpack.c.b16 %v389, %v387
    %v524 = vpack.c.b16 %v392, %v390
    %v525 = vpack.c.b16 %v393, %v391
    %v526 = vpack.c.b16 %v396, %v394
    %v527 = vpack.c.b16 %v397, %v395
    %v528 = vpack.c.b16 %v400, %v398
    %v529 = vpack.c.b16 %v401, %v399
    %v530 = vpack.c.b16 %v404, %v402
    %v531 = vpack.c.b16 %v405, %v403
    %v532 = vpack.c.b16 %v408, %v406
    %v533 = vpack.c.b16 %v409, %v407
    %v534 = vpack.c.b16 %v412, %v410
    %v535 = vpack.c.b16 %v413, %v411
    %v536 = vpack.c.b16 %v416, %v414
    %v537 = vpack.c.b16 %v417, %v415
    %v538 = vpack.c.b16 %v420, %v418
    %v539 = vpack.c.b16 %v421, %v419
    %v540 = vpack.c.b16 %v424, %v422
    %v541 = vpack.c.b16 %v425, %v423
    %v542 = vpack.c.b16 %v428, %v426
    %v543 = vpack.c.b16 %v429, %v427
    %v544 = vpack.c.b16 %v432, %v430
    %v545 = vpack.c.b16 %v433, %v431
    %v546 = vpack.c.b16 %v436, %v434
    %v547 = vpack.c.b16 %v437, %v435
    %v548 = vpack.c.b16 %v440, %v438
    %v549 = vpack.c.b16 %v441, %v439
    %v550 = vpack.c.b16 %v444, %v442
    %v551 = vpack.c.b16 %v445, %v443
    %v552 = vpack.c.b16 %v448, %v446
    %v553 = vpack.c.b16 %v449, %v447
    %v554 = vpack.c.b16 %v452, %v450
    %v555 = vpack.c.b16 %v453, %v451
    %v556 = vpack.c.b16 %v456, %v454
    %v557 = vpack.c.b16 %v457, %v455
    %v558 = vpack.c.b16 %v460, %v458
    %v559 = vpack.c.b16 %v461, %v459
    %v560 = vpack.c.b16 %v464, %v462
    %v561 = vpack.c.b16 %v465, %v463
    %658 = vmatprep.subr.bf16.mxu0 %v467
    %659 = vmatpush1.bf16.msra.mxu0 %v466
    %660 = vmatprep.subr.bf16.mxu0 %v469
    %661 = vmatpush1.bf16.msra.mxu0 %v468
    %662 = vmatprep.subr.bf16.mxu0 %v471
    %663 = vmatpush1.bf16.msra.mxu0 %v470
    %664 = vmatprep.subr.bf16.mxu0 %v473
    %665 = vmatpush1.bf16.msra.mxu0 %v472
    %666 = vmatprep.subr.bf16.mxu0 %v475
    %667 = vmatpush1.bf16.msra.mxu0 %v474
    %668 = vmatprep.subr.bf16.mxu0 %v477
    %669 = vmatpush1.bf16.msra.mxu0 %v476
    %670 = vmatprep.subr.bf16.mxu0 %v479
    %671 = vmatpush1.bf16.msra.mxu0 %v478
    %672 = vmatprep.subr.bf16.mxu0 %v481
    %673 = vmatpush1.bf16.msra.mxu0 %v480
    %674 = vmatprep.subr.bf16.mxu0 %v483
    %675 = vmatpush1.bf16.msra.mxu0 %v482
    %676 = vmatprep.subr.bf16.mxu0 %v485
    %677 = vmatpush1.bf16.msra.mxu0 %v484
    %678 = vmatprep.subr.bf16.mxu0 %v487
    %679 = vmatpush1.bf16.msra.mxu0 %v486
    %680 = vmatprep.subr.bf16.mxu0 %v489
    %681 = vmatpush1.bf16.msra.mxu0 %v488
    %682 = vmatprep.subr.bf16.mxu0 %v491
    %683 = vmatpush1.bf16.msra.mxu0 %v490
    %684 = vmatprep.subr.bf16.mxu0 %v493
    %685 = vmatpush1.bf16.msra.mxu0 %v492
    %686 = vmatprep.subr.bf16.mxu0 %v495
    %687 = vmatpush1.bf16.msra.mxu0 %v494
    %688 = vmatprep.subr.bf16.mxu0 %v497
    %689 = vmatpush1.bf16.msra.mxu0 %v496
    %690 = vmatprep.mubr.bf16.mxu0 %v167
    %691 = vmatmul.mubr.bf16.gmra.mrb[0].mxu0 %v166
    %v692 = vpop.f32.mrb[0].mxu0
    %v693 = vadd.f32 %v150, %v692
    %v694 = vpop.f32.mrb[0].mxu0
    %v695 = vadd.f32 %v154, %v694
    %v696 = vpop.f32.mrb[0].mxu0
    %v697 = vpop.f32.mrb[0].mxu0
    %698 = vdwg.mxu0
    %699 = vmatprep.subr.bf16.mxu0 %v499
    %700 = vmatpush1.bf16.msra.mxu0 %v498
    %701 = vmatprep.subr.bf16.mxu0 %v501
    %702 = vmatpush1.bf16.msra.mxu0 %v500
    %703 = vmatprep.subr.bf16.mxu0 %v503
    %704 = vmatpush1.bf16.msra.mxu0 %v502
    %705 = vmatprep.subr.bf16.mxu0 %v505
    %706 = vmatpush1.bf16.msra.mxu0 %v504
    %707 = vmatprep.subr.bf16.mxu0 %v507
    %708 = vmatpush1.bf16.msra.mxu0 %v506
    %709 = vmatprep.subr.bf16.mxu0 %v509
    %710 = vmatpush1.bf16.msra.mxu0 %v508
    %711 = vmatprep.subr.bf16.mxu0 %v511
    %712 = vmatpush1.bf16.msra.mxu0 %v510
    %713 = vmatprep.subr.bf16.mxu0 %v513
    %714 = vmatpush1.bf16.msra.mxu0 %v512
    %715 = vmatprep.subr.bf16.mxu0 %v515
    %716 = vmatpush1.bf16.msra.mxu0 %v514
    %717 = vmatprep.subr.bf16.mxu0 %v517
    %718 = vmatpush1.bf16.msra.mxu0 %v516
    %719 = vmatprep.subr.bf16.mxu0 %v519
    %720 = vmatpush1.bf16.msra.mxu0 %v518
    %721 = vmatprep.subr.bf16.mxu0 %v521
    %722 = vmatpush1.bf16.msra.mxu0 %v520
    %723 = vmatprep.subr.bf16.mxu0 %v523
    %724 = vmatpush1.bf16.msra.mxu0 %v522
    %725 = vmatprep.subr.bf16.mxu0 %v525
    %726 = vmatpush1.bf16.msra.mxu0 %v524
    %727 = vmatprep.subr.bf16.mxu0 %v527
    %728 = vmatpush1.bf16.msra.mxu0 %v526
    %729 = vmatprep.subr.bf16.mxu0 %v529
    %730 = vmatpush1.bf16.msra.mxu0 %v528
    %731 = vmatprep.mubr.bf16.mxu0 %v169
    %732 = vmatmul.mubr.bf16.gmra.mrb[0].mxu0 %v168
    %v733 = vpop.f32.mrb[0].mxu0
    %v734 = vadd.f32 %v693, %v733
    %v735 = vpop.f32.mrb[0].mxu0
    %v736 = vadd.f32 %v695, %v735
    %v737 = vpop.f32.mrb[0].mxu0
    %v738 = vpop.f32.mrb[0].mxu0
    %739 = vdwg.mxu0
    %740 = vmatprep.subr.bf16.mxu0 %v531
    %741 = vmatpush1.bf16.msra.mxu0 %v530
    %742 = vmatprep.subr.bf16.mxu0 %v533
    %743 = vmatpush1.bf16.msra.mxu0 %v532
    %744 = vmatprep.subr.bf16.mxu0 %v535
    %745 = vmatpush1.bf16.msra.mxu0 %v534
    %746 = vmatprep.subr.bf16.mxu0 %v537
    %747 = vmatpush1.bf16.msra.mxu0 %v536
    %748 = vmatprep.subr.bf16.mxu0 %v539
    %749 = vmatpush1.bf16.msra.mxu0 %v538
    %750 = vmatprep.subr.bf16.mxu0 %v541
    %751 = vmatpush1.bf16.msra.mxu0 %v540
    %752 = vmatprep.subr.bf16.mxu0 %v543
    %753 = vmatpush1.bf16.msra.mxu0 %v542
    %754 = vmatprep.subr.bf16.mxu0 %v545
    %755 = vmatpush1.bf16.msra.mxu0 %v544
    %756 = vmatprep.subr.bf16.mxu0 %v547
    %757 = vmatpush1.bf16.msra.mxu0 %v546
    %758 = vmatprep.subr.bf16.mxu0 %v549
    %759 = vmatpush1.bf16.msra.mxu0 %v548
    %760 = vmatprep.subr.bf16.mxu0 %v551
    %761 = vmatpush1.bf16.msra.mxu0 %v550
    %762 = vmatprep.subr.bf16.mxu0 %v553
    %763 = vmatpush1.bf16.msra.mxu0 %v552
    %764 = vmatprep.subr.bf16.mxu0 %v555
    %765 = vmatpush1.bf16.msra.mxu0 %v554
    %766 = vmatprep.subr.bf16.mxu0 %v557
    %767 = vmatpush1.bf16.msra.mxu0 %v556
    %768 = vmatprep.subr.bf16.mxu0 %v559
    %769 = vmatpush1.bf16.msra.mxu0 %v558
    %770 = vmatprep.subr.bf16.mxu0 %v561
    %771 = vmatpush1.bf16.msra.mxu0 %v560
    %772 = vmatprep.mubr.bf16.mxu0 %v171
    %773 = vmatmul.mubr.bf16.gmra.mrb[0].mxu0 %v170
    %v774 = vpop.f32.mrb[0].mxu0
    %v775 = vadd.f32 %v734, %v774
    %v776 = vpop.f32.mrb[0].mxu0
    %v777 = vadd.f32 %v736, %v776
    %v778 = vpop.f32.mrb[0].mxu0
    %v779 = vpop.f32.mrb[0].mxu0
    %780 = vdwg.mxu0
    %v781 = vmax.f32 %v775, 0.0
    %v782 = vmax.f32 %v777, 0.0
    %v783 = vpack.c.bf16 %v781, %v781
    %v784 = vpack.c.bf16 %v782, %v782
    %v785 = vld [vmem:[#allocation5] sm:$0xff]
    %v786 = vld [vmem:[#allocation5 + $0x8] sm:$0xff]
    %v787 = vld [vmem:[#allocation5 + $0x10] sm:$0xff]
    %v788 = vld [vmem:[#allocation5 + $0x18] sm:$0xff]
    %v789 = vld [vmem:[#allocation5 + $0x20] sm:$0xff]
    %v790 = vld [vmem:[#allocation5 + $0x28] sm:$0xff]
    %v791 = vld [vmem:[#allocation5 + $0x30] sm:$0xff]
    %v792 = vld [vmem:[#allocation5 + $0x38] sm:$0xff]
    %v793 = vld [vmem:[#allocation5 + $0x40] sm:$0xff]
    %v794 = vld [vmem:[#allocation5 + $0x48] sm:$0xff]
    %v795 = vld [vmem:[#allocation5 + $0x50] sm:$0xff]
    %v796 = vld [vmem:[#allocation5 + $0x58] sm:$0xff]
    %v797 = vld [vmem:[#allocation5 + $0x60] sm:$0xff]
    %v798 = vld [vmem:[#allocation5 + $0x68] sm:$0xff]
    %v799 = vld [vmem:[#allocation5 + $0x70] sm:$0xff]
    %v800 = vld [vmem:[#allocation5 + $0x78] sm:$0xff]
    %v801 = vld [vmem:[#allocation5 + $0x80] sm:$0xff]
    %v802 = vld [vmem:[#allocation5 + $0x88] sm:$0xff]
    %v803 = vld [vmem:[#allocation5 + $0x90] sm:$0xff]
    %v804 = vld [vmem:[#allocation5 + $0x98] sm:$0xff]
    %v805 = vld [vmem:[#allocation5 + $0xa0] sm:$0xff]
    %v806 = vld [vmem:[#allocation5 + $0xa8] sm:$0xff]
    %v807 = vld [vmem:[#allocation5 + $0xb0] sm:$0xff]
    %v808 = vld [vmem:[#allocation5 + $0xb8] sm:$0xff]
    %v809 = vld [vmem:[#allocation5 + $0xc0] sm:$0xff]
    %v810 = vld [vmem:[#allocation5 + $0xc8] sm:$0xff]
    %v811 = vld [vmem:[#allocation5 + $0xd0] sm:$0xff]
    %v812 = vld [vmem:[#allocation5 + $0xd8] sm:$0xff]
    %v813 = vld [vmem:[#allocation5 + $0xe0] sm:$0xff]
    %v814 = vld [vmem:[#allocation5 + $0xe8] sm:$0xff]
    %v815 = vld [vmem:[#allocation5 + $0xf0] sm:$0xff]
    %v816 = vld [vmem:[#allocation5 + $0xf8] sm:$0xff]
    %s817 = scalar_lea.vmem %s3, 1
    %v818 = vld [vmem:[%s817] ss:$8 sm:$0x3]
    %v820 = vlaneseq
    %v821 = vshrl.u32 %v820, 7
    %v822 = vsub.s32 0, %v821
    %v823 = vrot.slane %v818, %v822
    %v824 = vlaneseq
    %v825 = vshrl.u32 %v824, 7
    %v826 = vsub.s32 1, %v825
    %v827 = vrot.slane %v818, %v826
    %v862 = vunpack.c.l.b16 %v785
    %v863 = vunpack.c.h.b16 %v785
    %v864 = vunpack.c.l.b16 %v786
    %v865 = vunpack.c.h.b16 %v786
    %v866 = vunpack.c.l.b16 %v787
    %v867 = vunpack.c.h.b16 %v787
    %v868 = vunpack.c.l.b16 %v788
    %v869 = vunpack.c.h.b16 %v788
    %v870 = vunpack.c.l.b16 %v789
    %v871 = vunpack.c.h.b16 %v789
    %v872 = vunpack.c.l.b16 %v790
    %v873 = vunpack.c.h.b16 %v790
    %v874 = vunpack.c.l.b16 %v791
    %v875 = vunpack.c.h.b16 %v791
    %v876 = vunpack.c.l.b16 %v792
    %v877 = vunpack.c.h.b16 %v792
    %v878 = vunpack.c.l.b16 %v793
    %v879 = vunpack.c.h.b16 %v793
    %v880 = vunpack.c.l.b16 %v794
    %v881 = vunpack.c.h.b16 %v794
    %v882 = vunpack.c.l.b16 %v795
    %v883 = vunpack.c.h.b16 %v795
    %v884 = vunpack.c.l.b16 %v796
    %v885 = vunpack.c.h.b16 %v796
    %v886 = vunpack.c.l.b16 %v797
    %v887 = vunpack.c.h.b16 %v797
    %v888 = vunpack.c.l.b16 %v798
    %v889 = vunpack.c.h.b16 %v798
    %v890 = vunpack.c.l.b16 %v799
    %v891 = vunpack.c.h.b16 %v799
    %v892 = vunpack.c.l.b16 %v800
    %v893 = vunpack.c.h.b16 %v800
    %v894 = vunpack.c.l.b16 %v801
    %v895 = vunpack.c.h.b16 %v801
    %v896 = vunpack.c.l.b16 %v802
    %v897 = vunpack.c.h.b16 %v802
    %v898 = vunpack.c.l.b16 %v803
    %v899 = vunpack.c.h.b16 %v803
    %v900 = vunpack.c.l.b16 %v804
    %v901 = vunpack.c.h.b16 %v804
    %v902 = vunpack.c.l.b16 %v805
    %v903 = vunpack.c.h.b16 %v805
    %v904 = vunpack.c.l.b16 %v806
    %v905 = vunpack.c.h.b16 %v806
    %v906 = vunpack.c.l.b16 %v807
    %v907 = vunpack.c.h.b16 %v807
    %v908 = vunpack.c.l.b16 %v808
    %v909 = vunpack.c.h.b16 %v808
    %v910 = vunpack.c.l.b16 %v809
    %v911 = vunpack.c.h.b16 %v809
    %v912 = vunpack.c.l.b16 %v810
    %v913 = vunpack.c.h.b16 %v810
    %v914 = vunpack.c.l.b16 %v811
    %v915 = vunpack.c.h.b16 %v811
    %v916 = vunpack.c.l.b16 %v812
    %v917 = vunpack.c.h.b16 %v812
    %v918 = vunpack.c.l.b16 %v813
    %v919 = vunpack.c.h.b16 %v813
    %v920 = vunpack.c.l.b16 %v814
    %v921 = vunpack.c.h.b16 %v814
    %v922 = vunpack.c.l.b16 %v815
    %v923 = vunpack.c.h.b16 %v815
    %v924 = vunpack.c.l.b16 %v816
    %v925 = vunpack.c.h.b16 %v816
    %v926 = vpack.c.b16 %v864, %v862
    %v927 = vpack.c.b16 %v865, %v863
    %v928 = vpack.c.b16 %v868, %v866
    %v929 = vpack.c.b16 %v869, %v867
    %v930 = vpack.c.b16 %v872, %v870
    %v931 = vpack.c.b16 %v873, %v871
    %v932 = vpack.c.b16 %v876, %v874
    %v933 = vpack.c.b16 %v877, %v875
    %v934 = vpack.c.b16 %v880, %v878
    %v935 = vpack.c.b16 %v881, %v879
    %v936 = vpack.c.b16 %v884, %v882
    %v937 = vpack.c.b16 %v885, %v883
    %v938 = vpack.c.b16 %v888, %v886
    %v939 = vpack.c.b16 %v889, %v887
    %v940 = vpack.c.b16 %v892, %v890
    %v941 = vpack.c.b16 %v893, %v891
    %v942 = vpack.c.b16 %v896, %v894
    %v943 = vpack.c.b16 %v897, %v895
    %v944 = vpack.c.b16 %v900, %v898
    %v945 = vpack.c.b16 %v901, %v899
    %v946 = vpack.c.b16 %v904, %v902
    %v947 = vpack.c.b16 %v905, %v903
    %v948 = vpack.c.b16 %v908, %v906
    %v949 = vpack.c.b16 %v909, %v907
    %v950 = vpack.c.b16 %v912, %v910
    %v951 = vpack.c.b16 %v913, %v911
    %v952 = vpack.c.b16 %v916, %v914
    %v953 = vpack.c.b16 %v917, %v915
    %v954 = vpack.c.b16 %v920, %v918
    %v955 = vpack.c.b16 %v921, %v919
    %v956 = vpack.c.b16 %v924, %v922
    %v957 = vpack.c.b16 %v925, %v923
    %990 = vmatprep.subr.bf16.mxu0 %v927
    %991 = vmatpush1.bf16.msra.mxu0 %v926
    %992 = vmatprep.subr.bf16.mxu0 %v929
    %993 = vmatpush1.bf16.msra.mxu0 %v928
    %994 = vmatprep.subr.bf16.mxu0 %v931
    %995 = vmatpush1.bf16.msra.mxu0 %v930
    %996 = vmatprep.subr.bf16.mxu0 %v933
    %997 = vmatpush1.bf16.msra.mxu0 %v932
    %998 = vmatprep.subr.bf16.mxu0 %v935
    %999 = vmatpush1.bf16.msra.mxu0 %v934
    %1000 = vmatprep.subr.bf16.mxu0 %v937
    %1001 = vmatpush1.bf16.msra.mxu0 %v936
    %1002 = vmatprep.subr.bf16.mxu0 %v939
    %1003 = vmatpush1.bf16.msra.mxu0 %v938
    %1004 = vmatprep.subr.bf16.mxu0 %v941
    %1005 = vmatpush1.bf16.msra.mxu0 %v940
    %1006 = vmatprep.subr.bf16.mxu0 %v943
    %1007 = vmatpush1.bf16.msra.mxu0 %v942
    %1008 = vmatprep.subr.bf16.mxu0 %v945
    %1009 = vmatpush1.bf16.msra.mxu0 %v944
    %1010 = vmatprep.subr.bf16.mxu0 %v947
    %1011 = vmatpush1.bf16.msra.mxu0 %v946
    %1012 = vmatprep.subr.bf16.mxu0 %v949
    %1013 = vmatpush1.bf16.msra.mxu0 %v948
    %1014 = vmatprep.subr.bf16.mxu0 %v951
    %1015 = vmatpush1.bf16.msra.mxu0 %v950
    %1016 = vmatprep.subr.bf16.mxu0 %v953
    %1017 = vmatpush1.bf16.msra.mxu0 %v952
    %1018 = vmatprep.subr.bf16.mxu0 %v955
    %1019 = vmatpush1.bf16.msra.mxu0 %v954
    %1020 = vmatprep.subr.bf16.mxu0 %v957
    %1021 = vmatpush1.bf16.msra.mxu0 %v956
    %1022 = vmatprep.mubr.bf16.mxu0 %v784
    %1023 = vmatmul.mubr.bf16.gmra.mrb[0].mxu0 %v783
    %v1024 = vpop.f32.mrb[0].mxu0
    %v1025 = vadd.f32 %v823, %v1024
    %v1026 = vpop.f32.mrb[0].mxu0
    %v1027 = vadd.f32 %v827, %v1026
    %v1028 = vpop.f32.mrb[0].mxu0
    %v1029 = vpop.f32.mrb[0].mxu0
    %1030 = vdwg.mxu0
    %v1031 = vmax.f32 %v1025, 0.0
    %v1032 = vmax.f32 %v1027, 0.0
    %v1033 = vpack.c.bf16 %v1031, %v1031
    %v1034 = vpack.c.bf16 %v1032, %v1032
    %s1035 = scalar_lea.vmem [#allocation5], 256
    %v1036 = vld [vmem:[%s1035] sm:$0xff]
    %v1037 = vld [vmem:[%s1035 + $0x8] sm:$0xff]
    %v1038 = vld [vmem:[%s1035 + $0x10] sm:$0xff]
    %v1039 = vld [vmem:[%s1035 + $0x18] sm:$0xff]
    %v1040 = vld [vmem:[%s1035 + $0x20] sm:$0xff]
    %v1041 = vld [vmem:[%s1035 + $0x28] sm:$0xff]
    %v1042 = vld [vmem:[%s1035 + $0x30] sm:$0xff]
    %v1043 = vld [vmem:[%s1035 + $0x38] sm:$0xff]
    %v1044 = vld [vmem:[%s1035 + $0x40] sm:$0xff]
    %v1045 = vld [vmem:[%s1035 + $0x48] sm:$0xff]
    %v1046 = vld [vmem:[%s1035 + $0x50] sm:$0xff]
    %v1047 = vld [vmem:[%s1035 + $0x58] sm:$0xff]
    %v1048 = vld [vmem:[%s1035 + $0x60] sm:$0xff]
    %v1049 = vld [vmem:[%s1035 + $0x68] sm:$0xff]
    %v1050 = vld [vmem:[%s1035 + $0x70] sm:$0xff]
    %v1051 = vld [vmem:[%s1035 + $0x78] sm:$0xff]
    %v1052 = vld [vmem:[%s1035 + $0x80] sm:$0xff]
    %v1053 = vld [vmem:[%s1035 + $0x88] sm:$0xff]
    %v1054 = vld [vmem:[%s1035 + $0x90] sm:$0xff]
    %v1055 = vld [vmem:[%s1035 + $0x98] sm:$0xff]
    %v1056 = vld [vmem:[%s1035 + $0xa0] sm:$0xff]
    %v1057 = vld [vmem:[%s1035 + $0xa8] sm:$0xff]
    %v1058 = vld [vmem:[%s1035 + $0xb0] sm:$0xff]
    %v1059 = vld [vmem:[%s1035 + $0xb8] sm:$0xff]
    %v1060 = vld [vmem:[%s1035 + $0xc0] sm:$0xff]
    %v1061 = vld [vmem:[%s1035 + $0xc8] sm:$0xff]
    %v1062 = vld [vmem:[%s1035 + $0xd0] sm:$0xff]
    %v1063 = vld [vmem:[%s1035 + $0xd8] sm:$0xff]
    %v1064 = vld [vmem:[%s1035 + $0xe0] sm:$0xff]
    %v1065 = vld [vmem:[%s1035 + $0xe8] sm:$0xff]
    %v1066 = vld [vmem:[%s1035 + $0xf0] sm:$0xff]
    %v1067 = vld [vmem:[%s1035 + $0xf8] sm:$0xff]
    %s1068 = scalar_lea.vmem %s3, 2
    %v1069 = vld [vmem:[%s1068] ss:$8 sm:$0x3]
    %v1071 = vlaneseq
    %v1072 = vshrl.u32 %v1071, 7
    %v1073 = vsub.s32 0, %v1072
    %v1074 = vrot.slane %v1069, %v1073
    %v1075 = vlaneseq
    %v1076 = vshrl.u32 %v1075, 7
    %v1077 = vsub.s32 1, %v1076
    %v1078 = vrot.slane %v1069, %v1077
    %v1113 = vunpack.c.l.b16 %v1036
    %v1114 = vunpack.c.h.b16 %v1036
    %v1115 = vunpack.c.l.b16 %v1037
    %v1116 = vunpack.c.h.b16 %v1037
    %v1117 = vunpack.c.l.b16 %v1038
    %v1118 = vunpack.c.h.b16 %v1038
    %v1119 = vunpack.c.l.b16 %v1039
    %v1120 = vunpack.c.h.b16 %v1039
    %v1121 = vunpack.c.l.b16 %v1040
    %v1122 = vunpack.c.h.b16 %v1040
    %v1123 = vunpack.c.l.b16 %v1041
    %v1124 = vunpack.c.h.b16 %v1041
    %v1125 = vunpack.c.l.b16 %v1042
    %v1126 = vunpack.c.h.b16 %v1042
    %v1127 = vunpack.c.l.b16 %v1043
    %v1128 = vunpack.c.h.b16 %v1043
    %v1129 = vunpack.c.l.b16 %v1044
    %v1130 = vunpack.c.h.b16 %v1044
    %v1131 = vunpack.c.l.b16 %v1045
    %v1132 = vunpack.c.h.b16 %v1045
    %v1133 = vunpack.c.l.b16 %v1046
    %v1134 = vunpack.c.h.b16 %v1046
    %v1135 = vunpack.c.l.b16 %v1047
    %v1136 = vunpack.c.h.b16 %v1047
    %v1137 = vunpack.c.l.b16 %v1048
    %v1138 = vunpack.c.h.b16 %v1048
    %v1139 = vunpack.c.l.b16 %v1049
    %v1140 = vunpack.c.h.b16 %v1049
    %v1141 = vunpack.c.l.b16 %v1050
    %v1142 = vunpack.c.h.b16 %v1050
    %v1143 = vunpack.c.l.b16 %v1051
    %v1144 = vunpack.c.h.b16 %v1051
    %v1145 = vunpack.c.l.b16 %v1052
    %v1146 = vunpack.c.h.b16 %v1052
    %v1147 = vunpack.c.l.b16 %v1053
    %v1148 = vunpack.c.h.b16 %v1053
    %v1149 = vunpack.c.l.b16 %v1054
    %v1150 = vunpack.c.h.b16 %v1054
    %v1151 = vunpack.c.l.b16 %v1055
    %v1152 = vunpack.c.h.b16 %v1055
    %v1153 = vunpack.c.l.b16 %v1056
    %v1154 = vunpack.c.h.b16 %v1056
    %v1155 = vunpack.c.l.b16 %v1057
    %v1156 = vunpack.c.h.b16 %v1057
    %v1157 = vunpack.c.l.b16 %v1058
    %v1158 = vunpack.c.h.b16 %v1058
    %v1159 = vunpack.c.l.b16 %v1059
    %v1160 = vunpack.c.h.b16 %v1059
    %v1161 = vunpack.c.l.b16 %v1060
    %v1162 = vunpack.c.h.b16 %v1060
    %v1163 = vunpack.c.l.b16 %v1061
    %v1164 = vunpack.c.h.b16 %v1061
    %v1165 = vunpack.c.l.b16 %v1062
    %v1166 = vunpack.c.h.b16 %v1062
    %v1167 = vunpack.c.l.b16 %v1063
    %v1168 = vunpack.c.h.b16 %v1063
    %v1169 = vunpack.c.l.b16 %v1064
    %v1170 = vunpack.c.h.b16 %v1064
    %v1171 = vunpack.c.l.b16 %v1065
    %v1172 = vunpack.c.h.b16 %v1065
    %v1173 = vunpack.c.l.b16 %v1066
    %v1174 = vunpack.c.h.b16 %v1066
    %v1175 = vunpack.c.l.b16 %v1067
    %v1176 = vunpack.c.h.b16 %v1067
    %v1177 = vpack.c.b16 %v1115, %v1113
    %v1178 = vpack.c.b16 %v1116, %v1114
    %v1179 = vpack.c.b16 %v1119, %v1117
    %v1180 = vpack.c.b16 %v1120, %v1118
    %v1181 = vpack.c.b16 %v1123, %v1121
    %v1182 = vpack.c.b16 %v1124, %v1122
    %v1183 = vpack.c.b16 %v1127, %v1125
    %v1184 = vpack.c.b16 %v1128, %v1126
    %v1185 = vpack.c.b16 %v1131, %v1129
    %v1186 = vpack.c.b16 %v1132, %v1130
    %v1187 = vpack.c.b16 %v1135, %v1133
    %v1188 = vpack.c.b16 %v1136, %v1134
    %v1189 = vpack.c.b16 %v1139, %v1137
    %v1190 = vpack.c.b16 %v1140, %v1138
    %v1191 = vpack.c.b16 %v1143, %v1141
    %v1192 = vpack.c.b16 %v1144, %v1142
    %v1193 = vpack.c.b16 %v1147, %v1145
    %v1194 = vpack.c.b16 %v1148, %v1146
    %v1195 = vpack.c.b16 %v1151, %v1149
    %v1196 = vpack.c.b16 %v1152, %v1150
    %v1197 = vpack.c.b16 %v1155, %v1153
    %v1198 = vpack.c.b16 %v1156, %v1154
    %v1199 = vpack.c.b16 %v1159, %v1157
    %v1200 = vpack.c.b16 %v1160, %v1158
    %v1201 = vpack.c.b16 %v1163, %v1161
    %v1202 = vpack.c.b16 %v1164, %v1162
    %v1203 = vpack.c.b16 %v1167, %v1165
    %v1204 = vpack.c.b16 %v1168, %v1166
    %v1205 = vpack.c.b16 %v1171, %v1169
    %v1206 = vpack.c.b16 %v1172, %v1170
    %v1207 = vpack.c.b16 %v1175, %v1173
    %v1208 = vpack.c.b16 %v1176, %v1174
    %1241 = vmatprep.subr.bf16.mxu0 %v1178
    %1242 = vmatpush1.bf16.msra.mxu0 %v1177
    %1243 = vmatprep.subr.bf16.mxu0 %v1180
    %1244 = vmatpush1.bf16.msra.mxu0 %v1179
    %1245 = vmatprep.subr.bf16.mxu0 %v1182
    %1246 = vmatpush1.bf16.msra.mxu0 %v1181
    %1247 = vmatprep.subr.bf16.mxu0 %v1184
    %1248 = vmatpush1.bf16.msra.mxu0 %v1183
    %1249 = vmatprep.subr.bf16.mxu0 %v1186
    %1250 = vmatpush1.bf16.msra.mxu0 %v1185
    %1251 = vmatprep.subr.bf16.mxu0 %v1188
    %1252 = vmatpush1.bf16.msra.mxu0 %v1187
    %1253 = vmatprep.subr.bf16.mxu0 %v1190
    %1254 = vmatpush1.bf16.msra.mxu0 %v1189
    %1255 = vmatprep.subr.bf16.mxu0 %v1192
    %1256 = vmatpush1.bf16.msra.mxu0 %v1191
    %1257 = vmatprep.subr.bf16.mxu0 %v1194
    %1258 = vmatpush1.bf16.msra.mxu0 %v1193
    %1259 = vmatprep.subr.bf16.mxu0 %v1196
    %1260 = vmatpush1.bf16.msra.mxu0 %v1195
    %1261 = vmatprep.subr.bf16.mxu0 %v1198
    %1262 = vmatpush1.bf16.msra.mxu0 %v1197
    %1263 = vmatprep.subr.bf16.mxu0 %v1200
    %1264 = vmatpush1.bf16.msra.mxu0 %v1199
    %1265 = vmatprep.subr.bf16.mxu0 %v1202
    %1266 = vmatpush1.bf16.msra.mxu0 %v1201
    %1267 = vmatprep.subr.bf16.mxu0 %v1204
    %1268 = vmatpush1.bf16.msra.mxu0 %v1203
    %1269 = vmatprep.subr.bf16.mxu0 %v1206
    %1270 = vmatpush1.bf16.msra.mxu0 %v1205
    %1271 = vmatprep.subr.bf16.mxu0 %v1208
    %1272 = vmatpush1.bf16.msra.mxu0 %v1207
    %1273 = vmatprep.mubr.bf16.mxu0 %v1034
    %1274 = vmatmul.mubr.bf16.gmra.mrb[0].mxu0 %v1033
    %v1275 = vpop.f32.mrb[0].mxu0
    %v1276 = vadd.f32 %v1074, %v1275
    %v1277 = vpop.f32.mrb[0].mxu0
    %v1278 = vadd.f32 %v1078, %v1277
    %v1279 = vpop.f32.mrb[0].mxu0
    %v1280 = vpop.f32.mrb[0].mxu0
    %1281 = vdwg.mxu0
    %v1282 = vmax.f32 %v1276, 0.0
    %v1283 = vmax.f32 %v1278, 0.0
    %v1284 = vpack.c.bf16 %v1282, %v1282
    %v1285 = vpack.c.bf16 %v1283, %v1283
    %s1286 = scalar_lea.vmem [#allocation5], 512
    %v1287 = vld [vmem:[%s1286] sm:$0xff]
    %v1288 = vld [vmem:[%s1286 + $0x8] sm:$0xff]
    %v1289 = vld [vmem:[%s1286 + $0x10] sm:$0xff]
    %v1290 = vld [vmem:[%s1286 + $0x18] sm:$0xff]
    %v1291 = vld [vmem:[%s1286 + $0x20] sm:$0xff]
    %v1292 = vld [vmem:[%s1286 + $0x28] sm:$0xff]
    %v1293 = vld [vmem:[%s1286 + $0x30] sm:$0xff]
    %v1294 = vld [vmem:[%s1286 + $0x38] sm:$0xff]
    %v1295 = vld [vmem:[%s1286 + $0x40] sm:$0xff]
    %v1296 = vld [vmem:[%s1286 + $0x48] sm:$0xff]
    %v1297 = vld [vmem:[%s1286 + $0x50] sm:$0xff]
    %v1298 = vld [vmem:[%s1286 + $0x58] sm:$0xff]
    %v1299 = vld [vmem:[%s1286 + $0x60] sm:$0xff]
    %v1300 = vld [vmem:[%s1286 + $0x68] sm:$0xff]
    %v1301 = vld [vmem:[%s1286 + $0x70] sm:$0xff]
    %v1302 = vld [vmem:[%s1286 + $0x78] sm:$0xff]
    %v1303 = vld [vmem:[%s1286 + $0x80] sm:$0xff]
    %v1304 = vld [vmem:[%s1286 + $0x88] sm:$0xff]
    %v1305 = vld [vmem:[%s1286 + $0x90] sm:$0xff]
    %v1306 = vld [vmem:[%s1286 + $0x98] sm:$0xff]
    %v1307 = vld [vmem:[%s1286 + $0xa0] sm:$0xff]
    %v1308 = vld [vmem:[%s1286 + $0xa8] sm:$0xff]
    %v1309 = vld [vmem:[%s1286 + $0xb0] sm:$0xff]
    %v1310 = vld [vmem:[%s1286 + $0xb8] sm:$0xff]
    %v1311 = vld [vmem:[%s1286 + $0xc0] sm:$0xff]
    %v1312 = vld [vmem:[%s1286 + $0xc8] sm:$0xff]
    %v1313 = vld [vmem:[%s1286 + $0xd0] sm:$0xff]
    %v1314 = vld [vmem:[%s1286 + $0xd8] sm:$0xff]
    %v1315 = vld [vmem:[%s1286 + $0xe0] sm:$0xff]
    %v1316 = vld [vmem:[%s1286 + $0xe8] sm:$0xff]
    %v1317 = vld [vmem:[%s1286 + $0xf0] sm:$0xff]
    %v1318 = vld [vmem:[%s1286 + $0xf8] sm:$0xff]
    %s1319 = scalar_lea.vmem %s3, 3
    %v1320 = vld [vmem:[%s1319] ss:$8 sm:$0x3]
    %v1322 = vlaneseq
    %v1323 = vshrl.u32 %v1322, 7
    %v1324 = vsub.s32 0, %v1323
    %v1325 = vrot.slane %v1320, %v1324
    %v1326 = vlaneseq
    %v1327 = vshrl.u32 %v1326, 7
    %v1328 = vsub.s32 1, %v1327
    %v1329 = vrot.slane %v1320, %v1328
    %v1364 = vunpack.c.l.b16 %v1287
    %v1365 = vunpack.c.h.b16 %v1287
    %v1366 = vunpack.c.l.b16 %v1288
    %v1367 = vunpack.c.h.b16 %v1288
    %v1368 = vunpack.c.l.b16 %v1289
    %v1369 = vunpack.c.h.b16 %v1289
    %v1370 = vunpack.c.l.b16 %v1290
    %v1371 = vunpack.c.h.b16 %v1290
    %v1372 = vunpack.c.l.b16 %v1291
    %v1373 = vunpack.c.h.b16 %v1291
    %v1374 = vunpack.c.l.b16 %v1292
    %v1375 = vunpack.c.h.b16 %v1292
    %v1376 = vunpack.c.l.b16 %v1293
    %v1377 = vunpack.c.h.b16 %v1293
    %v1378 = vunpack.c.l.b16 %v1294
    %v1379 = vunpack.c.h.b16 %v1294
    %v1380 = vunpack.c.l.b16 %v1295
    %v1381 = vunpack.c.h.b16 %v1295
    %v1382 = vunpack.c.l.b16 %v1296
    %v1383 = vunpack.c.h.b16 %v1296
    %v1384 = vunpack.c.l.b16 %v1297
    %v1385 = vunpack.c.h.b16 %v1297
    %v1386 = vunpack.c.l.b16 %v1298
    %v1387 = vunpack.c.h.b16 %v1298
    %v1388 = vunpack.c.l.b16 %v1299
    %v1389 = vunpack.c.h.b16 %v1299
    %v1390 = vunpack.c.l.b16 %v1300
    %v1391 = vunpack.c.h.b16 %v1300
    %v1392 = vunpack.c.l.b16 %v1301
    %v1393 = vunpack.c.h.b16 %v1301
    %v1394 = vunpack.c.l.b16 %v1302
    %v1395 = vunpack.c.h.b16 %v1302
    %v1396 = vunpack.c.l.b16 %v1303
    %v1397 = vunpack.c.h.b16 %v1303
    %v1398 = vunpack.c.l.b16 %v1304
    %v1399 = vunpack.c.h.b16 %v1304
    %v1400 = vunpack.c.l.b16 %v1305
    %v1401 = vunpack.c.h.b16 %v1305
    %v1402 = vunpack.c.l.b16 %v1306
    %v1403 = vunpack.c.h.b16 %v1306
    %v1404 = vunpack.c.l.b16 %v1307
    %v1405 = vunpack.c.h.b16 %v1307
    %v1406 = vunpack.c.l.b16 %v1308
    %v1407 = vunpack.c.h.b16 %v1308
    %v1408 = vunpack.c.l.b16 %v1309
    %v1409 = vunpack.c.h.b16 %v1309
    %v1410 = vunpack.c.l.b16 %v1310
    %v1411 = vunpack.c.h.b16 %v1310
    %v1412 = vunpack.c.l.b16 %v1311
    %v1413 = vunpack.c.h.b16 %v1311
    %v1414 = vunpack.c.l.b16 %v1312
    %v1415 = vunpack.c.h.b16 %v1312
    %v1416 = vunpack.c.l.b16 %v1313
    %v1417 = vunpack.c.h.b16 %v1313
    %v1418 = vunpack.c.l.b16 %v1314
    %v1419 = vunpack.c.h.b16 %v1314
    %v1420 = vunpack.c.l.b16 %v1315
    %v1421 = vunpack.c.h.b16 %v1315
    %v1422 = vunpack.c.l.b16 %v1316
    %v1423 = vunpack.c.h.b16 %v1316
    %v1424 = vunpack.c.l.b16 %v1317
    %v1425 = vunpack.c.h.b16 %v1317
    %v1426 = vunpack.c.l.b16 %v1318
    %v1427 = vunpack.c.h.b16 %v1318
    %v1428 = vpack.c.b16 %v1366, %v1364
    %v1429 = vpack.c.b16 %v1367, %v1365
    %v1430 = vpack.c.b16 %v1370, %v1368
    %v1431 = vpack.c.b16 %v1371, %v1369
    %v1432 = vpack.c.b16 %v1374, %v1372
    %v1433 = vpack.c.b16 %v1375, %v1373
    %v1434 = vpack.c.b16 %v1378, %v1376
    %v1435 = vpack.c.b16 %v1379, %v1377
    %v1436 = vpack.c.b16 %v1382, %v1380
    %v1437 = vpack.c.b16 %v1383, %v1381
    %v1438 = vpack.c.b16 %v1386, %v1384
    %v1439 = vpack.c.b16 %v1387, %v1385
    %v1440 = vpack.c.b16 %v1390, %v1388
    %v1441 = vpack.c.b16 %v1391, %v1389
    %v1442 = vpack.c.b16 %v1394, %v1392
    %v1443 = vpack.c.b16 %v1395, %v1393
    %v1444 = vpack.c.b16 %v1398, %v1396
    %v1445 = vpack.c.b16 %v1399, %v1397
    %v1446 = vpack.c.b16 %v1402, %v1400
    %v1447 = vpack.c.b16 %v1403, %v1401
    %v1448 = vpack.c.b16 %v1406, %v1404
    %v1449 = vpack.c.b16 %v1407, %v1405
    %v1450 = vpack.c.b16 %v1410, %v1408
    %v1451 = vpack.c.b16 %v1411, %v1409
    %v1452 = vpack.c.b16 %v1414, %v1412
    %v1453 = vpack.c.b16 %v1415, %v1413
    %v1454 = vpack.c.b16 %v1418, %v1416
    %v1455 = vpack.c.b16 %v1419, %v1417
    %v1456 = vpack.c.b16 %v1422, %v1420
    %v1457 = vpack.c.b16 %v1423, %v1421
    %v1458 = vpack.c.b16 %v1426, %v1424
    %v1459 = vpack.c.b16 %v1427, %v1425
    %1492 = vmatprep.subr.bf16.mxu0 %v1429
    %1493 = vmatpush1.bf16.msra.mxu0 %v1428
    %1494 = vmatprep.subr.bf16.mxu0 %v1431
    %1495 = vmatpush1.bf16.msra.mxu0 %v1430
    %1496 = vmatprep.subr.bf16.mxu0 %v1433
    %1497 = vmatpush1.bf16.msra.mxu0 %v1432
    %1498 = vmatprep.subr.bf16.mxu0 %v1435
    %1499 = vmatpush1.bf16.msra.mxu0 %v1434
    %1500 = vmatprep.subr.bf16.mxu0 %v1437
    %1501 = vmatpush1.bf16.msra.mxu0 %v1436
    %1502 = vmatprep.subr.bf16.mxu0 %v1439
    %1503 = vmatpush1.bf16.msra.mxu0 %v1438
    %1504 = vmatprep.subr.bf16.mxu0 %v1441
    %1505 = vmatpush1.bf16.msra.mxu0 %v1440
    %1506 = vmatprep.subr.bf16.mxu0 %v1443
    %1507 = vmatpush1.bf16.msra.mxu0 %v1442
    %1508 = vmatprep.subr.bf16.mxu0 %v1445
    %1509 = vmatpush1.bf16.msra.mxu0 %v1444
    %1510 = vmatprep.subr.bf16.mxu0 %v1447
    %1511 = vmatpush1.bf16.msra.mxu0 %v1446
    %1512 = vmatprep.subr.bf16.mxu0 %v1449
    %1513 = vmatpush1.bf16.msra.mxu0 %v1448
    %1514 = vmatprep.subr.bf16.mxu0 %v1451
    %1515 = vmatpush1.bf16.msra.mxu0 %v1450
    %1516 = vmatprep.subr.bf16.mxu0 %v1453
    %1517 = vmatpush1.bf16.msra.mxu0 %v1452
    %1518 = vmatprep.subr.bf16.mxu0 %v1455
    %1519 = vmatpush1.bf16.msra.mxu0 %v1454
    %1520 = vmatprep.subr.bf16.mxu0 %v1457
    %1521 = vmatpush1.bf16.msra.mxu0 %v1456
    %1522 = vmatprep.subr.bf16.mxu0 %v1459
    %1523 = vmatpush1.bf16.msra.mxu0 %v1458
    %1524 = vmatprep.mubr.bf16.mxu0 %v1285
    %1525 = vmatmul.mubr.bf16.gmra.mrb[0].mxu0 %v1284
    %v1526 = vpop.f32.mrb[0].mxu0
    %v1527 = vadd.f32 %v1325, %v1526
    %v1528 = vpop.f32.mrb[0].mxu0
    %v1529 = vadd.f32 %v1329, %v1528
    %v1530 = vpop.f32.mrb[0].mxu0
    %v1531 = vpop.f32.mrb[0].mxu0
    %1532 = vdwg.mxu0
    %v1533 = vmax.f32 %v1527, 0.0
    %v1534 = vmax.f32 %v1529, 0.0
    %v1535 = vpack.c.bf16 %v1533, %v1533
    %v1536 = vpack.c.bf16 %v1534, %v1534
    %s1537 = scalar_lea.vmem [#allocation5], 768
    %v1538 = vld [vmem:[%s1537] sm:$0xff]
    %v1539 = vld [vmem:[%s1537 + $0x8] sm:$0xff]
    %v1540 = vld [vmem:[%s1537 + $0x10] sm:$0xff]
    %v1541 = vld [vmem:[%s1537 + $0x18] sm:$0xff]
    %v1542 = vld [vmem:[%s1537 + $0x20] sm:$0xff]
    %v1543 = vld [vmem:[%s1537 + $0x28] sm:$0xff]
    %v1544 = vld [vmem:[%s1537 + $0x30] sm:$0xff]
    %v1545 = vld [vmem:[%s1537 + $0x38] sm:$0xff]
    %v1546 = vld [vmem:[%s1537 + $0x40] sm:$0xff]
    %v1547 = vld [vmem:[%s1537 + $0x48] sm:$0xff]
    %v1548 = vld [vmem:[%s1537 + $0x50] sm:$0xff]
    %v1549 = vld [vmem:[%s1537 + $0x58] sm:$0xff]
    %v1550 = vld [vmem:[%s1537 + $0x60] sm:$0xff]
    %v1551 = vld [vmem:[%s1537 + $0x68] sm:$0xff]
    %v1552 = vld [vmem:[%s1537 + $0x70] sm:$0xff]
    %v1553 = vld [vmem:[%s1537 + $0x78] sm:$0xff]
    %v1554 = vld [vmem:[%s1537 + $0x80] sm:$0xff]
    %v1555 = vld [vmem:[%s1537 + $0x88] sm:$0xff]
    %v1556 = vld [vmem:[%s1537 + $0x90] sm:$0xff]
    %v1557 = vld [vmem:[%s1537 + $0x98] sm:$0xff]
    %v1558 = vld [vmem:[%s1537 + $0xa0] sm:$0xff]
    %v1559 = vld [vmem:[%s1537 + $0xa8] sm:$0xff]
    %v1560 = vld [vmem:[%s1537 + $0xb0] sm:$0xff]
    %v1561 = vld [vmem:[%s1537 + $0xb8] sm:$0xff]
    %v1562 = vld [vmem:[%s1537 + $0xc0] sm:$0xff]
    %v1563 = vld [vmem:[%s1537 + $0xc8] sm:$0xff]
    %v1564 = vld [vmem:[%s1537 + $0xd0] sm:$0xff]
    %v1565 = vld [vmem:[%s1537 + $0xd8] sm:$0xff]
    %v1566 = vld [vmem:[%s1537 + $0xe0] sm:$0xff]
    %v1567 = vld [vmem:[%s1537 + $0xe8] sm:$0xff]
    %v1568 = vld [vmem:[%s1537 + $0xf0] sm:$0xff]
    %v1569 = vld [vmem:[%s1537 + $0xf8] sm:$0xff]
    %s1570 = scalar_lea.vmem %s3, 4
    %v1571 = vld [vmem:[%s1570] ss:$8 sm:$0x3]
    %v1573 = vlaneseq
    %v1574 = vshrl.u32 %v1573, 7
    %v1575 = vsub.s32 0, %v1574
    %v1576 = vrot.slane %v1571, %v1575
    %v1577 = vlaneseq
    %v1578 = vshrl.u32 %v1577, 7
    %v1579 = vsub.s32 1, %v1578
    %v1580 = vrot.slane %v1571, %v1579
    %v1615 = vunpack.c.l.b16 %v1538
    %v1616 = vunpack.c.h.b16 %v1538
    %v1617 = vunpack.c.l.b16 %v1539
    %v1618 = vunpack.c.h.b16 %v1539
    %v1619 = vunpack.c.l.b16 %v1540
    %v1620 = vunpack.c.h.b16 %v1540
    %v1621 = vunpack.c.l.b16 %v1541
    %v1622 = vunpack.c.h.b16 %v1541
    %v1623 = vunpack.c.l.b16 %v1542
    %v1624 = vunpack.c.h.b16 %v1542
    %v1625 = vunpack.c.l.b16 %v1543
    %v1626 = vunpack.c.h.b16 %v1543
    %v1627 = vunpack.c.l.b16 %v1544
    %v1628 = vunpack.c.h.b16 %v1544
    %v1629 = vunpack.c.l.b16 %v1545
    %v1630 = vunpack.c.h.b16 %v1545
    %v1631 = vunpack.c.l.b16 %v1546
    %v1632 = vunpack.c.h.b16 %v1546
    %v1633 = vunpack.c.l.b16 %v1547
    %v1634 = vunpack.c.h.b16 %v1547
    %v1635 = vunpack.c.l.b16 %v1548
    %v1636 = vunpack.c.h.b16 %v1548
    %v1637 = vunpack.c.l.b16 %v1549
    %v1638 = vunpack.c.h.b16 %v1549
    %v1639 = vunpack.c.l.b16 %v1550
    %v1640 = vunpack.c.h.b16 %v1550
    %v1641 = vunpack.c.l.b16 %v1551
    %v1642 = vunpack.c.h.b16 %v1551
    %v1643 = vunpack.c.l.b16 %v1552
    %v1644 = vunpack.c.h.b16 %v1552
    %v1645 = vunpack.c.l.b16 %v1553
    %v1646 = vunpack.c.h.b16 %v1553
    %v1647 = vunpack.c.l.b16 %v1554
    %v1648 = vunpack.c.h.b16 %v1554
    %v1649 = vunpack.c.l.b16 %v1555
    %v1650 = vunpack.c.h.b16 %v1555
    %v1651 = vunpack.c.l.b16 %v1556
    %v1652 = vunpack.c.h.b16 %v1556
    %v1653 = vunpack.c.l.b16 %v1557
    %v1654 = vunpack.c.h.b16 %v1557
    %v1655 = vunpack.c.l.b16 %v1558
    %v1656 = vunpack.c.h.b16 %v1558
    %v1657 = vunpack.c.l.b16 %v1559
    %v1658 = vunpack.c.h.b16 %v1559
    %v1659 = vunpack.c.l.b16 %v1560
    %v1660 = vunpack.c.h.b16 %v1560
    %v1661 = vunpack.c.l.b16 %v1561
    %v1662 = vunpack.c.h.b16 %v1561
    %v1663 = vunpack.c.l.b16 %v1562
    %v1664 = vunpack.c.h.b16 %v1562
    %v1665 = vunpack.c.l.b16 %v1563
    %v1666 = vunpack.c.h.b16 %v1563
    %v1667 = vunpack.c.l.b16 %v1564
    %v1668 = vunpack.c.h.b16 %v1564
    %v1669 = vunpack.c.l.b16 %v1565
    %v1670 = vunpack.c.h.b16 %v1565
    %v1671 = vunpack.c.l.b16 %v1566
    %v1672 = vunpack.c.h.b16 %v1566
    %v1673 = vunpack.c.l.b16 %v1567
    %v1674 = vunpack.c.h.b16 %v1567
    %v1675 = vunpack.c.l.b16 %v1568
    %v1676 = vunpack.c.h.b16 %v1568
    %v1677 = vunpack.c.l.b16 %v1569
    %v1678 = vunpack.c.h.b16 %v1569
    %v1679 = vpack.c.b16 %v1617, %v1615
    %v1680 = vpack.c.b16 %v1618, %v1616
    %v1681 = vpack.c.b16 %v1621, %v1619
    %v1682 = vpack.c.b16 %v1622, %v1620
    %v1683 = vpack.c.b16 %v1625, %v1623
    %v1684 = vpack.c.b16 %v1626, %v1624
    %v1685 = vpack.c.b16 %v1629, %v1627
    %v1686 = vpack.c.b16 %v1630, %v1628
    %v1687 = vpack.c.b16 %v1633, %v1631
    %v1688 = vpack.c.b16 %v1634, %v1632
    %v1689 = vpack.c.b16 %v1637, %v1635
    %v1690 = vpack.c.b16 %v1638, %v1636
    %v1691 = vpack.c.b16 %v1641, %v1639
    %v1692 = vpack.c.b16 %v1642, %v1640
    %v1693 = vpack.c.b16 %v1645, %v1643
    %v1694 = vpack.c.b16 %v1646, %v1644
    %v1695 = vpack.c.b16 %v1649, %v1647
    %v1696 = vpack.c.b16 %v1650, %v1648
    %v1697 = vpack.c.b16 %v1653, %v1651
    %v1698 = vpack.c.b16 %v1654, %v1652
    %v1699 = vpack.c.b16 %v1657, %v1655
    %v1700 = vpack.c.b16 %v1658, %v1656
    %v1701 = vpack.c.b16 %v1661, %v1659
    %v1702 = vpack.c.b16 %v1662, %v1660
    %v1703 = vpack.c.b16 %v1665, %v1663
    %v1704 = vpack.c.b16 %v1666, %v1664
    %v1705 = vpack.c.b16 %v1669, %v1667
    %v1706 = vpack.c.b16 %v1670, %v1668
    %v1707 = vpack.c.b16 %v1673, %v1671
    %v1708 = vpack.c.b16 %v1674, %v1672
    %v1709 = vpack.c.b16 %v1677, %v1675
    %v1710 = vpack.c.b16 %v1678, %v1676
    %1743 = vmatprep.subr.bf16.mxu0 %v1680
    %1744 = vmatpush1.bf16.msra.mxu0 %v1679
    %1745 = vmatprep.subr.bf16.mxu0 %v1682
    %1746 = vmatpush1.bf16.msra.mxu0 %v1681
    %1747 = vmatprep.subr.bf16.mxu0 %v1684
    %1748 = vmatpush1.bf16.msra.mxu0 %v1683
    %1749 = vmatprep.subr.bf16.mxu0 %v1686
    %1750 = vmatpush1.bf16.msra.mxu0 %v1685
    %1751 = vmatprep.subr.bf16.mxu0 %v1688
    %1752 = vmatpush1.bf16.msra.mxu0 %v1687
    %1753 = vmatprep.subr.bf16.mxu0 %v1690
    %1754 = vmatpush1.bf16.msra.mxu0 %v1689
    %1755 = vmatprep.subr.bf16.mxu0 %v1692
    %1756 = vmatpush1.bf16.msra.mxu0 %v1691
    %1757 = vmatprep.subr.bf16.mxu0 %v1694
    %1758 = vmatpush1.bf16.msra.mxu0 %v1693
    %1759 = vmatprep.subr.bf16.mxu0 %v1696
    %1760 = vmatpush1.bf16.msra.mxu0 %v1695
    %1761 = vmatprep.subr.bf16.mxu0 %v1698
    %1762 = vmatpush1.bf16.msra.mxu0 %v1697
    %1763 = vmatprep.subr.bf16.mxu0 %v1700
    %1764 = vmatpush1.bf16.msra.mxu0 %v1699
    %1765 = vmatprep.subr.bf16.mxu0 %v1702
    %1766 = vmatpush1.bf16.msra.mxu0 %v1701
    %1767 = vmatprep.subr.bf16.mxu0 %v1704
    %1768 = vmatpush1.bf16.msra.mxu0 %v1703
    %1769 = vmatprep.subr.bf16.mxu0 %v1706
    %1770 = vmatpush1.bf16.msra.mxu0 %v1705
    %1771 = vmatprep.subr.bf16.mxu0 %v1708
    %1772 = vmatpush1.bf16.msra.mxu0 %v1707
    %1773 = vmatprep.subr.bf16.mxu0 %v1710
    %1774 = vmatpush1.bf16.msra.mxu0 %v1709
    %1775 = vmatprep.mubr.bf16.mxu0 %v1536
    %1776 = vmatmul.mubr.bf16.gmra.mrb[0].mxu0 %v1535
    %v1777 = vpop.f32.mrb[0].mxu0
    %v1778 = vadd.f32 %v1576, %v1777
    %v1779 = vpop.f32.mrb[0].mxu0
    %v1780 = vadd.f32 %v1580, %v1779
    %v1781 = vpop.f32.mrb[0].mxu0
    %v1782 = vpop.f32.mrb[0].mxu0
    %1783 = vdwg.mxu0
    %v1784 = vmax.f32 %v1778, 0.0
    %v1785 = vmax.f32 %v1780, 0.0
    %v1786 = vpack.c.bf16 %v1784, %v1784
    %v1787 = vpack.c.bf16 %v1785, %v1785
    %s1788 = scalar_lea.vmem [#allocation5], 1024
    %v1789 = vld [vmem:[%s1788] sm:$0xff]
    %v1790 = vld [vmem:[%s1788 + $0x8] sm:$0xff]
    %v1791 = vld [vmem:[%s1788 + $0x10] sm:$0xff]
    %v1792 = vld [vmem:[%s1788 + $0x18] sm:$0xff]
    %v1793 = vld [vmem:[%s1788 + $0x20] sm:$0xff]
    %v1794 = vld [vmem:[%s1788 + $0x28] sm:$0xff]
    %v1795 = vld [vmem:[%s1788 + $0x30] sm:$0xff]
    %v1796 = vld [vmem:[%s1788 + $0x38] sm:$0xff]
    %v1797 = vld [vmem:[%s1788 + $0x40] sm:$0xff]
    %v1798 = vld [vmem:[%s1788 + $0x48] sm:$0xff]
    %v1799 = vld [vmem:[%s1788 + $0x50] sm:$0xff]
    %v1800 = vld [vmem:[%s1788 + $0x58] sm:$0xff]
    %v1801 = vld [vmem:[%s1788 + $0x60] sm:$0xff]
    %v1802 = vld [vmem:[%s1788 + $0x68] sm:$0xff]
    %v1803 = vld [vmem:[%s1788 + $0x70] sm:$0xff]
    %v1804 = vld [vmem:[%s1788 + $0x78] sm:$0xff]
    %v1805 = vld [vmem:[%s1788 + $0x80] sm:$0xff]
    %v1806 = vld [vmem:[%s1788 + $0x88] sm:$0xff]
    %v1807 = vld [vmem:[%s1788 + $0x90] sm:$0xff]
    %v1808 = vld [vmem:[%s1788 + $0x98] sm:$0xff]
    %v1809 = vld [vmem:[%s1788 + $0xa0] sm:$0xff]
    %v1810 = vld [vmem:[%s1788 + $0xa8] sm:$0xff]
    %v1811 = vld [vmem:[%s1788 + $0xb0] sm:$0xff]
    %v1812 = vld [vmem:[%s1788 + $0xb8] sm:$0xff]
    %v1813 = vld [vmem:[%s1788 + $0xc0] sm:$0xff]
    %v1814 = vld [vmem:[%s1788 + $0xc8] sm:$0xff]
    %v1815 = vld [vmem:[%s1788 + $0xd0] sm:$0xff]
    %v1816 = vld [vmem:[%s1788 + $0xd8] sm:$0xff]
    %v1817 = vld [vmem:[%s1788 + $0xe0] sm:$0xff]
    %v1818 = vld [vmem:[%s1788 + $0xe8] sm:$0xff]
    %v1819 = vld [vmem:[%s1788 + $0xf0] sm:$0xff]
    %v1820 = vld [vmem:[%s1788 + $0xf8] sm:$0xff]
    %s1821 = scalar_lea.vmem %s3, 5
    %v1822 = vld [vmem:[%s1821] ss:$8 sm:$0x3]
    %v1824 = vlaneseq
    %v1825 = vshrl.u32 %v1824, 7
    %v1826 = vsub.s32 0, %v1825
    %v1827 = vrot.slane %v1822, %v1826
    %v1828 = vlaneseq
    %v1829 = vshrl.u32 %v1828, 7
    %v1830 = vsub.s32 1, %v1829
    %v1831 = vrot.slane %v1822, %v1830
    %v1866 = vunpack.c.l.b16 %v1789
    %v1867 = vunpack.c.h.b16 %v1789
    %v1868 = vunpack.c.l.b16 %v1790
    %v1869 = vunpack.c.h.b16 %v1790
    %v1870 = vunpack.c.l.b16 %v1791
    %v1871 = vunpack.c.h.b16 %v1791
    %v1872 = vunpack.c.l.b16 %v1792
    %v1873 = vunpack.c.h.b16 %v1792
    %v1874 = vunpack.c.l.b16 %v1793
    %v1875 = vunpack.c.h.b16 %v1793
    %v1876 = vunpack.c.l.b16 %v1794
    %v1877 = vunpack.c.h.b16 %v1794
    %v1878 = vunpack.c.l.b16 %v1795
    %v1879 = vunpack.c.h.b16 %v1795
    %v1880 = vunpack.c.l.b16 %v1796
    %v1881 = vunpack.c.h.b16 %v1796
    %v1882 = vunpack.c.l.b16 %v1797
    %v1883 = vunpack.c.h.b16 %v1797
    %v1884 = vunpack.c.l.b16 %v1798
    %v1885 = vunpack.c.h.b16 %v1798
    %v1886 = vunpack.c.l.b16 %v1799
    %v1887 = vunpack.c.h.b16 %v1799
    %v1888 = vunpack.c.l.b16 %v1800
    %v1889 = vunpack.c.h.b16 %v1800
    %v1890 = vunpack.c.l.b16 %v1801
    %v1891 = vunpack.c.h.b16 %v1801
    %v1892 = vunpack.c.l.b16 %v1802
    %v1893 = vunpack.c.h.b16 %v1802
    %v1894 = vunpack.c.l.b16 %v1803
    %v1895 = vunpack.c.h.b16 %v1803
    %v1896 = vunpack.c.l.b16 %v1804
    %v1897 = vunpack.c.h.b16 %v1804
    %v1898 = vunpack.c.l.b16 %v1805
    %v1899 = vunpack.c.h.b16 %v1805
    %v1900 = vunpack.c.l.b16 %v1806
    %v1901 = vunpack.c.h.b16 %v1806
    %v1902 = vunpack.c.l.b16 %v1807
    %v1903 = vunpack.c.h.b16 %v1807
    %v1904 = vunpack.c.l.b16 %v1808
    %v1905 = vunpack.c.h.b16 %v1808
    %v1906 = vunpack.c.l.b16 %v1809
    %v1907 = vunpack.c.h.b16 %v1809
    %v1908 = vunpack.c.l.b16 %v1810
    %v1909 = vunpack.c.h.b16 %v1810
    %v1910 = vunpack.c.l.b16 %v1811
    %v1911 = vunpack.c.h.b16 %v1811
    %v1912 = vunpack.c.l.b16 %v1812
    %v1913 = vunpack.c.h.b16 %v1812
    %v1914 = vunpack.c.l.b16 %v1813
    %v1915 = vunpack.c.h.b16 %v1813
    %v1916 = vunpack.c.l.b16 %v1814
    %v1917 = vunpack.c.h.b16 %v1814
    %v1918 = vunpack.c.l.b16 %v1815
    %v1919 = vunpack.c.h.b16 %v1815
    %v1920 = vunpack.c.l.b16 %v1816
    %v1921 = vunpack.c.h.b16 %v1816
    %v1922 = vunpack.c.l.b16 %v1817
    %v1923 = vunpack.c.h.b16 %v1817
    %v1924 = vunpack.c.l.b16 %v1818
    %v1925 = vunpack.c.h.b16 %v1818
    %v1926 = vunpack.c.l.b16 %v1819
    %v1927 = vunpack.c.h.b16 %v1819
    %v1928 = vunpack.c.l.b16 %v1820
    %v1929 = vunpack.c.h.b16 %v1820
    %v1930 = vpack.c.b16 %v1868, %v1866
    %v1931 = vpack.c.b16 %v1869, %v1867
    %v1932 = vpack.c.b16 %v1872, %v1870
    %v1933 = vpack.c.b16 %v1873, %v1871
    %v1934 = vpack.c.b16 %v1876, %v1874
    %v1935 = vpack.c.b16 %v1877, %v1875
    %v1936 = vpack.c.b16 %v1880, %v1878
    %v1937 = vpack.c.b16 %v1881, %v1879
    %v1938 = vpack.c.b16 %v1884, %v1882
    %v1939 = vpack.c.b16 %v1885, %v1883
    %v1940 = vpack.c.b16 %v1888, %v1886
    %v1941 = vpack.c.b16 %v1889, %v1887
    %v1942 = vpack.c.b16 %v1892, %v1890
    %v1943 = vpack.c.b16 %v1893, %v1891
    %v1944 = vpack.c.b16 %v1896, %v1894
    %v1945 = vpack.c.b16 %v1897, %v1895
    %v1946 = vpack.c.b16 %v1900, %v1898
    %v1947 = vpack.c.b16 %v1901, %v1899
    %v1948 = vpack.c.b16 %v1904, %v1902
    %v1949 = vpack.c.b16 %v1905, %v1903
    %v1950 = vpack.c.b16 %v1908, %v1906
    %v1951 = vpack.c.b16 %v1909, %v1907
    %v1952 = vpack.c.b16 %v1912, %v1910
    %v1953 = vpack.c.b16 %v1913, %v1911
    %v1954 = vpack.c.b16 %v1916, %v1914
    %v1955 = vpack.c.b16 %v1917, %v1915
    %v1956 = vpack.c.b16 %v1920, %v1918
    %v1957 = vpack.c.b16 %v1921, %v1919
    %v1958 = vpack.c.b16 %v1924, %v1922
    %v1959 = vpack.c.b16 %v1925, %v1923
    %v1960 = vpack.c.b16 %v1928, %v1926
    %v1961 = vpack.c.b16 %v1929, %v1927
    %1994 = vmatprep.subr.bf16.mxu0 %v1931
    %1995 = vmatpush1.bf16.msra.mxu0 %v1930
    %1996 = vmatprep.subr.bf16.mxu0 %v1933
    %1997 = vmatpush1.bf16.msra.mxu0 %v1932
    %1998 = vmatprep.subr.bf16.mxu0 %v1935
    %1999 = vmatpush1.bf16.msra.mxu0 %v1934
    %2000 = vmatprep.subr.bf16.mxu0 %v1937
    %2001 = vmatpush1.bf16.msra.mxu0 %v1936
    %2002 = vmatprep.subr.bf16.mxu0 %v1939
    %2003 = vmatpush1.bf16.msra.mxu0 %v1938
    %2004 = vmatprep.subr.bf16.mxu0 %v1941
    %2005 = vmatpush1.bf16.msra.mxu0 %v1940
    %2006 = vmatprep.subr.bf16.mxu0 %v1943
    %2007 = vmatpush1.bf16.msra.mxu0 %v1942
    %2008 = vmatprep.subr.bf16.mxu0 %v1945
    %2009 = vmatpush1.bf16.msra.mxu0 %v1944
    %2010 = vmatprep.subr.bf16.mxu0 %v1947
    %2011 = vmatpush1.bf16.msra.mxu0 %v1946
    %2012 = vmatprep.subr.bf16.mxu0 %v1949
    %2013 = vmatpush1.bf16.msra.mxu0 %v1948
    %2014 = vmatprep.subr.bf16.mxu0 %v1951
    %2015 = vmatpush1.bf16.msra.mxu0 %v1950
    %2016 = vmatprep.subr.bf16.mxu0 %v1953
    %2017 = vmatpush1.bf16.msra.mxu0 %v1952
    %2018 = vmatprep.subr.bf16.mxu0 %v1955
    %2019 = vmatpush1.bf16.msra.mxu0 %v1954
    %2020 = vmatprep.subr.bf16.mxu0 %v1957
    %2021 = vmatpush1.bf16.msra.mxu0 %v1956
    %2022 = vmatprep.subr.bf16.mxu0 %v1959
    %2023 = vmatpush1.bf16.msra.mxu0 %v1958
    %2024 = vmatprep.subr.bf16.mxu0 %v1961
    %2025 = vmatpush1.bf16.msra.mxu0 %v1960
    %2026 = vmatprep.mubr.bf16.mxu0 %v1787
    %2027 = vmatmul.mubr.bf16.gmra.mrb[0].mxu0 %v1786
    %v2028 = vpop.f32.mrb[0].mxu0
    %v2029 = vadd.f32 %v1827, %v2028
    %v2030 = vpop.f32.mrb[0].mxu0
    %v2031 = vadd.f32 %v1831, %v2030
    %v2032 = vpop.f32.mrb[0].mxu0
    %v2033 = vpop.f32.mrb[0].mxu0
    %2034 = vdwg.mxu0
    %2035 = vst [vmem:[#allocation7] sm:$0xff] %v2029
    %2036 = vst [vmem:[#allocation7 + $0x8] sm:$0xff] %v2031
    // Predicated region
    $region26: #{mlp_forward.1} parent=1 // pred_check
      _
    $region27: #{mlp_forward.1} parent=1 // pred_check_branch
      %2038 = sbr.rel (0) target = $region29
    $region28: #{mlp_forward.1} parent=1 // pred_region
      %s2040 = ssub.s32 256, 256
      %2041 = vsyncadd [#allocation4], %s2040
      %s2043 = sshll.u32 [#allocation7], 4
      %s2044 = int_to_ptr.vmem [resolvable:$true] %s2043
      %2046 = dma.vmem_to_hbm [thread:$0]  %s2044, 256, %s4, [#allocation4]
    $region29: #{mlp_forward.1} parent=1 // pred_fallthru
      _
    // Predicated region
    $region30: #{mlp_forward.1} parent=1 // pred_check
      _
    $region31: #{mlp_forward.1} parent=1 // pred_check_branch
      %2048 = sbr.rel (0) target = $region33
    $region32: #{mlp_forward.1} parent=1 // pred_region
      %2049 = dma.done [#allocation4], 256
    $region33: #{mlp_forward.1} parent=1 // pred_fallthru
      _
    %2050 = vsyncpa [#allocation3], 1
    %2051 = vsyncpa [#allocation6], 1
    %2052 = vsyncpa [#allocation4], 1

</llo_original>
